<compile_context>
chip_gen: v6e
topology: v6e:2x2x1
jax: 0.10.0
libtpu: 0.0.40
codegen_flags: <defaults>
</compile_context>

<pallas_src>
import jax
import jax.numpy as jnp
from jax.experimental import pallas as pl
from jax.experimental.pallas import tpu as pltpu


LAYER_SIZES = [1024, 512, 256, 128, 64, 1]
TM_ALIGN = 16  # sublane alignment safe for bf16 (16, 128) packing of the input tile


def _round_up(x, m):
    return (x + m - 1) // m * m


def _mlp_kernel(x_ref,
                w1, b1, w2, b2, w3, b3, w4, b4, w5, b5, w6t, b6,
                o_ref):
    """Fused 6-layer MLP: bf16 operands on the MXU, f32 accumulation,
    f32 bias/ReLU, final 64->1 layer as a VPU/XLU lane-reduce, sigmoid."""
    h = x_ref[...]                                     # (tm, D) bf16

    def dense_relu(h_bf16, w_ref, b_ref):
        y = jnp.dot(h_bf16, w_ref[...], preferred_element_type=jnp.float32)
        y = y + b_ref[...]                             # f32 bias add
        return jnp.maximum(y, 0.0)

    h = dense_relu(h, w1, b1).astype(jnp.bfloat16)     # (tm, 1024)
    h = dense_relu(h, w2, b2).astype(jnp.bfloat16)     # (tm, 512)
    h = dense_relu(h, w3, b3).astype(jnp.bfloat16)     # (tm, 256)
    h = dense_relu(h, w4, b4).astype(jnp.bfloat16)     # (tm, 128)
    h = dense_relu(h, w5, b5)                          # (tm, 64) f32

    # Final (64 -> 1) layer on the VPU/XLU: lane multiply + cross-lane reduce.
    # Avoids an MXU pass that would use only one output column.
    logits = jnp.sum(h * w6t[...], axis=-1, keepdims=True) + b6[...]   # (tm, 1) f32
    o_ref[...] = jax.nn.sigmoid(logits).astype(o_ref.dtype)


def _weight_specs(flat, single_buffer):
    # Full-shape, constant-index blocks: DMA'd into VMEM once, resident across
    # the whole grid.  single_buffer=True avoids the dead second buffer copy.
    if single_buffer:
        return [pl.BlockSpec(a.shape, lambda i: (0, 0),
                             pipeline_mode=pl.Buffered(1)) for a in flat]
    return [pl.BlockSpec(a.shape, lambda i: (0, 0)) for a in flat]


def paper_network_forward(x, params, *, tm=1024):
    """x: (B, input_size) float32.  params: list of (W, b), W (in, out) f32, b (1, out) f32."""
    B, D = x.shape

    # Batch-tile selection:
    #  * clamp down for tiny batches (TM_ALIGN-aligned for bf16 sublane packing),
    #  * cap so the grid has >= 2 steps whenever the batch spans more than one
    #    minimal tile, so the "parallel" axis can shard across v7x's two TCs.
    b_r = _round_up(B, TM_ALIGN)
    tm = _round_up(max(TM_ALIGN, min(tm, b_r)), TM_ALIGN)
    if b_r >= 2 * TM_ALIGN:
        tm = min(tm, _round_up((b_r + 1) // 2, TM_ALIGN))
    B_pad = _round_up(B, tm)

    x_bf = x.astype(jnp.bfloat16)
    if B_pad != B:
        x_bf = jnp.pad(x_bf, ((0, B_pad - B), (0, 0)))

    (w1, b1), (w2, b2), (w3, b3), (w4, b4), (w5, b5), (w6, b6) = params

    # bf16 weights for the MXU; biases stay f32.  The output layer's weight is
    # kept f32 and transposed to (1, 64) so it runs as a lane-reduce.
    flat = [w1.astype(jnp.bfloat16), b1,
            w2.astype(jnp.bfloat16), b2,
            w3.astype(jnp.bfloat16), b3,
            w4.astype(jnp.bfloat16), b4,
            w5.astype(jnp.bfloat16), b5,
            w6.T, b6]

    # Advisory cost estimate for XLA's scheduler.
    layer_dims = [D] + LAYER_SIZES
    flops = 2 * B_pad * sum(a * b for a, b in zip(layer_dims[:-1], layer_dims[1:]))
    param_bytes = sum(int(a.size) * a.dtype.itemsize for a in flat)
    bytes_accessed = param_bytes + 2 * B_pad * D + 4 * B_pad
    cost = pl.CostEstimate(flops=int(flops),
                           transcendentals=int(B_pad),
                           bytes_accessed=int(bytes_accessed))

    def run(single_buffer_weights):
        in_specs = [pl.BlockSpec((tm, D), lambda i: (i, 0))]
        in_specs += _weight_specs(flat, single_buffer_weights)
        out_spec = pl.BlockSpec((tm, 1), lambda i: (i, 0))
        return pl.pallas_call(
            _mlp_kernel,
            out_shape=jax.ShapeDtypeStruct((B_pad, 1), jnp.float32),
            grid_spec=pltpu.PrefetchScalarGridSpec(
                num_scalar_prefetch=0,
                grid=(B_pad // tm,),
                in_specs=in_specs,
                out_specs=out_spec,
            ),
            compiler_params=pltpu.CompilerParams(
                dimension_semantics=("parallel",),
                # ~1.5 MB resident bf16 weights + activation scratch at
                # tm <= 1024 fits comfortably; safe on v7x's 64 MiB physical VMEM.
                vmem_limit_bytes=32 << 20,
            ),
            cost_estimate=cost,
        )(x_bf, *flat)

    try:
        out = run(single_buffer_weights=True)
    except Exception:
        # Fallback if this JAX build rejects Buffered(1) single-buffering.
        out = run(single_buffer_weights=False)

    return out[:B]


def init_params(key, input_size):
    """Deterministic init matching nn.Linear's U(-1/sqrt(fan_in), 1/sqrt(fan_in))."""
    params = []
    fan_in = input_size
    for out_dim in LAYER_SIZES:
        key, kw, kb = jax.random.split(key, 3)
        bound = 1.0 / jnp.sqrt(jnp.float32(fan_in))
        w = jax.random.uniform(kw, (fan_in, out_dim), jnp.float32, -bound, bound)
        b = jax.random.uniform(kb, (1, out_dim), jnp.float32, -bound, bound)
        params.append((w, b))
        fan_in = out_dim
    return params


def reference_forward(x, params):
    """Eval-mode (dropout = identity) f32 reference matching the PyTorch module."""
    h = x
    for i, (w, b) in enumerate(params):
        h = h @ w + b
        if i < len(params) - 1:
            h = jnp.maximum(h, 0.0)
    return jax.nn.sigmoid(h)


if __name__ == "__main__":
    key = jax.random.PRNGKey(0)
    input_size = 32

    key, kp = jax.random.split(key)
    params = init_params(kp, input_size)

    # Small smoke test (tile clamps to tm=16, single grid step, batch padded 8->16).
    key, kx = jax.random.split(key)
    x_small = jax.random.normal(kx, (8, input_size), jnp.float32)
    out_small = jax.block_until_ready(paper_network_forward(x_small, params))
    ref_small = reference_forward(x_small, params)
    assert out_small.shape == (8, 1)
    assert jnp.allclose(out_small, ref_small, atol=2e-2), "mismatch (small)"

    # Larger case: batch padding (300 -> 320) and a 2-step "parallel" grid (tm=160).
    key, kx2 = jax.random.split(key)
    x_big = jax.random.normal(kx2, (300, input_size), jnp.float32)
    out_big = jax.block_until_ready(paper_network_forward(x_big, params))
    ref_big = reference_forward(x_big, params)
    assert out_big.shape == (300, 1)
    assert jnp.allclose(out_big, ref_big, atol=2e-2), "mismatch (big)"

    print("KERNEL_OK")
</pallas_src>

<mosaic_0001>
module attributes {stable_mosaic.version = 11 : i64} {
  func.func @_mlp_kernel(%arg0: i32, %arg1: memref<16x32xbf16, #tpu.memory_space<vmem>>, %arg2: memref<32x1024xbf16, #tpu.memory_space<vmem>>, %arg3: memref<1x1024xf32, #tpu.memory_space<vmem>>, %arg4: memref<1024x512xbf16, #tpu.memory_space<vmem>>, %arg5: memref<1x512xf32, #tpu.memory_space<vmem>>, %arg6: memref<512x256xbf16, #tpu.memory_space<vmem>>, %arg7: memref<1x256xf32, #tpu.memory_space<vmem>>, %arg8: memref<256x128xbf16, #tpu.memory_space<vmem>>, %arg9: memref<1x128xf32, #tpu.memory_space<vmem>>, %arg10: memref<128x64xbf16, #tpu.memory_space<vmem>>, %arg11: memref<1x64xf32, #tpu.memory_space<vmem>>, %arg12: memref<1x64xf32, #tpu.memory_space<vmem>>, %arg13: memref<1x1xf32, #tpu.memory_space<vmem>>, %arg14: memref<16x1xf32, #tpu.memory_space<vmem>>) attributes {dimension_semantics = [#tpu.dimension_semantics<parallel>], iteration_bounds = array<i64: 1>, scalar_prefetch = 0 : i64, scratch_operands = 0 : i64, tpu.core_type = #tpu.core_type<tc>, window_params = [{transform_indices = @transform_0, window_bounds = array<i64: 16, 32>}, {pipeline_mode = #tpu.pipeline_mode<synchronous>, transform_indices = @transform_1, window_bounds = array<i64: 32, 1024>}, {pipeline_mode = #tpu.pipeline_mode<synchronous>, transform_indices = @transform_2, window_bounds = array<i64: 1, 1024>}, {pipeline_mode = #tpu.pipeline_mode<synchronous>, transform_indices = @transform_3, window_bounds = array<i64: 1024, 512>}, {pipeline_mode = #tpu.pipeline_mode<synchronous>, transform_indices = @transform_4, window_bounds = array<i64: 1, 512>}, {pipeline_mode = #tpu.pipeline_mode<synchronous>, transform_indices = @transform_5, window_bounds = array<i64: 512, 256>}, {pipeline_mode = #tpu.pipeline_mode<synchronous>, transform_indices = @transform_6, window_bounds = array<i64: 1, 256>}, {pipeline_mode = #tpu.pipeline_mode<synchronous>, transform_indices = @transform_7, window_bounds = array<i64: 256, 128>}, {pipeline_mode = #tpu.pipeline_mode<synchronous>, transform_indices = @transform_8, window_bounds = array<i64: 1, 128>}, {pipeline_mode = #tpu.pipeline_mode<synchronous>, transform_indices = @transform_9, window_bounds = array<i64: 128, 64>}, {pipeline_mode = #tpu.pipeline_mode<synchronous>, transform_indices = @transform_10, window_bounds = array<i64: 1, 64>}, {pipeline_mode = #tpu.pipeline_mode<synchronous>, transform_indices = @transform_11, window_bounds = array<i64: 1, 64>}, {pipeline_mode = #tpu.pipeline_mode<synchronous>, transform_indices = @transform_12, window_bounds = array<i64: 1, 1>}, {transform_indices = @transform_13, window_bounds = array<i64: 16, 1>}]} {
    %c0 = arith.constant 0 : index
    %c0_0 = arith.constant 0 : index
    %0 = vector.load %arg1[%c0, %c0_0] : memref<16x32xbf16, #tpu.memory_space<vmem>>, vector<16x32xbf16>
    %c0_1 = arith.constant 0 : index
    %c0_2 = arith.constant 0 : index
    %1 = vector.load %arg2[%c0_1, %c0_2] : memref<32x1024xbf16, #tpu.memory_space<vmem>>, vector<32x1024xbf16>
    %cst = arith.constant dense<0.000000e+00> : vector<16x1024xf32>
    %2 = tpu.matmul %0, %1, %cst {dimension_numbers = #tpu.dot_dimension_numbers<[1], [0], [0], [1], [0, 0, 1, 1], [], []>} : vector<16x32xbf16>, vector<32x1024xbf16>, vector<16x1024xf32> -> vector<16x1024xf32>
    %c0_3 = arith.constant 0 : index
    %c0_4 = arith.constant 0 : index
    %3 = vector.load %arg3[%c0_3, %c0_4] : memref<1x1024xf32, #tpu.memory_space<vmem>>, vector<1x1024xf32>
    %4 = vector.broadcast %3 : vector<1x1024xf32> to vector<16x1024xf32>
    %5 = arith.addf %2, %4 : vector<16x1024xf32>
    %cst_5 = arith.constant 0.000000e+00 : f32
    %6 = vector.broadcast %cst_5 : f32 to vector<16x1024xf32>
    %7 = arith.maximumf %5, %6 : vector<16x1024xf32>
    %8 = arith.truncf %7 : vector<16x1024xf32> to vector<16x1024xbf16>
    %c0_6 = arith.constant 0 : index
    %c0_7 = arith.constant 0 : index
    %9 = vector.load %arg4[%c0_6, %c0_7] : memref<1024x512xbf16, #tpu.memory_space<vmem>>, vector<1024x512xbf16>
    %cst_8 = arith.constant dense<0.000000e+00> : vector<16x512xf32>
    %10 = tpu.matmul %8, %9, %cst_8 {dimension_numbers = #tpu.dot_dimension_numbers<[1], [0], [0], [1], [0, 0, 1, 1], [], []>} : vector<16x1024xbf16>, vector<1024x512xbf16>, vector<16x512xf32> -> vector<16x512xf32>
    %c0_9 = arith.constant 0 : index
    %c0_10 = arith.constant 0 : index
    %11 = vector.load %arg5[%c0_9, %c0_10] : memref<1x512xf32, #tpu.memory_space<vmem>>, vector<1x512xf32>
    %12 = vector.broadcast %11 : vector<1x512xf32> to vector<16x512xf32>
    %13 = arith.addf %10, %12 : vector<16x512xf32>
    %cst_11 = arith.constant 0.000000e+00 : f32
    %14 = vector.broadcast %cst_11 : f32 to vector<16x512xf32>
    %15 = arith.maximumf %13, %14 : vector<16x512xf32>
    %16 = arith.truncf %15 : vector<16x512xf32> to vector<16x512xbf16>
    %c0_12 = arith.constant 0 : index
    %c0_13 = arith.constant 0 : index
    %17 = vector.load %arg6[%c0_12, %c0_13] : memref<512x256xbf16, #tpu.memory_space<vmem>>, vector<512x256xbf16>
    %cst_14 = arith.constant dense<0.000000e+00> : vector<16x256xf32>
    %18 = tpu.matmul %16, %17, %cst_14 {dimension_numbers = #tpu.dot_dimension_numbers<[1], [0], [0], [1], [0, 0, 1, 1], [], []>} : vector<16x512xbf16>, vector<512x256xbf16>, vector<16x256xf32> -> vector<16x256xf32>
    %c0_15 = arith.constant 0 : index
    %c0_16 = arith.constant 0 : index
    %19 = vector.load %arg7[%c0_15, %c0_16] : memref<1x256xf32, #tpu.memory_space<vmem>>, vector<1x256xf32>
    %20 = vector.broadcast %19 : vector<1x256xf32> to vector<16x256xf32>
    %21 = arith.addf %18, %20 : vector<16x256xf32>
    %cst_17 = arith.constant 0.000000e+00 : f32
    %22 = vector.broadcast %cst_17 : f32 to vector<16x256xf32>
    %23 = arith.maximumf %21, %22 : vector<16x256xf32>
    %24 = arith.truncf %23 : vector<16x256xf32> to vector<16x256xbf16>
    %c0_18 = arith.constant 0 : index
    %c0_19 = arith.constant 0 : index
    %25 = vector.load %arg8[%c0_18, %c0_19] : memref<256x128xbf16, #tpu.memory_space<vmem>>, vector<256x128xbf16>
    %cst_20 = arith.constant dense<0.000000e+00> : vector<16x128xf32>
    %26 = tpu.matmul %24, %25, %cst_20 {dimension_numbers = #tpu.dot_dimension_numbers<[1], [0], [0], [1], [0, 0, 1, 1], [], []>} : vector<16x256xbf16>, vector<256x128xbf16>, vector<16x128xf32> -> vector<16x128xf32>
    %c0_21 = arith.constant 0 : index
    %c0_22 = arith.constant 0 : index
    %27 = vector.load %arg9[%c0_21, %c0_22] : memref<1x128xf32, #tpu.memory_space<vmem>>, vector<1x128xf32>
    %28 = vector.broadcast %27 : vector<1x128xf32> to vector<16x128xf32>
    %29 = arith.addf %26, %28 : vector<16x128xf32>
    %cst_23 = arith.constant 0.000000e+00 : f32
    %30 = vector.broadcast %cst_23 : f32 to vector<16x128xf32>
    %31 = arith.maximumf %29, %30 : vector<16x128xf32>
    %32 = arith.truncf %31 : vector<16x128xf32> to vector<16x128xbf16>
    %c0_24 = arith.constant 0 : index
    %c0_25 = arith.constant 0 : index
    %33 = vector.load %arg10[%c0_24, %c0_25] : memref<128x64xbf16, #tpu.memory_space<vmem>>, vector<128x64xbf16>
    %cst_26 = arith.constant dense<0.000000e+00> : vector<16x64xf32>
    %34 = tpu.matmul %32, %33, %cst_26 {dimension_numbers = #tpu.dot_dimension_numbers<[1], [0], [0], [1], [0, 0, 1, 1], [], []>} : vector<16x128xbf16>, vector<128x64xbf16>, vector<16x64xf32> -> vector<16x64xf32>
    %c0_27 = arith.constant 0 : index
    %c0_28 = arith.constant 0 : index
    %35 = vector.load %arg11[%c0_27, %c0_28] : memref<1x64xf32, #tpu.memory_space<vmem>>, vector<1x64xf32>
    %36 = vector.broadcast %35 : vector<1x64xf32> to vector<16x64xf32>
    %37 = arith.addf %34, %36 : vector<16x64xf32>
    %cst_29 = arith.constant 0.000000e+00 : f32
    %38 = vector.broadcast %cst_29 : f32 to vector<16x64xf32>
    %39 = arith.maximumf %37, %38 : vector<16x64xf32>
    %c0_30 = arith.constant 0 : index
    %c0_31 = arith.constant 0 : index
    %40 = vector.load %arg12[%c0_30, %c0_31] : memref<1x64xf32, #tpu.memory_space<vmem>>, vector<1x64xf32>
    %41 = vector.broadcast %40 : vector<1x64xf32> to vector<16x64xf32>
    %42 = arith.mulf %39, %41 : vector<16x64xf32>
    %cst_32 = arith.constant dense<0.000000e+00> : vector<16xf32>
    %43 = vector.multi_reduction <add>, %42, %cst_32 [1] : vector<16x64xf32> to vector<16xf32>
    %44 = vector.shape_cast %43 : vector<16xf32> to vector<16x1xf32>
    %c0_33 = arith.constant 0 : index
    %c0_34 = arith.constant 0 : index
    %45 = vector.load %arg13[%c0_33, %c0_34] : memref<1x1xf32, #tpu.memory_space<vmem>>, vector<1x1xf32>
    %46 = vector.broadcast %45 : vector<1x1xf32> to vector<16x1xf32>
    %47 = arith.addf %44, %46 : vector<16x1xf32>
    %48 = arith.negf %47 : vector<16x1xf32>
    %49 = math.exp %48 : vector<16x1xf32>
    %cst_35 = arith.constant 1.000000e+00 : f32
    %50 = vector.broadcast %cst_35 : f32 to vector<16x1xf32>
    %51 = arith.addf %50, %49 : vector<16x1xf32>
    %52 = arith.divf %50, %51 : vector<16x1xf32>
    %c0_36 = arith.constant 0 : index
    %c0_37 = arith.constant 0 : index
    %53 = vector.load %arg14[%c0_36, %c0_37] : memref<16x1xf32, #tpu.memory_space<vmem>>, vector<16x1xf32>
    tpu.vector_store %arg14[%c0_36, %c0_37], %52 {strides = array<i32>} : memref<16x1xf32, #tpu.memory_space<vmem>>, vector<16x1xf32>,
    return
  }
  func.func @transform_0(%arg0: i32) -> (i32, i32) {
    %c0_i32 = arith.constant 0 : i32
    %c0_i32_0 = arith.constant 0 : i32
    return %arg0, %c0_i32 : i32, i32
  }
  func.func @transform_1(%arg0: i32) -> (i32, i32) {
    %c0_i32 = arith.constant 0 : i32
    %c0_i32_0 = arith.constant 0 : i32
    %c0_i32_1 = arith.constant 0 : i32
    return %c0_i32, %c0_i32_0 : i32, i32
  }
  func.func @transform_2(%arg0: i32) -> (i32, i32) {
    %c0_i32 = arith.constant 0 : i32
    %c0_i32_0 = arith.constant 0 : i32
    %c0_i32_1 = arith.constant 0 : i32
    return %c0_i32, %c0_i32_0 : i32, i32
  }
  func.func @transform_3(%arg0: i32) -> (i32, i32) {
    %c0_i32 = arith.constant 0 : i32
    %c0_i32_0 = arith.constant 0 : i32
    %c0_i32_1 = arith.constant 0 : i32
    return %c0_i32, %c0_i32_0 : i32, i32
  }
  func.func @transform_4(%arg0: i32) -> (i32, i32) {
    %c0_i32 = arith.constant 0 : i32
    %c0_i32_0 = arith.constant 0 : i32
    %c0_i32_1 = arith.constant 0 : i32
    return %c0_i32, %c0_i32_0 : i32, i32
  }
  func.func @transform_5(%arg0: i32) -> (i32, i32) {
    %c0_i32 = arith.constant 0 : i32
    %c0_i32_0 = arith.constant 0 : i32
    %c0_i32_1 = arith.constant 0 : i32
    return %c0_i32, %c0_i32_0 : i32, i32
  }
  func.func @transform_6(%arg0: i32) -> (i32, i32) {
    %c0_i32 = arith.constant 0 : i32
    %c0_i32_0 = arith.constant 0 : i32
    %c0_i32_1 = arith.constant 0 : i32
    return %c0_i32, %c0_i32_0 : i32, i32
  }
  func.func @transform_7(%arg0: i32) -> (i32, i32) {
    %c0_i32 = arith.constant 0 : i32
    %c0_i32_0 = arith.constant 0 : i32
    %c0_i32_1 = arith.constant 0 : i32
    return %c0_i32, %c0_i32_0 : i32, i32
  }
  func.func @transform_8(%arg0: i32) -> (i32, i32) {
    %c0_i32 = arith.constant 0 : i32
    %c0_i32_0 = arith.constant 0 : i32
    %c0_i32_1 = arith.constant 0 : i32
    return %c0_i32, %c0_i32_0 : i32, i32
  }
  func.func @transform_9(%arg0: i32) -> (i32, i32) {
    %c0_i32 = arith.constant 0 : i32
    %c0_i32_0 = arith.constant 0 : i32
    %c0_i32_1 = arith.constant 0 : i32
    return %c0_i32, %c0_i32_0 : i32, i32
  }
  func.func @transform_10(%arg0: i32) -> (i32, i32) {
    %c0_i32 = arith.constant 0 : i32
    %c0_i32_0 = arith.constant 0 : i32
    %c0_i32_1 = arith.constant 0 : i32
    return %c0_i32, %c0_i32_0 : i32, i32
  }
  func.func @transform_11(%arg0: i32) -> (i32, i32) {
    %c0_i32 = arith.constant 0 : i32
    %c0_i32_0 = arith.constant 0 : i32
    %c0_i32_1 = arith.constant 0 : i32
    return %c0_i32, %c0_i32_0 : i32, i32
  }
  func.func @transform_12(%arg0: i32) -> (i32, i32) {
    %c0_i32 = arith.constant 0 : i32
    %c0_i32_0 = arith.constant 0 : i32
    %c0_i32_1 = arith.constant 0 : i32
    return %c0_i32, %c0_i32_0 : i32, i32
  }
  func.func @transform_13(%arg0: i32) -> (i32, i32) {
    %c0_i32 = arith.constant 0 : i32
    %c0_i32_0 = arith.constant 0 : i32
    return %arg0, %c0_i32 : i32, i32
  }
}

module attributes {stable_mosaic.version = 11 : i64} {
  func.func @_mlp_kernel(%arg0: i32, %arg1: memref<16x32xbf16, #tpu.memory_space<vmem>>, %arg2: memref<32x1024xbf16, #tpu.memory_space<vmem>>, %arg3: memref<1x1024xf32, #tpu.memory_space<vmem>>, %arg4: memref<1024x512xbf16, #tpu.memory_space<vmem>>, %arg5: memref<1x512xf32, #tpu.memory_space<vmem>>, %arg6: memref<512x256xbf16, #tpu.memory_space<vmem>>, %arg7: memref<1x256xf32, #tpu.memory_space<vmem>>, %arg8: memref<256x128xbf16, #tpu.memory_space<vmem>>, %arg9: memref<1x128xf32, #tpu.memory_space<vmem>>, %arg10: memref<128x64xbf16, #tpu.memory_space<vmem>>, %arg11: memref<1x64xf32, #tpu.memory_space<vmem>>, %arg12: memref<1x64xf32, #tpu.memory_space<vmem>>, %arg13: memref<1x1xf32, #tpu.memory_space<vmem>>, %arg14: memref<16x1xf32, #tpu.memory_space<vmem>>) attributes {dimension_semantics = [#tpu.dimension_semantics<parallel>], iteration_bounds = array<i64: 1>, scalar_prefetch = 0 : i64, scratch_operands = 0 : i64, tpu.core_type = #tpu.core_type<tc>, window_params = [{transform_indices = @transform_0, window_bounds = array<i64: 16, 32>}, {pipeline_mode = #tpu.pipeline_mode<synchronous>, transform_indices = @transform_1, window_bounds = array<i64: 32, 1024>}, {pipeline_mode = #tpu.pipeline_mode<synchronous>, transform_indices = @transform_2, window_bounds = array<i64: 1, 1024>}, {pipeline_mode = #tpu.pipeline_mode<synchronous>, transform_indices = @transform_3, window_bounds = array<i64: 1024, 512>}, {pipeline_mode = #tpu.pipeline_mode<synchronous>, transform_indices = @transform_4, window_bounds = array<i64: 1, 512>}, {pipeline_mode = #tpu.pipeline_mode<synchronous>, transform_indices = @transform_5, window_bounds = array<i64: 512, 256>}, {pipeline_mode = #tpu.pipeline_mode<synchronous>, transform_indices = @transform_6, window_bounds = array<i64: 1, 256>}, {pipeline_mode = #tpu.pipeline_mode<synchronous>, transform_indices = @transform_7, window_bounds = array<i64: 256, 128>}, {pipeline_mode = #tpu.pipeline_mode<synchronous>, transform_indices = @transform_8, window_bounds = array<i64: 1, 128>}, {pipeline_mode = #tpu.pipeline_mode<synchronous>, transform_indices = @transform_9, window_bounds = array<i64: 128, 64>}, {pipeline_mode = #tpu.pipeline_mode<synchronous>, transform_indices = @transform_10, window_bounds = array<i64: 1, 64>}, {pipeline_mode = #tpu.pipeline_mode<synchronous>, transform_indices = @transform_11, window_bounds = array<i64: 1, 64>}, {pipeline_mode = #tpu.pipeline_mode<synchronous>, transform_indices = @transform_12, window_bounds = array<i64: 1, 1>}, {transform_indices = @transform_13, window_bounds = array<i64: 16, 1>}]} {
    %c0 = arith.constant 0 : index
    %c0_0 = arith.constant 0 : index
    %0 = vector.load %arg1[%c0, %c0_0] : memref<16x32xbf16, #tpu.memory_space<vmem>>, vector<16x32xbf16>
    %c0_1 = arith.constant 0 : index
    %c0_2 = arith.constant 0 : index
    %1 = vector.load %arg2[%c0_1, %c0_2] : memref<32x1024xbf16, #tpu.memory_space<vmem>>, vector<32x1024xbf16>
    %cst = arith.constant dense<0.000000e+00> : vector<16x1024xf32>
    %2 = tpu.matmul %0, %1, %cst {dimension_numbers = #tpu.dot_dimension_numbers<[1], [0], [0], [1], [0, 0, 1, 1], [], []>} : vector<16x32xbf16>, vector<32x1024xbf16>, vector<16x1024xf32> -> vector<16x1024xf32>
    %c0_3 = arith.constant 0 : index
    %c0_4 = arith.constant 0 : index
    %3 = vector.load %arg3[%c0_3, %c0_4] : memref<1x1024xf32, #tpu.memory_space<vmem>>, vector<1x1024xf32>
    %4 = vector.broadcast %3 : vector<1x1024xf32> to vector<16x1024xf32>
    %5 = arith.addf %2, %4 : vector<16x1024xf32>
    %cst_5 = arith.constant 0.000000e+00 : f32
    %6 = vector.broadcast %cst_5 : f32 to vector<16x1024xf32>
    %7 = arith.maximumf %5, %6 : vector<16x1024xf32>
    %8 = arith.truncf %7 : vector<16x1024xf32> to vector<16x1024xbf16>
    %c0_6 = arith.constant 0 : index
    %c0_7 = arith.constant 0 : index
    %9 = vector.load %arg4[%c0_6, %c0_7] : memref<1024x512xbf16, #tpu.memory_space<vmem>>, vector<1024x512xbf16>
    %cst_8 = arith.constant dense<0.000000e+00> : vector<16x512xf32>
    %10 = tpu.matmul %8, %9, %cst_8 {dimension_numbers = #tpu.dot_dimension_numbers<[1], [0], [0], [1], [0, 0, 1, 1], [], []>} : vector<16x1024xbf16>, vector<1024x512xbf16>, vector<16x512xf32> -> vector<16x512xf32>
    %c0_9 = arith.constant 0 : index
    %c0_10 = arith.constant 0 : index
    %11 = vector.load %arg5[%c0_9, %c0_10] : memref<1x512xf32, #tpu.memory_space<vmem>>, vector<1x512xf32>
    %12 = vector.broadcast %11 : vector<1x512xf32> to vector<16x512xf32>
    %13 = arith.addf %10, %12 : vector<16x512xf32>
    %cst_11 = arith.constant 0.000000e+00 : f32
    %14 = vector.broadcast %cst_11 : f32 to vector<16x512xf32>
    %15 = arith.maximumf %13, %14 : vector<16x512xf32>
    %16 = arith.truncf %15 : vector<16x512xf32> to vector<16x512xbf16>
    %c0_12 = arith.constant 0 : index
    %c0_13 = arith.constant 0 : index
    %17 = vector.load %arg6[%c0_12, %c0_13] : memref<512x256xbf16, #tpu.memory_space<vmem>>, vector<512x256xbf16>
    %cst_14 = arith.constant dense<0.000000e+00> : vector<16x256xf32>
    %18 = tpu.matmul %16, %17, %cst_14 {dimension_numbers = #tpu.dot_dimension_numbers<[1], [0], [0], [1], [0, 0, 1, 1], [], []>} : vector<16x512xbf16>, vector<512x256xbf16>, vector<16x256xf32> -> vector<16x256xf32>
    %c0_15 = arith.constant 0 : index
    %c0_16 = arith.constant 0 : index
    %19 = vector.load %arg7[%c0_15, %c0_16] : memref<1x256xf32, #tpu.memory_space<vmem>>, vector<1x256xf32>
    %20 = vector.broadcast %19 : vector<1x256xf32> to vector<16x256xf32>
    %21 = arith.addf %18, %20 : vector<16x256xf32>
    %cst_17 = arith.constant 0.000000e+00 : f32
    %22 = vector.broadcast %cst_17 : f32 to vector<16x256xf32>
    %23 = arith.maximumf %21, %22 : vector<16x256xf32>
    %24 = arith.truncf %23 : vector<16x256xf32> to vector<16x256xbf16>
    %c0_18 = arith.constant 0 : index
    %c0_19 = arith.constant 0 : index
    %25 = vector.load %arg8[%c0_18, %c0_19] : memref<256x128xbf16, #tpu.memory_space<vmem>>, vector<256x128xbf16>
    %cst_20 = arith.constant dense<0.000000e+00> : vector<16x128xf32>
    %26 = tpu.matmul %24, %25, %cst_20 {dimension_numbers = #tpu.dot_dimension_numbers<[1], [0], [0], [1], [0, 0, 1, 1], [], []>} : vector<16x256xbf16>, vector<256x128xbf16>, vector<16x128xf32> -> vector<16x128xf32>
    %c0_21 = arith.constant 0 : index
    %c0_22 = arith.constant 0 : index
    %27 = vector.load %arg9[%c0_21, %c0_22] : memref<1x128xf32, #tpu.memory_space<vmem>>, vector<1x128xf32>
    %28 = vector.broadcast %27 : vector<1x128xf32> to vector<16x128xf32>
    %29 = arith.addf %26, %28 : vector<16x128xf32>
    %cst_23 = arith.constant 0.000000e+00 : f32
    %30 = vector.broadcast %cst_23 : f32 to vector<16x128xf32>
    %31 = arith.maximumf %29, %30 : vector<16x128xf32>
    %32 = arith.truncf %31 : vector<16x128xf32> to vector<16x128xbf16>
    %c0_24 = arith.constant 0 : index
    %c0_25 = arith.constant 0 : index
    %33 = vector.load %arg10[%c0_24, %c0_25] : memref<128x64xbf16, #tpu.memory_space<vmem>>, vector<128x64xbf16>
    %cst_26 = arith.constant dense<0.000000e+00> : vector<16x64xf32>
    %34 = tpu.matmul %32, %33, %cst_26 {dimension_numbers = #tpu.dot_dimension_numbers<[1], [0], [0], [1], [0, 0, 1, 1], [], []>} : vector<16x128xbf16>, vector<128x64xbf16>, vector<16x64xf32> -> vector<16x64xf32>
    %c0_27 = arith.constant 0 : index
    %c0_28 = arith.constant 0 : index
    %35 = vector.load %arg11[%c0_27, %c0_28] : memref<1x64xf32, #tpu.memory_space<vmem>>, vector<1x64xf32>
    %36 = vector.broadcast %35 : vector<1x64xf32> to vector<16x64xf32>
    %37 = arith.addf %34, %36 : vector<16x64xf32>
    %cst_29 = arith.constant 0.000000e+00 : f32
    %38 = vector.broadcast %cst_29 : f32 to vector<16x64xf32>
    %39 = arith.maximumf %37, %38 : vector<16x64xf32>
    %c0_30 = arith.constant 0 : index
    %c0_31 = arith.constant 0 : index
    %40 = vector.load %arg12[%c0_30, %c0_31] : memref<1x64xf32, #tpu.memory_space<vmem>>, vector<1x64xf32>
    %41 = vector.broadcast %40 : vector<1x64xf32> to vector<16x64xf32>
    %42 = arith.mulf %39, %41 : vector<16x64xf32>
    %cst_32 = arith.constant dense<0.000000e+00> : vector<16xf32>
    %43 = vector.multi_reduction <add>, %42, %cst_32 [1] : vector<16x64xf32> to vector<16xf32>
    %44 = vector.shape_cast %43 : vector<16xf32> to vector<16x1xf32>
    %c0_33 = arith.constant 0 : index
    %c0_34 = arith.constant 0 : index
    %45 = vector.load %arg13[%c0_33, %c0_34] : memref<1x1xf32, #tpu.memory_space<vmem>>, vector<1x1xf32>
    %46 = vector.broadcast %45 : vector<1x1xf32> to vector<16x1xf32>
    %47 = arith.addf %44, %46 : vector<16x1xf32>
    %48 = arith.negf %47 : vector<16x1xf32>
    %49 = math.exp %48 : vector<16x1xf32>
    %cst_35 = arith.constant 1.000000e+00 : f32
    %50 = vector.broadcast %cst_35 : f32 to vector<16x1xf32>
    %51 = arith.addf %50, %49 : vector<16x1xf32>
    %52 = arith.divf %50, %51 : vector<16x1xf32>
    %c0_36 = arith.constant 0 : index
    %c0_37 = arith.constant 0 : index
    %53 = vector.load %arg14[%c0_36, %c0_37] : memref<16x1xf32, #tpu.memory_space<vmem>>, vector<16x1xf32>
    tpu.vector_store %arg14[%c0_36, %c0_37], %52 {strides = array<i32>} : memref<16x1xf32, #tpu.memory_space<vmem>>, vector<16x1xf32>,
    return
  }
  func.func @transform_0(%arg0: i32) -> (i32, i32) {
    %c0_i32 = arith.constant 0 : i32
    %c0_i32_0 = arith.constant 0 : i32
    return %arg0, %c0_i32 : i32, i32
  }
  func.func @transform_1(%arg0: i32) -> (i32, i32) {
    %c0_i32 = arith.constant 0 : i32
    %c0_i32_0 = arith.constant 0 : i32
    %c0_i32_1 = arith.constant 0 : i32
    return %c0_i32, %c0_i32_0 : i32, i32
  }
  func.func @transform_2(%arg0: i32) -> (i32, i32) {
    %c0_i32 = arith.constant 0 : i32
    %c0_i32_0 = arith.constant 0 : i32
    %c0_i32_1 = arith.constant 0 : i32
    return %c0_i32, %c0_i32_0 : i32, i32
  }
  func.func @transform_3(%arg0: i32) -> (i32, i32) {
    %c0_i32 = arith.constant 0 : i32
    %c0_i32_0 = arith.constant 0 : i32
    %c0_i32_1 = arith.constant 0 : i32
    return %c0_i32, %c0_i32_0 : i32, i32
  }
  func.func @transform_4(%arg0: i32) -> (i32, i32) {
    %c0_i32 = arith.constant 0 : i32
    %c0_i32_0 = arith.constant 0 : i32
    %c0_i32_1 = arith.constant 0 : i32
    return %c0_i32, %c0_i32_0 : i32, i32
  }
  func.func @transform_5(%arg0: i32) -> (i32, i32) {
    %c0_i32 = arith.constant 0 : i32
    %c0_i32_0 = arith.constant 0 : i32
    %c0_i32_1 = arith.constant 0 : i32
    return %c0_i32, %c0_i32_0 : i32, i32
  }
  func.func @transform_6(%arg0: i32) -> (i32, i32) {
    %c0_i32 = arith.constant 0 : i32
    %c0_i32_0 = arith.constant 0 : i32
    %c0_i32_1 = arith.constant 0 : i32
    return %c0_i32, %c0_i32_0 : i32, i32
  }
  func.func @transform_7(%arg0: i32) -> (i32, i32) {
    %c0_i32 = arith.constant 0 : i32
    %c0_i32_0 = arith.constant 0 : i32
    %c0_i32_1 = arith.constant 0 : i32
    return %c0_i32, %c0_i32_0 : i32, i32
  }
  func.func @transform_8(%arg0: i32) -> (i32, i32) {
    %c0_i32 = arith.constant 0 : i32
    %c0_i32_0 = arith.constant 0 : i32
    %c0_i32_1 = arith.constant 0 : i32
    return %c0_i32, %c0_i32_0 : i32, i32
  }
  func.func @transform_9(%arg0: i32) -> (i32, i32) {
    %c0_i32 = arith.constant 0 : i32
    %c0_i32_0 = arith.constant 0 : i32
    %c0_i32_1 = arith.constant 0 : i32
    return %c0_i32, %c0_i32_0 : i32, i32
  }
  func.func @transform_10(%arg0: i32) -> (i32, i32) {
    %c0_i32 = arith.constant 0 : i32
    %c0_i32_0 = arith.constant 0 : i32
    %c0_i32_1 = arith.constant 0 : i32
    return %c0_i32, %c0_i32_0 : i32, i32
  }
  func.func @transform_11(%arg0: i32) -> (i32, i32) {
    %c0_i32 = arith.constant 0 : i32
    %c0_i32_0 = arith.constant 0 : i32
    %c0_i32_1 = arith.constant 0 : i32
    return %c0_i32, %c0_i32_0 : i32, i32
  }
  func.func @transform_12(%arg0: i32) -> (i32, i32) {
    %c0_i32 = arith.constant 0 : i32
    %c0_i32_0 = arith.constant 0 : i32
    %c0_i32_1 = arith.constant 0 : i32
    return %c0_i32, %c0_i32_0 : i32, i32
  }
  func.func @transform_13(%arg0: i32) -> (i32, i32) {
    %c0_i32 = arith.constant 0 : i32
    %c0_i32_0 = arith.constant 0 : i32
    return %arg0, %c0_i32 : i32, i32
  }
}

</mosaic_0001>

<llo_original>
// kernel: tpu_custom_call.1
$region0: #{tpu_custom_call.1}
  #allocation0 [shape = 'u32[]', space=smem, size = 0x4, offset = 0x4, fixed_abs, tag = 'smem constant byte address 0x4 - core index']
  #allocation1 [shape = 'u32[144,128]{1,0:T(1,128)}', space=vmem, size = 0x12000, scoped, tag = 'internal scratch']
  #allocation2 [shape = 'f32[1,1]{1,0:T(1,128)S(1)}', space=vmem, size = 0x200, scoped, tag = 'scoped memory for tpu_custom_call.1']
  %s0 = inlined_call_operand.vmem [shape: bf16[16,32], index: 0, kind: input, shape index: {}]
  %s1 = inlined_call_operand.hbm [shape: bf16[32,1024], index: 1, kind: input, shape index: {}]
  %s2 = inlined_call_operand.vmem [shape: f32[1,1024], index: 2, kind: input, shape index: {}]
  %s3 = inlined_call_operand.hbm [shape: bf16[1024,512], index: 3, kind: input, shape index: {}]
  %s4 = inlined_call_operand.vmem [shape: f32[1,512], index: 4, kind: input, shape index: {}]
  %s5 = inlined_call_operand.hbm [shape: bf16[512,256], index: 5, kind: input, shape index: {}]
  %s6 = inlined_call_operand.vmem [shape: f32[1,256], index: 6, kind: input, shape index: {}]
  %s7 = inlined_call_operand.hbm [shape: bf16[256,128], index: 7, kind: input, shape index: {}]
  %s8 = inlined_call_operand.vmem [shape: f32[1,128], index: 8, kind: input, shape index: {}]
  %s9 = inlined_call_operand.vmem [shape: bf16[128,64], index: 9, kind: input, shape index: {}]
  %s10 = inlined_call_operand.vmem [shape: f32[1,64], index: 10, kind: input, shape index: {}]
  %s11 = inlined_call_operand.vmem [shape: f32[1,64], index: 11, kind: input, shape index: {}]
  %s12 = inlined_call_operand.<no memory space> [shape: f32[1,1], index: 12, kind: input, shape index: {}]
  %s13 = inlined_call_operand.vmem [shape: f32[16,1], index: 13, kind: output, shape index: {}]
  %s14 = sld [smem:[#allocation0]]
  $region78: #{tpu_custom_call.1} parent=0
    _
  %s16 = ssub.s32 1, %s14
  %s17 = scalar_select 0, %s16, %s14
  %v18 = vstv %s12
  %19 = vst [vmem:[#allocation2] sm:$0x1] %v18
  $region1: #{tpu_custom_call.1} parent=0
    #allocation3 [shape = 'u8[65536]{0}', space=vmem, size = 0x10000, scoped, tag = 'input window, operand 1, single buffered']
    #allocation4 [shape = 's32[1]{0}', space=sflag, size = 0x4, scoped, tag = 'scoped memory for tpu_custom_call.1']
    #allocation5 [shape = 'u8[1048576]{0}', space=vmem, size = 0x100000, scoped, tag = 'input window, operand 3, single buffered']
    #allocation6 [shape = 's32[1]{0}', space=sflag, size = 0x4, scoped, tag = 'scoped memory for tpu_custom_call.1']
    #allocation7 [shape = 'u8[262144]{0}', space=vmem, size = 0x40000, scoped, tag = 'input window, operand 5, single buffered']
    #allocation8 [shape = 'u8[65536]{0}', space=vmem, size = 0x10000, scoped, tag = 'input window, operand 7, single buffered']
    #allocation9 [shape = 's32[1]{0}', space=sflag, size = 0x4, scoped, tag = 'scoped memory for tpu_custom_call.1']
    %20 = vsyncpa [#allocation4], 0
    %21 = vsyncpa [#allocation6], 0
    %22 = vsyncpa [#allocation9], 0
    // Predicated region
    $region2: #{tpu_custom_call.1} parent=1 // pred_check
      _
    $region3: #{tpu_custom_call.1} parent=1 // pred_check_branch
      %24 = sbr.rel (0) target = $region5
    $region4: #{tpu_custom_call.1} parent=1 // pred_region
      _
    $region5: #{tpu_custom_call.1} parent=1 // pred_fallthru
      _
    // Predicated region
    $region6: #{tpu_custom_call.1} parent=1 // pred_check
      _
    $region7: #{tpu_custom_call.1} parent=1 // pred_check_branch
      %26 = sbr.rel (0) target = $region9
    $region8: #{tpu_custom_call.1} parent=1 // pred_region
      %s28 = ssub.s32 2048, 2048
      %29 = vsyncadd [#allocation4], %s28
      %s30 = sshll.u32 [#allocation3], 4
      %s31 = int_to_ptr.vmem [resolvable:$true] %s30
      %36 = dma.hbm_to_vmem [thread:$0]  %s1, 2048, %s31, [#allocation4], 512, 512, 32
    $region9: #{tpu_custom_call.1} parent=1 // pred_fallthru
      _
    // Predicated region
    $region10: #{tpu_custom_call.1} parent=1 // pred_check
      _
    $region11: #{tpu_custom_call.1} parent=1 // pred_check_branch
      %38 = sbr.rel (0) target = $region13
    $region12: #{tpu_custom_call.1} parent=1 // pred_region
      _
    $region13: #{tpu_custom_call.1} parent=1 // pred_fallthru
      _
    // Predicated region
    $region14: #{tpu_custom_call.1} parent=1 // pred_check
      _
    $region15: #{tpu_custom_call.1} parent=1 // pred_check_branch
      %40 = sbr.rel (0) target = $region17
    $region16: #{tpu_custom_call.1} parent=1 // pred_region
      %s42 = ssub.s32 32768, 32768
      %43 = vsyncadd [#allocation6], %s42
      %s44 = sshll.u32 [#allocation5], 4
      %s45 = int_to_ptr.vmem [resolvable:$true] %s44
      %50 = dma.hbm_to_vmem [thread:$0]  %s3, 32768, %s45, [#allocation6], 256, 256, 16
    $region17: #{tpu_custom_call.1} parent=1 // pred_fallthru
      _
    // Predicated region
    $region18: #{tpu_custom_call.1} parent=1 // pred_check
      _
    $region19: #{tpu_custom_call.1} parent=1 // pred_check_branch
      %52 = sbr.rel (0) target = $region21
    $region20: #{tpu_custom_call.1} parent=1 // pred_region
      _
    $region21: #{tpu_custom_call.1} parent=1 // pred_fallthru
      _
    // Predicated region
    $region22: #{tpu_custom_call.1} parent=1 // pred_check
      _
    $region23: #{tpu_custom_call.1} parent=1 // pred_check_branch
      %54 = sbr.rel (0) target = $region25
    $region24: #{tpu_custom_call.1} parent=1 // pred_region
      %s56 = ssub.s32 8192, 8192
      %57 = vsyncadd [#allocation6], %s56
      %s58 = sshll.u32 [#allocation7], 4
      %s59 = int_to_ptr.vmem [resolvable:$true] %s58
      %64 = dma.hbm_to_vmem [thread:$0]  %s5, 8192, %s59, [#allocation6], 128, 128, 8
    $region25: #{tpu_custom_call.1} parent=1 // pred_fallthru
      _
    // Predicated region
    $region26: #{tpu_custom_call.1} parent=1 // pred_check
      _
    $region27: #{tpu_custom_call.1} parent=1 // pred_check_branch
      %66 = sbr.rel (0) target = $region29
    $region28: #{tpu_custom_call.1} parent=1 // pred_region
      _
    $region29: #{tpu_custom_call.1} parent=1 // pred_fallthru
      _
    // Predicated region
    $region30: #{tpu_custom_call.1} parent=1 // pred_check
      _
    $region31: #{tpu_custom_call.1} parent=1 // pred_check_branch
      %68 = sbr.rel (0) target = $region33
    $region32: #{tpu_custom_call.1} parent=1 // pred_region
      %s70 = ssub.s32 2048, 2048
      %71 = vsyncadd [#allocation9], %s70
      %s72 = sshll.u32 [#allocation8], 4
      %s73 = int_to_ptr.vmem [resolvable:$true] %s72
      %78 = dma.hbm_to_vmem [thread:$0]  %s7, 2048, %s73, [#allocation9], 64, 64, 4
    $region33: #{tpu_custom_call.1} parent=1 // pred_fallthru
      _
    // Predicated region
    $region34: #{tpu_custom_call.1} parent=1 // pred_check
      _
    $region35: #{tpu_custom_call.1} parent=1 // pred_check_branch
      %80 = sbr.rel (0) target = $region37
    $region36: #{tpu_custom_call.1} parent=1 // pred_region
      _
    $region37: #{tpu_custom_call.1} parent=1 // pred_fallthru
      _
    // Predicated region
    $region38: #{tpu_custom_call.1} parent=1 // pred_check
      _
    $region39: #{tpu_custom_call.1} parent=1 // pred_check_branch
      %82 = sbr.rel (0) target = $region41
    $region40: #{tpu_custom_call.1} parent=1 // pred_region
      _
    $region41: #{tpu_custom_call.1} parent=1 // pred_fallthru
      _
    // Predicated region
    $region42: #{tpu_custom_call.1} parent=1 // pred_check
      _
    $region43: #{tpu_custom_call.1} parent=1 // pred_check_branch
      %84 = sbr.rel (0) target = $region45
    $region44: #{tpu_custom_call.1} parent=1 // pred_region
      _
    $region45: #{tpu_custom_call.1} parent=1 // pred_fallthru
      _
    // Predicated region
    $region46: #{tpu_custom_call.1} parent=1 // pred_check
      _
    $region47: #{tpu_custom_call.1} parent=1 // pred_check_branch
      %86 = sbr.rel (0) target = $region49
    $region48: #{tpu_custom_call.1} parent=1 // pred_region
      _
    $region49: #{tpu_custom_call.1} parent=1 // pred_fallthru
      _
    // Predicated region
    $region50: #{tpu_custom_call.1} parent=1 // pred_check
      _
    $region51: #{tpu_custom_call.1} parent=1 // pred_check_branch
      %88 = sbr.rel (0) target = $region53
    $region52: #{tpu_custom_call.1} parent=1 // pred_region
      _
    $region53: #{tpu_custom_call.1} parent=1 // pred_fallthru
      _
    // Predicated region
    $region54: #{tpu_custom_call.1} parent=1 // pred_check
      _
    $region55: #{tpu_custom_call.1} parent=1 // pred_check_branch
      %90 = sbr.rel (0) target = $region57
    $region56: #{tpu_custom_call.1} parent=1 // pred_region
      %91 = dma.done [#allocation4], 2048
    $region57: #{tpu_custom_call.1} parent=1 // pred_fallthru
      _
    // Predicated region
    $region58: #{tpu_custom_call.1} parent=1 // pred_check
      _
    $region59: #{tpu_custom_call.1} parent=1 // pred_check_branch
      %93 = sbr.rel (0) target = $region61
    $region60: #{tpu_custom_call.1} parent=1 // pred_region
      %94 = dma.done [#allocation6], 32768
    $region61: #{tpu_custom_call.1} parent=1 // pred_fallthru
      _
    // Predicated region
    $region62: #{tpu_custom_call.1} parent=1 // pred_check
      _
    $region63: #{tpu_custom_call.1} parent=1 // pred_check_branch
      %96 = sbr.rel (0) target = $region65
    $region64: #{tpu_custom_call.1} parent=1 // pred_region
      %97 = dma.done [#allocation6], 8192
    $region65: #{tpu_custom_call.1} parent=1 // pred_fallthru
      _
    // Predicated region
    $region66: #{tpu_custom_call.1} parent=1 // pred_check
      _
    $region67: #{tpu_custom_call.1} parent=1 // pred_check_branch
      %99 = sbr.rel (0) target = $region69
    $region68: #{tpu_custom_call.1} parent=1 // pred_region
      %100 = dma.done [#allocation9], 2048
    $region69: #{tpu_custom_call.1} parent=1 // pred_fallthru
      _
    %v102 = vld [vmem:[%s0] sm:$0xf]
    %v103 = vld [vmem:[%s0 + $0x4] sm:$0xf]
    %v104 = vld [vmem:[#allocation3] sm:$0xff]
    %v105 = vld [vmem:[#allocation3 + $0x8] sm:$0xff]
    %v106 = vld [vmem:[#allocation3 + $0x10] sm:$0xff]
    %v107 = vld [vmem:[#allocation3 + $0x18] sm:$0xff]
    %v108 = vld [vmem:[#allocation3 + $0x20] sm:$0xff]
    %v109 = vld [vmem:[#allocation3 + $0x28] sm:$0xff]
    %v110 = vld [vmem:[#allocation3 + $0x30] sm:$0xff]
    %v111 = vld [vmem:[#allocation3 + $0x38] sm:$0xff]
    %v112 = vld [vmem:[#allocation3 + $0x40] sm:$0xff]
    %v113 = vld [vmem:[#allocation3 + $0x48] sm:$0xff]
    %v114 = vld [vmem:[#allocation3 + $0x50] sm:$0xff]
    %v115 = vld [vmem:[#allocation3 + $0x58] sm:$0xff]
    %v116 = vld [vmem:[#allocation3 + $0x60] sm:$0xff]
    %v117 = vld [vmem:[#allocation3 + $0x68] sm:$0xff]
    %v118 = vld [vmem:[#allocation3 + $0x70] sm:$0xff]
    %v119 = vld [vmem:[#allocation3 + $0x78] sm:$0xff]
    %v120 = vld [vmem:[%s2] sm:$0xff]
    %v122 = vlaneseq
    %v123 = vshrl.u32 %v122, 7
    %v124 = vsub.s32 0, %v123
    %v125 = vrot.slane %v120, %v124
    %v126 = vlaneseq
    %v127 = vshrl.u32 %v126, 7
    %v128 = vsub.s32 1, %v127
    %v129 = vrot.slane %v120, %v128
    %v130 = vlaneseq
    %v131 = vshrl.u32 %v130, 7
    %v132 = vsub.s32 2, %v131
    %v133 = vrot.slane %v120, %v132
    %v134 = vlaneseq
    %v135 = vshrl.u32 %v134, 7
    %v136 = vsub.s32 3, %v135
    %v137 = vrot.slane %v120, %v136
    %v138 = vlaneseq
    %v139 = vshrl.u32 %v138, 7
    %v140 = vsub.s32 4, %v139
    %v141 = vrot.slane %v120, %v140
    %v142 = vlaneseq
    %v143 = vshrl.u32 %v142, 7
    %v144 = vsub.s32 5, %v143
    %v145 = vrot.slane %v120, %v144
    %v146 = vlaneseq
    %v147 = vshrl.u32 %v146, 7
    %v148 = vsub.s32 6, %v147
    %v149 = vrot.slane %v120, %v148
    %v150 = vlaneseq
    %v151 = vshrl.u32 %v150, 7
    %v152 = vsub.s32 7, %v151
    %v153 = vrot.slane %v120, %v152
    %v164 = vunpack.c.l.b16 %v102
    %v165 = vunpack.c.l.b16 %v103
    %v166 = vpack.c.b16 %v165, %v164
    %v183 = vunpack.c.l.b16 %v104
    %v184 = vunpack.c.h.b16 %v104
    %v185 = vunpack.c.l.b16 %v105
    %v186 = vunpack.c.h.b16 %v105
    %v187 = vunpack.c.l.b16 %v106
    %v188 = vunpack.c.h.b16 %v106
    %v189 = vunpack.c.l.b16 %v107
    %v190 = vunpack.c.h.b16 %v107
    %v191 = vunpack.c.l.b16 %v108
    %v192 = vunpack.c.h.b16 %v108
    %v193 = vunpack.c.l.b16 %v109
    %v194 = vunpack.c.h.b16 %v109
    %v195 = vunpack.c.l.b16 %v110
    %v196 = vunpack.c.h.b16 %v110
    %v197 = vunpack.c.l.b16 %v111
    %v198 = vunpack.c.h.b16 %v111
    %v199 = vunpack.c.l.b16 %v112
    %v200 = vunpack.c.h.b16 %v112
    %v201 = vunpack.c.l.b16 %v113
    %v202 = vunpack.c.h.b16 %v113
    %v203 = vunpack.c.l.b16 %v114
    %v204 = vunpack.c.h.b16 %v114
    %v205 = vunpack.c.l.b16 %v115
    %v206 = vunpack.c.h.b16 %v115
    %v207 = vunpack.c.l.b16 %v116
    %v208 = vunpack.c.h.b16 %v116
    %v209 = vunpack.c.l.b16 %v117
    %v210 = vunpack.c.h.b16 %v117
    %v211 = vunpack.c.l.b16 %v118
    %v212 = vunpack.c.h.b16 %v118
    %v213 = vunpack.c.l.b16 %v119
    %v214 = vunpack.c.h.b16 %v119
    %v215 = vpack.c.b16 %v191, %v183
    %v216 = vpack.c.b16 %v192, %v184
    %v217 = vpack.c.b16 %v193, %v185
    %v218 = vpack.c.b16 %v194, %v186
    %v219 = vpack.c.b16 %v195, %v187
    %v220 = vpack.c.b16 %v196, %v188
    %v221 = vpack.c.b16 %v197, %v189
    %v222 = vpack.c.b16 %v198, %v190
    %v223 = vpack.c.b16 %v207, %v199
    %v224 = vpack.c.b16 %v208, %v200
    %v225 = vpack.c.b16 %v209, %v201
    %v226 = vpack.c.b16 %v210, %v202
    %v227 = vpack.c.b16 %v211, %v203
    %v228 = vpack.c.b16 %v212, %v204
    %v229 = vpack.c.b16 %v213, %v205
    %v230 = vpack.c.b16 %v214, %v206
    %vm247 = vcmask 261120
    %v249 = vsel %vm247, %v166, 0
    %251 = vmatprep.subr.bf16.mxu0 0
    %252 = vmatpush1.bf16.msra.mxu0 0
    %253 = vmatprep.subr.bf16.mxu0 0
    %254 = vmatpush1.bf16.msra.mxu0 0
    %255 = vmatprep.subr.bf16.mxu0 0
    %256 = vmatpush1.bf16.msra.mxu0 0
    %257 = vmatprep.subr.bf16.mxu0 0
    %258 = vmatpush1.bf16.msra.mxu0 0
    %259 = vmatprep.subr.bf16.mxu0 0
    %260 = vmatpush1.bf16.msra.mxu0 0
    %261 = vmatprep.subr.bf16.mxu0 0
    %262 = vmatpush1.bf16.msra.mxu0 0
    %263 = vmatprep.subr.bf16.mxu0 %v224
    %264 = vmatpush1.bf16.msra.mxu0 %v223
    %265 = vmatprep.subr.bf16.mxu0 %v216
    %266 = vmatpush1.bf16.msra.mxu0 %v215
    %267 = vmatprep.subr.bf16.mxu0 0
    %268 = vmatpush2.bf16.msra.mxu0 0
    %269 = vmatprep.subr.bf16.mxu0 0
    %270 = vmatpush2.bf16.msra.mxu0 0
    %271 = vmatprep.subr.bf16.mxu0 0
    %272 = vmatpush2.bf16.msra.mxu0 0
    %273 = vmatprep.subr.bf16.mxu0 0
    %274 = vmatpush2.bf16.msra.mxu0 0
    %275 = vmatprep.subr.bf16.mxu0 0
    %276 = vmatpush2.bf16.msra.mxu0 0
    %277 = vmatprep.subr.bf16.mxu0 0
    %278 = vmatpush2.bf16.msra.mxu0 0
    %279 = vmatprep.subr.bf16.mxu0 0
    %280 = vmatpush2.bf16.msra.mxu0 0
    %281 = vmatprep.subr.bf16.mxu0 0
    %282 = vmatpush2.bf16.msra.mxu0 0
    %283 = vmatprep.mubr.bf16.mxu0 0
    %284 = vmatmul.mubr.bf16.gmra.mxu0 %v249
    %v285 = vpop.f32.mrf.mxu0
    %v286 = vadd.f32 %v125, %v285
    %v287 = vpop.f32.mrf.mxu0
    %v288 = vadd.f32 %v129, %v287
    %v289 = vpop.f32.mrf.mxu0
    %v290 = vadd.f32 %v125, %v289
    %v291 = vpop.f32.mrf.mxu0
    %v292 = vadd.f32 %v129, %v291
    %293 = vdwg.mxu0
    %294 = vmatprep.subr.bf16.mxu0 0
    %295 = vmatpush1.bf16.msra.mxu0 0
    %296 = vmatprep.subr.bf16.mxu0 0
    %297 = vmatpush1.bf16.msra.mxu0 0
    %298 = vmatprep.subr.bf16.mxu0 0
    %299 = vmatpush1.bf16.msra.mxu0 0
    %300 = vmatprep.subr.bf16.mxu0 0
    %301 = vmatpush1.bf16.msra.mxu0 0
    %302 = vmatprep.subr.bf16.mxu0 0
    %303 = vmatpush1.bf16.msra.mxu0 0
    %304 = vmatprep.subr.bf16.mxu0 0
    %305 = vmatpush1.bf16.msra.mxu0 0
    %306 = vmatprep.subr.bf16.mxu0 %v226
    %307 = vmatpush1.bf16.msra.mxu0 %v225
    %308 = vmatprep.subr.bf16.mxu0 %v218
    %309 = vmatpush1.bf16.msra.mxu0 %v217
    %310 = vmatprep.subr.bf16.mxu0 0
    %311 = vmatpush2.bf16.msra.mxu0 0
    %312 = vmatprep.subr.bf16.mxu0 0
    %313 = vmatpush2.bf16.msra.mxu0 0
    %314 = vmatprep.subr.bf16.mxu0 0
    %315 = vmatpush2.bf16.msra.mxu0 0
    %316 = vmatprep.subr.bf16.mxu0 0
    %317 = vmatpush2.bf16.msra.mxu0 0
    %318 = vmatprep.subr.bf16.mxu0 0
    %319 = vmatpush2.bf16.msra.mxu0 0
    %320 = vmatprep.subr.bf16.mxu0 0
    %321 = vmatpush2.bf16.msra.mxu0 0
    %322 = vmatprep.subr.bf16.mxu0 0
    %323 = vmatpush2.bf16.msra.mxu0 0
    %324 = vmatprep.subr.bf16.mxu0 0
    %325 = vmatpush2.bf16.msra.mxu0 0
    %326 = vmatprep.mubr.bf16.mxu0 0
    %327 = vmatmul.mubr.bf16.gmra.mxu0 %v249
    %v328 = vpop.f32.mrf.mxu0
    %v329 = vadd.f32 %v133, %v328
    %v330 = vpop.f32.mrf.mxu0
    %v331 = vadd.f32 %v137, %v330
    %v332 = vpop.f32.mrf.mxu0
    %v333 = vadd.f32 %v133, %v332
    %v334 = vpop.f32.mrf.mxu0
    %v335 = vadd.f32 %v137, %v334
    %336 = vdwg.mxu0
    %337 = vmatprep.subr.bf16.mxu0 0
    %338 = vmatpush1.bf16.msra.mxu0 0
    %339 = vmatprep.subr.bf16.mxu0 0
    %340 = vmatpush1.bf16.msra.mxu0 0
    %341 = vmatprep.subr.bf16.mxu0 0
    %342 = vmatpush1.bf16.msra.mxu0 0
    %343 = vmatprep.subr.bf16.mxu0 0
    %344 = vmatpush1.bf16.msra.mxu0 0
    %345 = vmatprep.subr.bf16.mxu0 0
    %346 = vmatpush1.bf16.msra.mxu0 0
    %347 = vmatprep.subr.bf16.mxu0 0
    %348 = vmatpush1.bf16.msra.mxu0 0
    %349 = vmatprep.subr.bf16.mxu0 %v228
    %350 = vmatpush1.bf16.msra.mxu0 %v227
    %351 = vmatprep.subr.bf16.mxu0 %v220
    %352 = vmatpush1.bf16.msra.mxu0 %v219
    %353 = vmatprep.subr.bf16.mxu0 0
    %354 = vmatpush2.bf16.msra.mxu0 0
    %355 = vmatprep.subr.bf16.mxu0 0
    %356 = vmatpush2.bf16.msra.mxu0 0
    %357 = vmatprep.subr.bf16.mxu0 0
    %358 = vmatpush2.bf16.msra.mxu0 0
    %359 = vmatprep.subr.bf16.mxu0 0
    %360 = vmatpush2.bf16.msra.mxu0 0
    %361 = vmatprep.subr.bf16.mxu0 0
    %362 = vmatpush2.bf16.msra.mxu0 0
    %363 = vmatprep.subr.bf16.mxu0 0
    %364 = vmatpush2.bf16.msra.mxu0 0
    %365 = vmatprep.subr.bf16.mxu0 0
    %366 = vmatpush2.bf16.msra.mxu0 0
    %367 = vmatprep.subr.bf16.mxu0 0
    %368 = vmatpush2.bf16.msra.mxu0 0
    %369 = vmatprep.mubr.bf16.mxu0 0
    %370 = vmatmul.mubr.bf16.gmra.mxu0 %v249
    %v371 = vpop.f32.mrf.mxu0
    %v372 = vadd.f32 %v141, %v371
    %v373 = vpop.f32.mrf.mxu0
    %v374 = vadd.f32 %v145, %v373
    %v375 = vpop.f32.mrf.mxu0
    %v376 = vadd.f32 %v141, %v375
    %v377 = vpop.f32.mrf.mxu0
    %v378 = vadd.f32 %v145, %v377
    %379 = vdwg.mxu0
    %380 = vmatprep.subr.bf16.mxu0 0
    %381 = vmatpush1.bf16.msra.mxu0 0
    %382 = vmatprep.subr.bf16.mxu0 0
    %383 = vmatpush1.bf16.msra.mxu0 0
    %384 = vmatprep.subr.bf16.mxu0 0
    %385 = vmatpush1.bf16.msra.mxu0 0
    %386 = vmatprep.subr.bf16.mxu0 0
    %387 = vmatpush1.bf16.msra.mxu0 0
    %388 = vmatprep.subr.bf16.mxu0 0
    %389 = vmatpush1.bf16.msra.mxu0 0
    %390 = vmatprep.subr.bf16.mxu0 0
    %391 = vmatpush1.bf16.msra.mxu0 0
    %392 = vmatprep.subr.bf16.mxu0 %v230
    %393 = vmatpush1.bf16.msra.mxu0 %v229
    %394 = vmatprep.subr.bf16.mxu0 %v222
    %395 = vmatpush1.bf16.msra.mxu0 %v221
    %396 = vmatprep.subr.bf16.mxu0 0
    %397 = vmatpush2.bf16.msra.mxu0 0
    %398 = vmatprep.subr.bf16.mxu0 0
    %399 = vmatpush2.bf16.msra.mxu0 0
    %400 = vmatprep.subr.bf16.mxu0 0
    %401 = vmatpush2.bf16.msra.mxu0 0
    %402 = vmatprep.subr.bf16.mxu0 0
    %403 = vmatpush2.bf16.msra.mxu0 0
    %404 = vmatprep.subr.bf16.mxu0 0
    %405 = vmatpush2.bf16.msra.mxu0 0
    %406 = vmatprep.subr.bf16.mxu0 0
    %407 = vmatpush2.bf16.msra.mxu0 0
    %408 = vmatprep.subr.bf16.mxu0 0
    %409 = vmatpush2.bf16.msra.mxu0 0
    %410 = vmatprep.subr.bf16.mxu0 0
    %411 = vmatpush2.bf16.msra.mxu0 0
    %412 = vmatprep.mubr.bf16.mxu0 0
    %413 = vmatmul.mubr.bf16.gmra.mxu0 %v249
    %v414 = vpop.f32.mrf.mxu0
    %v415 = vadd.f32 %v149, %v414
    %v416 = vpop.f32.mrf.mxu0
    %v417 = vadd.f32 %v153, %v416
    %v418 = vpop.f32.mrf.mxu0
    %v419 = vadd.f32 %v149, %v418
    %v420 = vpop.f32.mrf.mxu0
    %v421 = vadd.f32 %v153, %v420
    %422 = vdwg.mxu0
    %v423 = vmax.f32 %v286, 0.0
    %v424 = vmax.f32 %v288, 0.0
    %v425 = vmax.f32 %v329, 0.0
    %v426 = vmax.f32 %v331, 0.0
    %v427 = vmax.f32 %v372, 0.0
    %v428 = vmax.f32 %v374, 0.0
    %v429 = vmax.f32 %v415, 0.0
    %v430 = vmax.f32 %v417, 0.0
    %v431 = vmax.f32 %v290, 0.0
    %v432 = vmax.f32 %v292, 0.0
    %v433 = vmax.f32 %v333, 0.0
    %v434 = vmax.f32 %v335, 0.0
    %v435 = vmax.f32 %v376, 0.0
    %v436 = vmax.f32 %v378, 0.0
    %v437 = vmax.f32 %v419, 0.0
    %v438 = vmax.f32 %v421, 0.0
    %v439 = vpack.c.bf16 %v431, %v423
    %v440 = vpack.c.bf16 %v432, %v424
    %v441 = vpack.c.bf16 %v433, %v425
    %v442 = vpack.c.bf16 %v434, %v426
    %v443 = vpack.c.bf16 %v435, %v427
    %v444 = vpack.c.bf16 %v436, %v428
    %v445 = vpack.c.bf16 %v437, %v429
    %v446 = vpack.c.bf16 %v438, %v430
    %v447 = vld [vmem:[#allocation5] sm:$0xff]
    %v448 = vld [vmem:[#allocation5 + $0x8] sm:$0xff]
    %v449 = vld [vmem:[#allocation5 + $0x10] sm:$0xff]
    %v450 = vld [vmem:[#allocation5 + $0x18] sm:$0xff]
    %v451 = vld [vmem:[#allocation5 + $0x20] sm:$0xff]
    %v452 = vld [vmem:[#allocation5 + $0x28] sm:$0xff]
    %v453 = vld [vmem:[#allocation5 + $0x30] sm:$0xff]
    %v454 = vld [vmem:[#allocation5 + $0x38] sm:$0xff]
    %v455 = vld [vmem:[#allocation5 + $0x40] sm:$0xff]
    %v456 = vld [vmem:[#allocation5 + $0x48] sm:$0xff]
    %v457 = vld [vmem:[#allocation5 + $0x50] sm:$0xff]
    %v458 = vld [vmem:[#allocation5 + $0x58] sm:$0xff]
    %v459 = vld [vmem:[#allocation5 + $0x60] sm:$0xff]
    %v460 = vld [vmem:[#allocation5 + $0x68] sm:$0xff]
    %v461 = vld [vmem:[#allocation5 + $0x70] sm:$0xff]
    %v462 = vld [vmem:[#allocation5 + $0x78] sm:$0xff]
    %v463 = vld [vmem:[#allocation5 + $0x80] sm:$0xff]
    %v464 = vld [vmem:[#allocation5 + $0x88] sm:$0xff]
    %v465 = vld [vmem:[#allocation5 + $0x90] sm:$0xff]
    %v466 = vld [vmem:[#allocation5 + $0x98] sm:$0xff]
    %v467 = vld [vmem:[#allocation5 + $0xa0] sm:$0xff]
    %v468 = vld [vmem:[#allocation5 + $0xa8] sm:$0xff]
    %v469 = vld [vmem:[#allocation5 + $0xb0] sm:$0xff]
    %v470 = vld [vmem:[#allocation5 + $0xb8] sm:$0xff]
    %v471 = vld [vmem:[#allocation5 + $0xc0] sm:$0xff]
    %v472 = vld [vmem:[#allocation5 + $0xc8] sm:$0xff]
    %v473 = vld [vmem:[#allocation5 + $0xd0] sm:$0xff]
    %v474 = vld [vmem:[#allocation5 + $0xd8] sm:$0xff]
    %v475 = vld [vmem:[#allocation5 + $0xe0] sm:$0xff]
    %v476 = vld [vmem:[#allocation5 + $0xe8] sm:$0xff]
    %v477 = vld [vmem:[#allocation5 + $0xf0] sm:$0xff]
    %v478 = vld [vmem:[#allocation5 + $0xf8] sm:$0xff]
    %v479 = vld [vmem:[#allocation5 + $0x100] sm:$0xff]
    %v480 = vld [vmem:[#allocation5 + $0x108] sm:$0xff]
    %v481 = vld [vmem:[#allocation5 + $0x110] sm:$0xff]
    %v482 = vld [vmem:[#allocation5 + $0x118] sm:$0xff]
    %v483 = vld [vmem:[#allocation5 + $0x120] sm:$0xff]
    %v484 = vld [vmem:[#allocation5 + $0x128] sm:$0xff]
    %v485 = vld [vmem:[#allocation5 + $0x130] sm:$0xff]
    %v486 = vld [vmem:[#allocation5 + $0x138] sm:$0xff]
    %v487 = vld [vmem:[#allocation5 + $0x140] sm:$0xff]
    %v488 = vld [vmem:[#allocation5 + $0x148] sm:$0xff]
    %v489 = vld [vmem:[#allocation5 + $0x150] sm:$0xff]
    %v490 = vld [vmem:[#allocation5 + $0x158] sm:$0xff]
    %v491 = vld [vmem:[#allocation5 + $0x160] sm:$0xff]
    %v492 = vld [vmem:[#allocation5 + $0x168] sm:$0xff]
    %v493 = vld [vmem:[#allocation5 + $0x170] sm:$0xff]
    %v494 = vld [vmem:[#allocation5 + $0x178] sm:$0xff]
    %v495 = vld [vmem:[#allocation5 + $0x180] sm:$0xff]
    %v496 = vld [vmem:[#allocation5 + $0x188] sm:$0xff]
    %v497 = vld [vmem:[#allocation5 + $0x190] sm:$0xff]
    %v498 = vld [vmem:[#allocation5 + $0x198] sm:$0xff]
    %v499 = vld [vmem:[#allocation5 + $0x1a0] sm:$0xff]
    %v500 = vld [vmem:[#allocation5 + $0x1a8] sm:$0xff]
    %v501 = vld [vmem:[#allocation5 + $0x1b0] sm:$0xff]
    %v502 = vld [vmem:[#allocation5 + $0x1b8] sm:$0xff]
    %v503 = vld [vmem:[#allocation5 + $0x1c0] sm:$0xff]
    %v504 = vld [vmem:[#allocation5 + $0x1c8] sm:$0xff]
    %v505 = vld [vmem:[#allocation5 + $0x1d0] sm:$0xff]
    %v506 = vld [vmem:[#allocation5 + $0x1d8] sm:$0xff]
    %v507 = vld [vmem:[#allocation5 + $0x1e0] sm:$0xff]
    %v508 = vld [vmem:[#allocation5 + $0x1e8] sm:$0xff]
    %v509 = vld [vmem:[#allocation5 + $0x1f0] sm:$0xff]
    %v510 = vld [vmem:[#allocation5 + $0x1f8] sm:$0xff]
    %v511 = vld [vmem:[#allocation5 + $0x200] sm:$0xff]
    %v512 = vld [vmem:[#allocation5 + $0x208] sm:$0xff]
    %v513 = vld [vmem:[#allocation5 + $0x210] sm:$0xff]
    %v514 = vld [vmem:[#allocation5 + $0x218] sm:$0xff]
    %v515 = vld [vmem:[#allocation5 + $0x220] sm:$0xff]
    %v516 = vld [vmem:[#allocation5 + $0x228] sm:$0xff]
    %v517 = vld [vmem:[#allocation5 + $0x230] sm:$0xff]
    %v518 = vld [vmem:[#allocation5 + $0x238] sm:$0xff]
    %v519 = vld [vmem:[#allocation5 + $0x240] sm:$0xff]
    %v520 = vld [vmem:[#allocation5 + $0x248] sm:$0xff]
    %v521 = vld [vmem:[#allocation5 + $0x250] sm:$0xff]
    %v522 = vld [vmem:[#allocation5 + $0x258] sm:$0xff]
    %v523 = vld [vmem:[#allocation5 + $0x260] sm:$0xff]
    %v524 = vld [vmem:[#allocation5 + $0x268] sm:$0xff]
    %v525 = vld [vmem:[#allocation5 + $0x270] sm:$0xff]
    %v526 = vld [vmem:[#allocation5 + $0x278] sm:$0xff]
    %v527 = vld [vmem:[#allocation5 + $0x280] sm:$0xff]
    %v528 = vld [vmem:[#allocation5 + $0x288] sm:$0xff]
    %v529 = vld [vmem:[#allocation5 + $0x290] sm:$0xff]
    %v530 = vld [vmem:[#allocation5 + $0x298] sm:$0xff]
    %v531 = vld [vmem:[#allocation5 + $0x2a0] sm:$0xff]
    %v532 = vld [vmem:[#allocation5 + $0x2a8] sm:$0xff]
    %v533 = vld [vmem:[#allocation5 + $0x2b0] sm:$0xff]
    %v534 = vld [vmem:[#allocation5 + $0x2b8] sm:$0xff]
    %v535 = vld [vmem:[#allocation5 + $0x2c0] sm:$0xff]
    %v536 = vld [vmem:[#allocation5 + $0x2c8] sm:$0xff]
    %v537 = vld [vmem:[#allocation5 + $0x2d0] sm:$0xff]
    %v538 = vld [vmem:[#allocation5 + $0x2d8] sm:$0xff]
    %v539 = vld [vmem:[#allocation5 + $0x2e0] sm:$0xff]
    %v540 = vld [vmem:[#allocation5 + $0x2e8] sm:$0xff]
    %v541 = vld [vmem:[#allocation5 + $0x2f0] sm:$0xff]
    %v542 = vld [vmem:[#allocation5 + $0x2f8] sm:$0xff]
    %v543 = vld [vmem:[#allocation5 + $0x300] sm:$0xff]
    %v544 = vld [vmem:[#allocation5 + $0x308] sm:$0xff]
    %v545 = vld [vmem:[#allocation5 + $0x310] sm:$0xff]
    %v546 = vld [vmem:[#allocation5 + $0x318] sm:$0xff]
    %v547 = vld [vmem:[#allocation5 + $0x320] sm:$0xff]
    %v548 = vld [vmem:[#allocation5 + $0x328] sm:$0xff]
    %v549 = vld [vmem:[#allocation5 + $0x330] sm:$0xff]
    %v550 = vld [vmem:[#allocation5 + $0x338] sm:$0xff]
    %v551 = vld [vmem:[#allocation5 + $0x340] sm:$0xff]
    %v552 = vld [vmem:[#allocation5 + $0x348] sm:$0xff]
    %v553 = vld [vmem:[#allocation5 + $0x350] sm:$0xff]
    %v554 = vld [vmem:[#allocation5 + $0x358] sm:$0xff]
    %v555 = vld [vmem:[#allocation5 + $0x360] sm:$0xff]
    %v556 = vld [vmem:[#allocation5 + $0x368] sm:$0xff]
    %v557 = vld [vmem:[#allocation5 + $0x370] sm:$0xff]
    %v558 = vld [vmem:[#allocation5 + $0x378] sm:$0xff]
    %v559 = vld [vmem:[#allocation5 + $0x380] sm:$0xff]
    %v560 = vld [vmem:[#allocation5 + $0x388] sm:$0xff]
    %v561 = vld [vmem:[#allocation5 + $0x390] sm:$0xff]
    %v562 = vld [vmem:[#allocation5 + $0x398] sm:$0xff]
    %v563 = vld [vmem:[#allocation5 + $0x3a0] sm:$0xff]
    %v564 = vld [vmem:[#allocation5 + $0x3a8] sm:$0xff]
    %v565 = vld [vmem:[#allocation5 + $0x3b0] sm:$0xff]
    %v566 = vld [vmem:[#allocation5 + $0x3b8] sm:$0xff]
    %v567 = vld [vmem:[#allocation5 + $0x3c0] sm:$0xff]
    %v568 = vld [vmem:[#allocation5 + $0x3c8] sm:$0xff]
    %v569 = vld [vmem:[#allocation5 + $0x3d0] sm:$0xff]
    %v570 = vld [vmem:[#allocation5 + $0x3d8] sm:$0xff]
    %v571 = vld [vmem:[#allocation5 + $0x3e0] sm:$0xff]
    %v572 = vld [vmem:[#allocation5 + $0x3e8] sm:$0xff]
    %v573 = vld [vmem:[#allocation5 + $0x3f0] sm:$0xff]
    %v574 = vld [vmem:[#allocation5 + $0x3f8] sm:$0xff]
    %v575 = vld [vmem:[#allocation5 + $0x400] sm:$0xff]
    %v576 = vld [vmem:[#allocation5 + $0x408] sm:$0xff]
    %v577 = vld [vmem:[#allocation5 + $0x410] sm:$0xff]
    %v578 = vld [vmem:[#allocation5 + $0x418] sm:$0xff]
    %v579 = vld [vmem:[#allocation5 + $0x420] sm:$0xff]
    %v580 = vld [vmem:[#allocation5 + $0x428] sm:$0xff]
    %v581 = vld [vmem:[#allocation5 + $0x430] sm:$0xff]
    %v582 = vld [vmem:[#allocation5 + $0x438] sm:$0xff]
    %v583 = vld [vmem:[#allocation5 + $0x440] sm:$0xff]
    %v584 = vld [vmem:[#allocation5 + $0x448] sm:$0xff]
    %v585 = vld [vmem:[#allocation5 + $0x450] sm:$0xff]
    %v586 = vld [vmem:[#allocation5 + $0x458] sm:$0xff]
    %v587 = vld [vmem:[#allocation5 + $0x460] sm:$0xff]
    %v588 = vld [vmem:[#allocation5 + $0x468] sm:$0xff]
    %v589 = vld [vmem:[#allocation5 + $0x470] sm:$0xff]
    %v590 = vld [vmem:[#allocation5 + $0x478] sm:$0xff]
    %v591 = vld [vmem:[#allocation5 + $0x480] sm:$0xff]
    %v592 = vld [vmem:[#allocation5 + $0x488] sm:$0xff]
    %v593 = vld [vmem:[#allocation5 + $0x490] sm:$0xff]
    %v594 = vld [vmem:[#allocation5 + $0x498] sm:$0xff]
    %v595 = vld [vmem:[#allocation5 + $0x4a0] sm:$0xff]
    %v596 = vld [vmem:[#allocation5 + $0x4a8] sm:$0xff]
    %v597 = vld [vmem:[#allocation5 + $0x4b0] sm:$0xff]
    %v598 = vld [vmem:[#allocation5 + $0x4b8] sm:$0xff]
    %v599 = vld [vmem:[#allocation5 + $0x4c0] sm:$0xff]
    %v600 = vld [vmem:[#allocation5 + $0x4c8] sm:$0xff]
    %v601 = vld [vmem:[#allocation5 + $0x4d0] sm:$0xff]
    %v602 = vld [vmem:[#allocation5 + $0x4d8] sm:$0xff]
    %v603 = vld [vmem:[#allocation5 + $0x4e0] sm:$0xff]
    %v604 = vld [vmem:[#allocation5 + $0x4e8] sm:$0xff]
    %v605 = vld [vmem:[#allocation5 + $0x4f0] sm:$0xff]
    %v606 = vld [vmem:[#allocation5 + $0x4f8] sm:$0xff]
    %v607 = vld [vmem:[#allocation5 + $0x500] sm:$0xff]
    %v608 = vld [vmem:[#allocation5 + $0x508] sm:$0xff]
    %v609 = vld [vmem:[#allocation5 + $0x510] sm:$0xff]
    %v610 = vld [vmem:[#allocation5 + $0x518] sm:$0xff]
    %v611 = vld [vmem:[#allocation5 + $0x520] sm:$0xff]
    %v612 = vld [vmem:[#allocation5 + $0x528] sm:$0xff]
    %v613 = vld [vmem:[#allocation5 + $0x530] sm:$0xff]
    %v614 = vld [vmem:[#allocation5 + $0x538] sm:$0xff]
    %v615 = vld [vmem:[#allocation5 + $0x540] sm:$0xff]
    %v616 = vld [vmem:[#allocation5 + $0x548] sm:$0xff]
    %v617 = vld [vmem:[#allocation5 + $0x550] sm:$0xff]
    %v618 = vld [vmem:[#allocation5 + $0x558] sm:$0xff]
    %v619 = vld [vmem:[#allocation5 + $0x560] sm:$0xff]
    %v620 = vld [vmem:[#allocation5 + $0x568] sm:$0xff]
    %v621 = vld [vmem:[#allocation5 + $0x570] sm:$0xff]
    %v622 = vld [vmem:[#allocation5 + $0x578] sm:$0xff]
    %v623 = vld [vmem:[#allocation5 + $0x580] sm:$0xff]
    %v624 = vld [vmem:[#allocation5 + $0x588] sm:$0xff]
    %v625 = vld [vmem:[#allocation5 + $0x590] sm:$0xff]
    %v626 = vld [vmem:[#allocation5 + $0x598] sm:$0xff]
    %v627 = vld [vmem:[#allocation5 + $0x5a0] sm:$0xff]
    %v628 = vld [vmem:[#allocation5 + $0x5a8] sm:$0xff]
    %v629 = vld [vmem:[#allocation5 + $0x5b0] sm:$0xff]
    %v630 = vld [vmem:[#allocation5 + $0x5b8] sm:$0xff]
    %v631 = vld [vmem:[#allocation5 + $0x5c0] sm:$0xff]
    %v632 = vld [vmem:[#allocation5 + $0x5c8] sm:$0xff]
    %v633 = vld [vmem:[#allocation5 + $0x5d0] sm:$0xff]
    %v634 = vld [vmem:[#allocation5 + $0x5d8] sm:$0xff]
    %v635 = vld [vmem:[#allocation5 + $0x5e0] sm:$0xff]
    %v636 = vld [vmem:[#allocation5 + $0x5e8] sm:$0xff]
    %v637 = vld [vmem:[#allocation5 + $0x5f0] sm:$0xff]
    %v638 = vld [vmem:[#allocation5 + $0x5f8] sm:$0xff]
    %v639 = vld [vmem:[#allocation5 + $0x600] sm:$0xff]
    %v640 = vld [vmem:[#allocation5 + $0x608] sm:$0xff]
    %v641 = vld [vmem:[#allocation5 + $0x610] sm:$0xff]
    %v642 = vld [vmem:[#allocation5 + $0x618] sm:$0xff]
    %v643 = vld [vmem:[#allocation5 + $0x620] sm:$0xff]
    %v644 = vld [vmem:[#allocation5 + $0x628] sm:$0xff]
    %v645 = vld [vmem:[#allocation5 + $0x630] sm:$0xff]
    %v646 = vld [vmem:[#allocation5 + $0x638] sm:$0xff]
    %v647 = vld [vmem:[#allocation5 + $0x640] sm:$0xff]
    %v648 = vld [vmem:[#allocation5 + $0x648] sm:$0xff]
    %v649 = vld [vmem:[#allocation5 + $0x650] sm:$0xff]
    %v650 = vld [vmem:[#allocation5 + $0x658] sm:$0xff]
    %v651 = vld [vmem:[#allocation5 + $0x660] sm:$0xff]
    %v652 = vld [vmem:[#allocation5 + $0x668] sm:$0xff]
    %v653 = vld [vmem:[#allocation5 + $0x670] sm:$0xff]
    %v654 = vld [vmem:[#allocation5 + $0x678] sm:$0xff]
    %v655 = vld [vmem:[#allocation5 + $0x680] sm:$0xff]
    %v656 = vld [vmem:[#allocation5 + $0x688] sm:$0xff]
    %v657 = vld [vmem:[#allocation5 + $0x690] sm:$0xff]
    %v658 = vld [vmem:[#allocation5 + $0x698] sm:$0xff]
    %v659 = vld [vmem:[#allocation5 + $0x6a0] sm:$0xff]
    %v660 = vld [vmem:[#allocation5 + $0x6a8] sm:$0xff]
    %v661 = vld [vmem:[#allocation5 + $0x6b0] sm:$0xff]
    %v662 = vld [vmem:[#allocation5 + $0x6b8] sm:$0xff]
    %v663 = vld [vmem:[#allocation5 + $0x6c0] sm:$0xff]
    %v664 = vld [vmem:[#allocation5 + $0x6c8] sm:$0xff]
    %v665 = vld [vmem:[#allocation5 + $0x6d0] sm:$0xff]
    %v666 = vld [vmem:[#allocation5 + $0x6d8] sm:$0xff]
    %v667 = vld [vmem:[#allocation5 + $0x6e0] sm:$0xff]
    %v668 = vld [vmem:[#allocation5 + $0x6e8] sm:$0xff]
    %v669 = vld [vmem:[#allocation5 + $0x6f0] sm:$0xff]
    %v670 = vld [vmem:[#allocation5 + $0x6f8] sm:$0xff]
    %v671 = vld [vmem:[#allocation5 + $0x700] sm:$0xff]
    %v672 = vld [vmem:[#allocation5 + $0x708] sm:$0xff]
    %v673 = vld [vmem:[#allocation5 + $0x710] sm:$0xff]
    %v674 = vld [vmem:[#allocation5 + $0x718] sm:$0xff]
    %v675 = vld [vmem:[#allocation5 + $0x720] sm:$0xff]
    %v676 = vld [vmem:[#allocation5 + $0x728] sm:$0xff]
    %v677 = vld [vmem:[#allocation5 + $0x730] sm:$0xff]
    %v678 = vld [vmem:[#allocation5 + $0x738] sm:$0xff]
    %v679 = vld [vmem:[#allocation5 + $0x740] sm:$0xff]
    %v680 = vld [vmem:[#allocation5 + $0x748] sm:$0xff]
    %v681 = vld [vmem:[#allocation5 + $0x750] sm:$0xff]
    %v682 = vld [vmem:[#allocation5 + $0x758] sm:$0xff]
    %v683 = vld [vmem:[#allocation5 + $0x760] sm:$0xff]
    %v684 = vld [vmem:[#allocation5 + $0x768] sm:$0xff]
    %v685 = vld [vmem:[#allocation5 + $0x770] sm:$0xff]
    %v686 = vld [vmem:[#allocation5 + $0x778] sm:$0xff]
    %v687 = vld [vmem:[#allocation5 + $0x780] sm:$0xff]
    %v688 = vld [vmem:[#allocation5 + $0x788] sm:$0xff]
    %v689 = vld [vmem:[#allocation5 + $0x790] sm:$0xff]
    %v690 = vld [vmem:[#allocation5 + $0x798] sm:$0xff]
    %v691 = vld [vmem:[#allocation5 + $0x7a0] sm:$0xff]
    %v692 = vld [vmem:[#allocation5 + $0x7a8] sm:$0xff]
    %v693 = vld [vmem:[#allocation5 + $0x7b0] sm:$0xff]
    %v694 = vld [vmem:[#allocation5 + $0x7b8] sm:$0xff]
    %v695 = vld [vmem:[#allocation5 + $0x7c0] sm:$0xff]
    %v696 = vld [vmem:[#allocation5 + $0x7c8] sm:$0xff]
    %v697 = vld [vmem:[#allocation5 + $0x7d0] sm:$0xff]
    %v698 = vld [vmem:[#allocation5 + $0x7d8] sm:$0xff]
    %v699 = vld [vmem:[#allocation5 + $0x7e0] sm:$0xff]
    %v700 = vld [vmem:[#allocation5 + $0x7e8] sm:$0xff]
    %v701 = vld [vmem:[#allocation5 + $0x7f0] sm:$0xff]
    %v702 = vld [vmem:[#allocation5 + $0x7f8] sm:$0xff]
    %v703 = vld [vmem:[%s4] sm:$0xf]
    %v705 = vlaneseq
    %v706 = vshrl.u32 %v705, 7
    %v707 = vsub.s32 0, %v706
    %v708 = vrot.slane %v703, %v707
    %v709 = vlaneseq
    %v710 = vshrl.u32 %v709, 7
    %v711 = vsub.s32 1, %v710
    %v712 = vrot.slane %v703, %v711
    %v713 = vlaneseq
    %v714 = vshrl.u32 %v713, 7
    %v715 = vsub.s32 2, %v714
    %v716 = vrot.slane %v703, %v715
    %v717 = vlaneseq
    %v718 = vshrl.u32 %v717, 7
    %v719 = vsub.s32 3, %v718
    %v720 = vrot.slane %v703, %v719
    %v981 = vunpack.c.l.b16 %v447
    %v982 = vunpack.c.h.b16 %v447
    %v983 = vunpack.c.l.b16 %v448
    %v984 = vunpack.c.h.b16 %v448
    %v985 = vunpack.c.l.b16 %v449
    %v986 = vunpack.c.h.b16 %v449
    %v987 = vunpack.c.l.b16 %v450
    %v988 = vunpack.c.h.b16 %v450
    %v989 = vunpack.c.l.b16 %v451
    %v990 = vunpack.c.h.b16 %v451
    %v991 = vunpack.c.l.b16 %v452
    %v992 = vunpack.c.h.b16 %v452
    %v993 = vunpack.c.l.b16 %v453
    %v994 = vunpack.c.h.b16 %v453
    %v995 = vunpack.c.l.b16 %v454
    %v996 = vunpack.c.h.b16 %v454
    %v997 = vunpack.c.l.b16 %v455
    %v998 = vunpack.c.h.b16 %v455
    %v999 = vunpack.c.l.b16 %v456
    %v1000 = vunpack.c.h.b16 %v456
    %v1001 = vunpack.c.l.b16 %v457
    %v1002 = vunpack.c.h.b16 %v457
    %v1003 = vunpack.c.l.b16 %v458
    %v1004 = vunpack.c.h.b16 %v458
    %v1005 = vunpack.c.l.b16 %v459
    %v1006 = vunpack.c.h.b16 %v459
    %v1007 = vunpack.c.l.b16 %v460
    %v1008 = vunpack.c.h.b16 %v460
    %v1009 = vunpack.c.l.b16 %v461
    %v1010 = vunpack.c.h.b16 %v461
    %v1011 = vunpack.c.l.b16 %v462
    %v1012 = vunpack.c.h.b16 %v462
    %v1013 = vunpack.c.l.b16 %v463
    %v1014 = vunpack.c.h.b16 %v463
    %v1015 = vunpack.c.l.b16 %v464
    %v1016 = vunpack.c.h.b16 %v464
    %v1017 = vunpack.c.l.b16 %v465
    %v1018 = vunpack.c.h.b16 %v465
    %v1019 = vunpack.c.l.b16 %v466
    %v1020 = vunpack.c.h.b16 %v466
    %v1021 = vunpack.c.l.b16 %v467
    %v1022 = vunpack.c.h.b16 %v467
    %v1023 = vunpack.c.l.b16 %v468
    %v1024 = vunpack.c.h.b16 %v468
    %v1025 = vunpack.c.l.b16 %v469
    %v1026 = vunpack.c.h.b16 %v469
    %v1027 = vunpack.c.l.b16 %v470
    %v1028 = vunpack.c.h.b16 %v470
    %v1029 = vunpack.c.l.b16 %v471
    %v1030 = vunpack.c.h.b16 %v471
    %v1031 = vunpack.c.l.b16 %v472
    %v1032 = vunpack.c.h.b16 %v472
    %v1033 = vunpack.c.l.b16 %v473
    %v1034 = vunpack.c.h.b16 %v473
    %v1035 = vunpack.c.l.b16 %v474
    %v1036 = vunpack.c.h.b16 %v474
    %v1037 = vunpack.c.l.b16 %v475
    %v1038 = vunpack.c.h.b16 %v475
    %v1039 = vunpack.c.l.b16 %v476
    %v1040 = vunpack.c.h.b16 %v476
    %v1041 = vunpack.c.l.b16 %v477
    %v1042 = vunpack.c.h.b16 %v477
    %v1043 = vunpack.c.l.b16 %v478
    %v1044 = vunpack.c.h.b16 %v478
    %v1045 = vunpack.c.l.b16 %v479
    %v1046 = vunpack.c.h.b16 %v479
    %v1047 = vunpack.c.l.b16 %v480
    %v1048 = vunpack.c.h.b16 %v480
    %v1049 = vunpack.c.l.b16 %v481
    %v1050 = vunpack.c.h.b16 %v481
    %v1051 = vunpack.c.l.b16 %v482
    %v1052 = vunpack.c.h.b16 %v482
    %v1053 = vunpack.c.l.b16 %v483
    %v1054 = vunpack.c.h.b16 %v483
    %v1055 = vunpack.c.l.b16 %v484
    %v1056 = vunpack.c.h.b16 %v484
    %v1057 = vunpack.c.l.b16 %v485
    %v1058 = vunpack.c.h.b16 %v485
    %v1059 = vunpack.c.l.b16 %v486
    %v1060 = vunpack.c.h.b16 %v486
    %v1061 = vunpack.c.l.b16 %v487
    %v1062 = vunpack.c.h.b16 %v487
    %v1063 = vunpack.c.l.b16 %v488
    %v1064 = vunpack.c.h.b16 %v488
    %v1065 = vunpack.c.l.b16 %v489
    %v1066 = vunpack.c.h.b16 %v489
    %v1067 = vunpack.c.l.b16 %v490
    %v1068 = vunpack.c.h.b16 %v490
    %v1069 = vunpack.c.l.b16 %v491
    %v1070 = vunpack.c.h.b16 %v491
    %v1071 = vunpack.c.l.b16 %v492
    %v1072 = vunpack.c.h.b16 %v492
    %v1073 = vunpack.c.l.b16 %v493
    %v1074 = vunpack.c.h.b16 %v493
    %v1075 = vunpack.c.l.b16 %v494
    %v1076 = vunpack.c.h.b16 %v494
    %v1077 = vunpack.c.l.b16 %v495
    %v1078 = vunpack.c.h.b16 %v495
    %v1079 = vunpack.c.l.b16 %v496
    %v1080 = vunpack.c.h.b16 %v496
    %v1081 = vunpack.c.l.b16 %v497
    %v1082 = vunpack.c.h.b16 %v497
    %v1083 = vunpack.c.l.b16 %v498
    %v1084 = vunpack.c.h.b16 %v498
    %v1085 = vunpack.c.l.b16 %v499
    %v1086 = vunpack.c.h.b16 %v499
    %v1087 = vunpack.c.l.b16 %v500
    %v1088 = vunpack.c.h.b16 %v500
    %v1089 = vunpack.c.l.b16 %v501
    %v1090 = vunpack.c.h.b16 %v501
    %v1091 = vunpack.c.l.b16 %v502
    %v1092 = vunpack.c.h.b16 %v502
    %v1093 = vunpack.c.l.b16 %v503
    %v1094 = vunpack.c.h.b16 %v503
    %v1095 = vunpack.c.l.b16 %v504
    %v1096 = vunpack.c.h.b16 %v504
    %v1097 = vunpack.c.l.b16 %v505
    %v1098 = vunpack.c.h.b16 %v505
    %v1099 = vunpack.c.l.b16 %v506
    %v1100 = vunpack.c.h.b16 %v506
    %v1101 = vunpack.c.l.b16 %v507
    %v1102 = vunpack.c.h.b16 %v507
    %v1103 = vunpack.c.l.b16 %v508
    %v1104 = vunpack.c.h.b16 %v508
    %v1105 = vunpack.c.l.b16 %v509
    %v1106 = vunpack.c.h.b16 %v509
    %v1107 = vunpack.c.l.b16 %v510
    %v1108 = vunpack.c.h.b16 %v510
    %v1109 = vunpack.c.l.b16 %v511
    %v1110 = vunpack.c.h.b16 %v511
    %v1111 = vunpack.c.l.b16 %v512
    %v1112 = vunpack.c.h.b16 %v512
    %v1113 = vunpack.c.l.b16 %v513
    %v1114 = vunpack.c.h.b16 %v513
    %v1115 = vunpack.c.l.b16 %v514
    %v1116 = vunpack.c.h.b16 %v514
    %v1117 = vunpack.c.l.b16 %v515
    %v1118 = vunpack.c.h.b16 %v515
    %v1119 = vunpack.c.l.b16 %v516
    %v1120 = vunpack.c.h.b16 %v516
    %v1121 = vunpack.c.l.b16 %v517
    %v1122 = vunpack.c.h.b16 %v517
    %v1123 = vunpack.c.l.b16 %v518
    %v1124 = vunpack.c.h.b16 %v518
    %v1125 = vunpack.c.l.b16 %v519
    %v1126 = vunpack.c.h.b16 %v519
    %v1127 = vunpack.c.l.b16 %v520
    %v1128 = vunpack.c.h.b16 %v520
    %v1129 = vunpack.c.l.b16 %v521
    %v1130 = vunpack.c.h.b16 %v521
    %v1131 = vunpack.c.l.b16 %v522
    %v1132 = vunpack.c.h.b16 %v522
    %v1133 = vunpack.c.l.b16 %v523
    %v1134 = vunpack.c.h.b16 %v523
    %v1135 = vunpack.c.l.b16 %v524
    %v1136 = vunpack.c.h.b16 %v524
    %v1137 = vunpack.c.l.b16 %v525
    %v1138 = vunpack.c.h.b16 %v525
    %v1139 = vunpack.c.l.b16 %v526
    %v1140 = vunpack.c.h.b16 %v526
    %v1141 = vunpack.c.l.b16 %v527
    %v1142 = vunpack.c.h.b16 %v527
    %v1143 = vunpack.c.l.b16 %v528
    %v1144 = vunpack.c.h.b16 %v528
    %v1145 = vunpack.c.l.b16 %v529
    %v1146 = vunpack.c.h.b16 %v529
    %v1147 = vunpack.c.l.b16 %v530
    %v1148 = vunpack.c.h.b16 %v530
    %v1149 = vunpack.c.l.b16 %v531
    %v1150 = vunpack.c.h.b16 %v531
    %v1151 = vunpack.c.l.b16 %v532
    %v1152 = vunpack.c.h.b16 %v532
    %v1153 = vunpack.c.l.b16 %v533
    %v1154 = vunpack.c.h.b16 %v533
    %v1155 = vunpack.c.l.b16 %v534
    %v1156 = vunpack.c.h.b16 %v534
    %v1157 = vunpack.c.l.b16 %v535
    %v1158 = vunpack.c.h.b16 %v535
    %v1159 = vunpack.c.l.b16 %v536
    %v1160 = vunpack.c.h.b16 %v536
    %v1161 = vunpack.c.l.b16 %v537
    %v1162 = vunpack.c.h.b16 %v537
    %v1163 = vunpack.c.l.b16 %v538
    %v1164 = vunpack.c.h.b16 %v538
    %v1165 = vunpack.c.l.b16 %v539
    %v1166 = vunpack.c.h.b16 %v539
    %v1167 = vunpack.c.l.b16 %v540
    %v1168 = vunpack.c.h.b16 %v540
    %v1169 = vunpack.c.l.b16 %v541
    %v1170 = vunpack.c.h.b16 %v541
    %v1171 = vunpack.c.l.b16 %v542
    %v1172 = vunpack.c.h.b16 %v542
    %v1173 = vunpack.c.l.b16 %v543
    %v1174 = vunpack.c.h.b16 %v543
    %v1175 = vunpack.c.l.b16 %v544
    %v1176 = vunpack.c.h.b16 %v544
    %v1177 = vunpack.c.l.b16 %v545
    %v1178 = vunpack.c.h.b16 %v545
    %v1179 = vunpack.c.l.b16 %v546
    %v1180 = vunpack.c.h.b16 %v546
    %v1181 = vunpack.c.l.b16 %v547
    %v1182 = vunpack.c.h.b16 %v547
    %v1183 = vunpack.c.l.b16 %v548
    %v1184 = vunpack.c.h.b16 %v548
    %v1185 = vunpack.c.l.b16 %v549
    %v1186 = vunpack.c.h.b16 %v549
    %v1187 = vunpack.c.l.b16 %v550
    %v1188 = vunpack.c.h.b16 %v550
    %v1189 = vunpack.c.l.b16 %v551
    %v1190 = vunpack.c.h.b16 %v551
    %v1191 = vunpack.c.l.b16 %v552
    %v1192 = vunpack.c.h.b16 %v552
    %v1193 = vunpack.c.l.b16 %v553
    %v1194 = vunpack.c.h.b16 %v553
    %v1195 = vunpack.c.l.b16 %v554
    %v1196 = vunpack.c.h.b16 %v554
    %v1197 = vunpack.c.l.b16 %v555
    %v1198 = vunpack.c.h.b16 %v555
    %v1199 = vunpack.c.l.b16 %v556
    %v1200 = vunpack.c.h.b16 %v556
    %v1201 = vunpack.c.l.b16 %v557
    %v1202 = vunpack.c.h.b16 %v557
    %v1203 = vunpack.c.l.b16 %v558
    %v1204 = vunpack.c.h.b16 %v558
    %v1205 = vunpack.c.l.b16 %v559
    %v1206 = vunpack.c.h.b16 %v559
    %v1207 = vunpack.c.l.b16 %v560
    %v1208 = vunpack.c.h.b16 %v560
    %v1209 = vunpack.c.l.b16 %v561
    %v1210 = vunpack.c.h.b16 %v561
    %v1211 = vunpack.c.l.b16 %v562
    %v1212 = vunpack.c.h.b16 %v562
    %v1213 = vunpack.c.l.b16 %v563
    %v1214 = vunpack.c.h.b16 %v563
    %v1215 = vunpack.c.l.b16 %v564
    %v1216 = vunpack.c.h.b16 %v564
    %v1217 = vunpack.c.l.b16 %v565
    %v1218 = vunpack.c.h.b16 %v565
    %v1219 = vunpack.c.l.b16 %v566
    %v1220 = vunpack.c.h.b16 %v566
    %v1221 = vunpack.c.l.b16 %v567
    %v1222 = vunpack.c.h.b16 %v567
    %v1223 = vunpack.c.l.b16 %v568
    %v1224 = vunpack.c.h.b16 %v568
    %v1225 = vunpack.c.l.b16 %v569
    %v1226 = vunpack.c.h.b16 %v569
    %v1227 = vunpack.c.l.b16 %v570
    %v1228 = vunpack.c.h.b16 %v570
    %v1229 = vunpack.c.l.b16 %v571
    %v1230 = vunpack.c.h.b16 %v571
    %v1231 = vunpack.c.l.b16 %v572
    %v1232 = vunpack.c.h.b16 %v572
    %v1233 = vunpack.c.l.b16 %v573
    %v1234 = vunpack.c.h.b16 %v573
    %v1235 = vunpack.c.l.b16 %v574
    %v1236 = vunpack.c.h.b16 %v574
    %v1237 = vunpack.c.l.b16 %v575
    %v1238 = vunpack.c.h.b16 %v575
    %v1239 = vunpack.c.l.b16 %v576
    %v1240 = vunpack.c.h.b16 %v576
    %v1241 = vunpack.c.l.b16 %v577
    %v1242 = vunpack.c.h.b16 %v577
    %v1243 = vunpack.c.l.b16 %v578
    %v1244 = vunpack.c.h.b16 %v578
    %v1245 = vunpack.c.l.b16 %v579
    %v1246 = vunpack.c.h.b16 %v579
    %v1247 = vunpack.c.l.b16 %v580
    %v1248 = vunpack.c.h.b16 %v580
    %v1249 = vunpack.c.l.b16 %v581
    %v1250 = vunpack.c.h.b16 %v581
    %v1251 = vunpack.c.l.b16 %v582
    %v1252 = vunpack.c.h.b16 %v582
    %v1253 = vunpack.c.l.b16 %v583
    %v1254 = vunpack.c.h.b16 %v583
    %v1255 = vunpack.c.l.b16 %v584
    %v1256 = vunpack.c.h.b16 %v584
    %v1257 = vunpack.c.l.b16 %v585
    %v1258 = vunpack.c.h.b16 %v585
    %v1259 = vunpack.c.l.b16 %v586
    %v1260 = vunpack.c.h.b16 %v586
    %v1261 = vunpack.c.l.b16 %v587
    %v1262 = vunpack.c.h.b16 %v587
    %v1263 = vunpack.c.l.b16 %v588
    %v1264 = vunpack.c.h.b16 %v588
    %v1265 = vunpack.c.l.b16 %v589
    %v1266 = vunpack.c.h.b16 %v589
    %v1267 = vunpack.c.l.b16 %v590
    %v1268 = vunpack.c.h.b16 %v590
    %v1269 = vunpack.c.l.b16 %v591
    %v1270 = vunpack.c.h.b16 %v591
    %v1271 = vunpack.c.l.b16 %v592
    %v1272 = vunpack.c.h.b16 %v592
    %v1273 = vunpack.c.l.b16 %v593
    %v1274 = vunpack.c.h.b16 %v593
    %v1275 = vunpack.c.l.b16 %v594
    %v1276 = vunpack.c.h.b16 %v594
    %v1277 = vunpack.c.l.b16 %v595
    %v1278 = vunpack.c.h.b16 %v595
    %v1279 = vunpack.c.l.b16 %v596
    %v1280 = vunpack.c.h.b16 %v596
    %v1281 = vunpack.c.l.b16 %v597
    %v1282 = vunpack.c.h.b16 %v597
    %v1283 = vunpack.c.l.b16 %v598
    %v1284 = vunpack.c.h.b16 %v598
    %v1285 = vunpack.c.l.b16 %v599
    %v1286 = vunpack.c.h.b16 %v599
    %v1287 = vunpack.c.l.b16 %v600
    %v1288 = vunpack.c.h.b16 %v600
    %v1289 = vunpack.c.l.b16 %v601
    %v1290 = vunpack.c.h.b16 %v601
    %v1291 = vunpack.c.l.b16 %v602
    %v1292 = vunpack.c.h.b16 %v602
    %v1293 = vunpack.c.l.b16 %v603
    %v1294 = vunpack.c.h.b16 %v603
    %v1295 = vunpack.c.l.b16 %v604
    %v1296 = vunpack.c.h.b16 %v604
    %v1297 = vunpack.c.l.b16 %v605
    %v1298 = vunpack.c.h.b16 %v605
    %v1299 = vunpack.c.l.b16 %v606
    %v1300 = vunpack.c.h.b16 %v606
    %v1301 = vunpack.c.l.b16 %v607
    %v1302 = vunpack.c.h.b16 %v607
    %v1303 = vunpack.c.l.b16 %v608
    %v1304 = vunpack.c.h.b16 %v608
    %v1305 = vunpack.c.l.b16 %v609
    %v1306 = vunpack.c.h.b16 %v609
    %v1307 = vunpack.c.l.b16 %v610
    %v1308 = vunpack.c.h.b16 %v610
    %v1309 = vunpack.c.l.b16 %v611
    %v1310 = vunpack.c.h.b16 %v611
    %v1311 = vunpack.c.l.b16 %v612
    %v1312 = vunpack.c.h.b16 %v612
    %v1313 = vunpack.c.l.b16 %v613
    %v1314 = vunpack.c.h.b16 %v613
    %v1315 = vunpack.c.l.b16 %v614
    %v1316 = vunpack.c.h.b16 %v614
    %v1317 = vunpack.c.l.b16 %v615
    %v1318 = vunpack.c.h.b16 %v615
    %v1319 = vunpack.c.l.b16 %v616
    %v1320 = vunpack.c.h.b16 %v616
    %v1321 = vunpack.c.l.b16 %v617
    %v1322 = vunpack.c.h.b16 %v617
    %v1323 = vunpack.c.l.b16 %v618
    %v1324 = vunpack.c.h.b16 %v618
    %v1325 = vunpack.c.l.b16 %v619
    %v1326 = vunpack.c.h.b16 %v619
    %v1327 = vunpack.c.l.b16 %v620
    %v1328 = vunpack.c.h.b16 %v620
    %v1329 = vunpack.c.l.b16 %v621
    %v1330 = vunpack.c.h.b16 %v621
    %v1331 = vunpack.c.l.b16 %v622
    %v1332 = vunpack.c.h.b16 %v622
    %v1333 = vunpack.c.l.b16 %v623
    %v1334 = vunpack.c.h.b16 %v623
    %v1335 = vunpack.c.l.b16 %v624
    %v1336 = vunpack.c.h.b16 %v624
    %v1337 = vunpack.c.l.b16 %v625
    %v1338 = vunpack.c.h.b16 %v625
    %v1339 = vunpack.c.l.b16 %v626
    %v1340 = vunpack.c.h.b16 %v626
    %v1341 = vunpack.c.l.b16 %v627
    %v1342 = vunpack.c.h.b16 %v627
    %v1343 = vunpack.c.l.b16 %v628
    %v1344 = vunpack.c.h.b16 %v628
    %v1345 = vunpack.c.l.b16 %v629
    %v1346 = vunpack.c.h.b16 %v629
    %v1347 = vunpack.c.l.b16 %v630
    %v1348 = vunpack.c.h.b16 %v630
    %v1349 = vunpack.c.l.b16 %v631
    %v1350 = vunpack.c.h.b16 %v631
    %v1351 = vunpack.c.l.b16 %v632
    %v1352 = vunpack.c.h.b16 %v632
    %v1353 = vunpack.c.l.b16 %v633
    %v1354 = vunpack.c.h.b16 %v633
    %v1355 = vunpack.c.l.b16 %v634
    %v1356 = vunpack.c.h.b16 %v634
    %v1357 = vunpack.c.l.b16 %v635
    %v1358 = vunpack.c.h.b16 %v635
    %v1359 = vunpack.c.l.b16 %v636
    %v1360 = vunpack.c.h.b16 %v636
    %v1361 = vunpack.c.l.b16 %v637
    %v1362 = vunpack.c.h.b16 %v637
    %v1363 = vunpack.c.l.b16 %v638
    %v1364 = vunpack.c.h.b16 %v638
    %v1365 = vunpack.c.l.b16 %v639
    %v1366 = vunpack.c.h.b16 %v639
    %v1367 = vunpack.c.l.b16 %v640
    %v1368 = vunpack.c.h.b16 %v640
    %v1369 = vunpack.c.l.b16 %v641
    %v1370 = vunpack.c.h.b16 %v641
    %v1371 = vunpack.c.l.b16 %v642
    %v1372 = vunpack.c.h.b16 %v642
    %v1373 = vunpack.c.l.b16 %v643
    %v1374 = vunpack.c.h.b16 %v643
    %v1375 = vunpack.c.l.b16 %v644
    %v1376 = vunpack.c.h.b16 %v644
    %v1377 = vunpack.c.l.b16 %v645
    %v1378 = vunpack.c.h.b16 %v645
    %v1379 = vunpack.c.l.b16 %v646
    %v1380 = vunpack.c.h.b16 %v646
    %v1381 = vunpack.c.l.b16 %v647
    %v1382 = vunpack.c.h.b16 %v647
    %v1383 = vunpack.c.l.b16 %v648
    %v1384 = vunpack.c.h.b16 %v648
    %v1385 = vunpack.c.l.b16 %v649
    %v1386 = vunpack.c.h.b16 %v649
    %v1387 = vunpack.c.l.b16 %v650
    %v1388 = vunpack.c.h.b16 %v650
    %v1389 = vunpack.c.l.b16 %v651
    %v1390 = vunpack.c.h.b16 %v651
    %v1391 = vunpack.c.l.b16 %v652
    %v1392 = vunpack.c.h.b16 %v652
    %v1393 = vunpack.c.l.b16 %v653
    %v1394 = vunpack.c.h.b16 %v653
    %v1395 = vunpack.c.l.b16 %v654
    %v1396 = vunpack.c.h.b16 %v654
    %v1397 = vunpack.c.l.b16 %v655
    %v1398 = vunpack.c.h.b16 %v655
    %v1399 = vunpack.c.l.b16 %v656
    %v1400 = vunpack.c.h.b16 %v656
    %v1401 = vunpack.c.l.b16 %v657
    %v1402 = vunpack.c.h.b16 %v657
    %v1403 = vunpack.c.l.b16 %v658
    %v1404 = vunpack.c.h.b16 %v658
    %v1405 = vunpack.c.l.b16 %v659
    %v1406 = vunpack.c.h.b16 %v659
    %v1407 = vunpack.c.l.b16 %v660
    %v1408 = vunpack.c.h.b16 %v660
    %v1409 = vunpack.c.l.b16 %v661
    %v1410 = vunpack.c.h.b16 %v661
    %v1411 = vunpack.c.l.b16 %v662
    %v1412 = vunpack.c.h.b16 %v662
    %v1413 = vunpack.c.l.b16 %v663
    %v1414 = vunpack.c.h.b16 %v663
    %v1415 = vunpack.c.l.b16 %v664
    %v1416 = vunpack.c.h.b16 %v664
    %v1417 = vunpack.c.l.b16 %v665
    %v1418 = vunpack.c.h.b16 %v665
    %v1419 = vunpack.c.l.b16 %v666
    %v1420 = vunpack.c.h.b16 %v666
    %v1421 = vunpack.c.l.b16 %v667
    %v1422 = vunpack.c.h.b16 %v667
    %v1423 = vunpack.c.l.b16 %v668
    %v1424 = vunpack.c.h.b16 %v668
    %v1425 = vunpack.c.l.b16 %v669
    %v1426 = vunpack.c.h.b16 %v669
    %v1427 = vunpack.c.l.b16 %v670
    %v1428 = vunpack.c.h.b16 %v670
    %v1429 = vunpack.c.l.b16 %v671
    %v1430 = vunpack.c.h.b16 %v671
    %v1431 = vunpack.c.l.b16 %v672
    %v1432 = vunpack.c.h.b16 %v672
    %v1433 = vunpack.c.l.b16 %v673
    %v1434 = vunpack.c.h.b16 %v673
    %v1435 = vunpack.c.l.b16 %v674
    %v1436 = vunpack.c.h.b16 %v674
    %v1437 = vunpack.c.l.b16 %v675
    %v1438 = vunpack.c.h.b16 %v675
    %v1439 = vunpack.c.l.b16 %v676
    %v1440 = vunpack.c.h.b16 %v676
    %v1441 = vunpack.c.l.b16 %v677
    %v1442 = vunpack.c.h.b16 %v677
    %v1443 = vunpack.c.l.b16 %v678
    %v1444 = vunpack.c.h.b16 %v678
    %v1445 = vunpack.c.l.b16 %v679
    %v1446 = vunpack.c.h.b16 %v679
    %v1447 = vunpack.c.l.b16 %v680
    %v1448 = vunpack.c.h.b16 %v680
    %v1449 = vunpack.c.l.b16 %v681
    %v1450 = vunpack.c.h.b16 %v681
    %v1451 = vunpack.c.l.b16 %v682
    %v1452 = vunpack.c.h.b16 %v682
    %v1453 = vunpack.c.l.b16 %v683
    %v1454 = vunpack.c.h.b16 %v683
    %v1455 = vunpack.c.l.b16 %v684
    %v1456 = vunpack.c.h.b16 %v684
    %v1457 = vunpack.c.l.b16 %v685
    %v1458 = vunpack.c.h.b16 %v685
    %v1459 = vunpack.c.l.b16 %v686
    %v1460 = vunpack.c.h.b16 %v686
    %v1461 = vunpack.c.l.b16 %v687
    %v1462 = vunpack.c.h.b16 %v687
    %v1463 = vunpack.c.l.b16 %v688
    %v1464 = vunpack.c.h.b16 %v688
    %v1465 = vunpack.c.l.b16 %v689
    %v1466 = vunpack.c.h.b16 %v689
    %v1467 = vunpack.c.l.b16 %v690
    %v1468 = vunpack.c.h.b16 %v690
    %v1469 = vunpack.c.l.b16 %v691
    %v1470 = vunpack.c.h.b16 %v691
    %v1471 = vunpack.c.l.b16 %v692
    %v1472 = vunpack.c.h.b16 %v692
    %v1473 = vunpack.c.l.b16 %v693
    %v1474 = vunpack.c.h.b16 %v693
    %v1475 = vunpack.c.l.b16 %v694
    %v1476 = vunpack.c.h.b16 %v694
    %v1477 = vunpack.c.l.b16 %v695
    %v1478 = vunpack.c.h.b16 %v695
    %v1479 = vunpack.c.l.b16 %v696
    %v1480 = vunpack.c.h.b16 %v696
    %v1481 = vunpack.c.l.b16 %v697
    %v1482 = vunpack.c.h.b16 %v697
    %v1483 = vunpack.c.l.b16 %v698
    %v1484 = vunpack.c.h.b16 %v698
    %v1485 = vunpack.c.l.b16 %v699
    %v1486 = vunpack.c.h.b16 %v699
    %v1487 = vunpack.c.l.b16 %v700
    %v1488 = vunpack.c.h.b16 %v700
    %v1489 = vunpack.c.l.b16 %v701
    %v1490 = vunpack.c.h.b16 %v701
    %v1491 = vunpack.c.l.b16 %v702
    %v1492 = vunpack.c.h.b16 %v702
    %v1493 = vpack.c.b16 %v985, %v981
    %v1494 = vpack.c.b16 %v986, %v982
    %v1495 = vpack.c.b16 %v987, %v983
    %v1496 = vpack.c.b16 %v988, %v984
    %v1497 = vpack.c.b16 %v993, %v989
    %v1498 = vpack.c.b16 %v994, %v990
    %v1499 = vpack.c.b16 %v995, %v991
    %v1500 = vpack.c.b16 %v996, %v992
    %v1501 = vpack.c.b16 %v1001, %v997
    %v1502 = vpack.c.b16 %v1002, %v998
    %v1503 = vpack.c.b16 %v1003, %v999
    %v1504 = vpack.c.b16 %v1004, %v1000
    %v1505 = vpack.c.b16 %v1009, %v1005
    %v1506 = vpack.c.b16 %v1010, %v1006
    %v1507 = vpack.c.b16 %v1011, %v1007
    %v1508 = vpack.c.b16 %v1012, %v1008
    %v1509 = vpack.c.b16 %v1017, %v1013
    %v1510 = vpack.c.b16 %v1018, %v1014
    %v1511 = vpack.c.b16 %v1019, %v1015
    %v1512 = vpack.c.b16 %v1020, %v1016
    %v1513 = vpack.c.b16 %v1025, %v1021
    %v1514 = vpack.c.b16 %v1026, %v1022
    %v1515 = vpack.c.b16 %v1027, %v1023
    %v1516 = vpack.c.b16 %v1028, %v1024
    %v1517 = vpack.c.b16 %v1033, %v1029
    %v1518 = vpack.c.b16 %v1034, %v1030
    %v1519 = vpack.c.b16 %v1035, %v1031
    %v1520 = vpack.c.b16 %v1036, %v1032
    %v1521 = vpack.c.b16 %v1041, %v1037
    %v1522 = vpack.c.b16 %v1042, %v1038
    %v1523 = vpack.c.b16 %v1043, %v1039
    %v1524 = vpack.c.b16 %v1044, %v1040
    %v1525 = vpack.c.b16 %v1049, %v1045
    %v1526 = vpack.c.b16 %v1050, %v1046
    %v1527 = vpack.c.b16 %v1051, %v1047
    %v1528 = vpack.c.b16 %v1052, %v1048
    %v1529 = vpack.c.b16 %v1057, %v1053
    %v1530 = vpack.c.b16 %v1058, %v1054
    %v1531 = vpack.c.b16 %v1059, %v1055
    %v1532 = vpack.c.b16 %v1060, %v1056
    %v1533 = vpack.c.b16 %v1065, %v1061
    %v1534 = vpack.c.b16 %v1066, %v1062
    %v1535 = vpack.c.b16 %v1067, %v1063
    %v1536 = vpack.c.b16 %v1068, %v1064
    %v1537 = vpack.c.b16 %v1073, %v1069
    %v1538 = vpack.c.b16 %v1074, %v1070
    %v1539 = vpack.c.b16 %v1075, %v1071
    %v1540 = vpack.c.b16 %v1076, %v1072
    %v1541 = vpack.c.b16 %v1081, %v1077
    %v1542 = vpack.c.b16 %v1082, %v1078
    %v1543 = vpack.c.b16 %v1083, %v1079
    %v1544 = vpack.c.b16 %v1084, %v1080
    %v1545 = vpack.c.b16 %v1089, %v1085
    %v1546 = vpack.c.b16 %v1090, %v1086
    %v1547 = vpack.c.b16 %v1091, %v1087
    %v1548 = vpack.c.b16 %v1092, %v1088
    %v1549 = vpack.c.b16 %v1097, %v1093
    %v1550 = vpack.c.b16 %v1098, %v1094
    %v1551 = vpack.c.b16 %v1099, %v1095
    %v1552 = vpack.c.b16 %v1100, %v1096
    %v1553 = vpack.c.b16 %v1105, %v1101
    %v1554 = vpack.c.b16 %v1106, %v1102
    %v1555 = vpack.c.b16 %v1107, %v1103
    %v1556 = vpack.c.b16 %v1108, %v1104
    %v1557 = vpack.c.b16 %v1113, %v1109
    %v1558 = vpack.c.b16 %v1114, %v1110
    %v1559 = vpack.c.b16 %v1115, %v1111
    %v1560 = vpack.c.b16 %v1116, %v1112
    %v1561 = vpack.c.b16 %v1121, %v1117
    %v1562 = vpack.c.b16 %v1122, %v1118
    %v1563 = vpack.c.b16 %v1123, %v1119
    %v1564 = vpack.c.b16 %v1124, %v1120
    %v1565 = vpack.c.b16 %v1129, %v1125
    %v1566 = vpack.c.b16 %v1130, %v1126
    %v1567 = vpack.c.b16 %v1131, %v1127
    %v1568 = vpack.c.b16 %v1132, %v1128
    %v1569 = vpack.c.b16 %v1137, %v1133
    %v1570 = vpack.c.b16 %v1138, %v1134
    %v1571 = vpack.c.b16 %v1139, %v1135
    %v1572 = vpack.c.b16 %v1140, %v1136
    %v1573 = vpack.c.b16 %v1145, %v1141
    %v1574 = vpack.c.b16 %v1146, %v1142
    %v1575 = vpack.c.b16 %v1147, %v1143
    %v1576 = vpack.c.b16 %v1148, %v1144
    %v1577 = vpack.c.b16 %v1153, %v1149
    %v1578 = vpack.c.b16 %v1154, %v1150
    %v1579 = vpack.c.b16 %v1155, %v1151
    %v1580 = vpack.c.b16 %v1156, %v1152
    %v1581 = vpack.c.b16 %v1161, %v1157
    %v1582 = vpack.c.b16 %v1162, %v1158
    %v1583 = vpack.c.b16 %v1163, %v1159
    %v1584 = vpack.c.b16 %v1164, %v1160
    %v1585 = vpack.c.b16 %v1169, %v1165
    %v1586 = vpack.c.b16 %v1170, %v1166
    %v1587 = vpack.c.b16 %v1171, %v1167
    %v1588 = vpack.c.b16 %v1172, %v1168
    %v1589 = vpack.c.b16 %v1177, %v1173
    %v1590 = vpack.c.b16 %v1178, %v1174
    %v1591 = vpack.c.b16 %v1179, %v1175
    %v1592 = vpack.c.b16 %v1180, %v1176
    %v1593 = vpack.c.b16 %v1185, %v1181
    %v1594 = vpack.c.b16 %v1186, %v1182
    %v1595 = vpack.c.b16 %v1187, %v1183
    %v1596 = vpack.c.b16 %v1188, %v1184
    %v1597 = vpack.c.b16 %v1193, %v1189
    %v1598 = vpack.c.b16 %v1194, %v1190
    %v1599 = vpack.c.b16 %v1195, %v1191
    %v1600 = vpack.c.b16 %v1196, %v1192
    %v1601 = vpack.c.b16 %v1201, %v1197
    %v1602 = vpack.c.b16 %v1202, %v1198
    %v1603 = vpack.c.b16 %v1203, %v1199
    %v1604 = vpack.c.b16 %v1204, %v1200
    %v1605 = vpack.c.b16 %v1209, %v1205
    %v1606 = vpack.c.b16 %v1210, %v1206
    %v1607 = vpack.c.b16 %v1211, %v1207
    %v1608 = vpack.c.b16 %v1212, %v1208
    %v1609 = vpack.c.b16 %v1217, %v1213
    %v1610 = vpack.c.b16 %v1218, %v1214
    %v1611 = vpack.c.b16 %v1219, %v1215
    %v1612 = vpack.c.b16 %v1220, %v1216
    %v1613 = vpack.c.b16 %v1225, %v1221
    %v1614 = vpack.c.b16 %v1226, %v1222
    %v1615 = vpack.c.b16 %v1227, %v1223
    %v1616 = vpack.c.b16 %v1228, %v1224
    %v1617 = vpack.c.b16 %v1233, %v1229
    %v1618 = vpack.c.b16 %v1234, %v1230
    %v1619 = vpack.c.b16 %v1235, %v1231
    %v1620 = vpack.c.b16 %v1236, %v1232
    %v1621 = vpack.c.b16 %v1241, %v1237
    %v1622 = vpack.c.b16 %v1242, %v1238
    %v1623 = vpack.c.b16 %v1243, %v1239
    %v1624 = vpack.c.b16 %v1244, %v1240
    %v1625 = vpack.c.b16 %v1249, %v1245
    %v1626 = vpack.c.b16 %v1250, %v1246
    %v1627 = vpack.c.b16 %v1251, %v1247
    %v1628 = vpack.c.b16 %v1252, %v1248
    %v1629 = vpack.c.b16 %v1257, %v1253
    %v1630 = vpack.c.b16 %v1258, %v1254
    %v1631 = vpack.c.b16 %v1259, %v1255
    %v1632 = vpack.c.b16 %v1260, %v1256
    %v1633 = vpack.c.b16 %v1265, %v1261
    %v1634 = vpack.c.b16 %v1266, %v1262
    %v1635 = vpack.c.b16 %v1267, %v1263
    %v1636 = vpack.c.b16 %v1268, %v1264
    %v1637 = vpack.c.b16 %v1273, %v1269
    %v1638 = vpack.c.b16 %v1274, %v1270
    %v1639 = vpack.c.b16 %v1275, %v1271
    %v1640 = vpack.c.b16 %v1276, %v1272
    %v1641 = vpack.c.b16 %v1281, %v1277
    %v1642 = vpack.c.b16 %v1282, %v1278
    %v1643 = vpack.c.b16 %v1283, %v1279
    %v1644 = vpack.c.b16 %v1284, %v1280
    %v1645 = vpack.c.b16 %v1289, %v1285
    %v1646 = vpack.c.b16 %v1290, %v1286
    %v1647 = vpack.c.b16 %v1291, %v1287
    %v1648 = vpack.c.b16 %v1292, %v1288
    %v1649 = vpack.c.b16 %v1297, %v1293
    %v1650 = vpack.c.b16 %v1298, %v1294
    %v1651 = vpack.c.b16 %v1299, %v1295
    %v1652 = vpack.c.b16 %v1300, %v1296
    %v1653 = vpack.c.b16 %v1305, %v1301
    %v1654 = vpack.c.b16 %v1306, %v1302
    %v1655 = vpack.c.b16 %v1307, %v1303
    %v1656 = vpack.c.b16 %v1308, %v1304
    %v1657 = vpack.c.b16 %v1313, %v1309
    %v1658 = vpack.c.b16 %v1314, %v1310
    %v1659 = vpack.c.b16 %v1315, %v1311
    %v1660 = vpack.c.b16 %v1316, %v1312
    %v1661 = vpack.c.b16 %v1321, %v1317
    %v1662 = vpack.c.b16 %v1322, %v1318
    %v1663 = vpack.c.b16 %v1323, %v1319
    %v1664 = vpack.c.b16 %v1324, %v1320
    %v1665 = vpack.c.b16 %v1329, %v1325
    %v1666 = vpack.c.b16 %v1330, %v1326
    %v1667 = vpack.c.b16 %v1331, %v1327
    %v1668 = vpack.c.b16 %v1332, %v1328
    %v1669 = vpack.c.b16 %v1337, %v1333
    %v1670 = vpack.c.b16 %v1338, %v1334
    %v1671 = vpack.c.b16 %v1339, %v1335
    %v1672 = vpack.c.b16 %v1340, %v1336
    %v1673 = vpack.c.b16 %v1345, %v1341
    %v1674 = vpack.c.b16 %v1346, %v1342
    %v1675 = vpack.c.b16 %v1347, %v1343
    %v1676 = vpack.c.b16 %v1348, %v1344
    %v1677 = vpack.c.b16 %v1353, %v1349
    %v1678 = vpack.c.b16 %v1354, %v1350
    %v1679 = vpack.c.b16 %v1355, %v1351
    %v1680 = vpack.c.b16 %v1356, %v1352
    %v1681 = vpack.c.b16 %v1361, %v1357
    %v1682 = vpack.c.b16 %v1362, %v1358
    %v1683 = vpack.c.b16 %v1363, %v1359
    %v1684 = vpack.c.b16 %v1364, %v1360
    %v1685 = vpack.c.b16 %v1369, %v1365
    %v1686 = vpack.c.b16 %v1370, %v1366
    %v1687 = vpack.c.b16 %v1371, %v1367
    %v1688 = vpack.c.b16 %v1372, %v1368
    %v1689 = vpack.c.b16 %v1377, %v1373
    %v1690 = vpack.c.b16 %v1378, %v1374
    %v1691 = vpack.c.b16 %v1379, %v1375
    %v1692 = vpack.c.b16 %v1380, %v1376
    %v1693 = vpack.c.b16 %v1385, %v1381
    %v1694 = vpack.c.b16 %v1386, %v1382
    %v1695 = vpack.c.b16 %v1387, %v1383
    %v1696 = vpack.c.b16 %v1388, %v1384
    %v1697 = vpack.c.b16 %v1393, %v1389
    %v1698 = vpack.c.b16 %v1394, %v1390
    %v1699 = vpack.c.b16 %v1395, %v1391
    %v1700 = vpack.c.b16 %v1396, %v1392
    %v1701 = vpack.c.b16 %v1401, %v1397
    %v1702 = vpack.c.b16 %v1402, %v1398
    %v1703 = vpack.c.b16 %v1403, %v1399
    %v1704 = vpack.c.b16 %v1404, %v1400
    %v1705 = vpack.c.b16 %v1409, %v1405
    %v1706 = vpack.c.b16 %v1410, %v1406
    %v1707 = vpack.c.b16 %v1411, %v1407
    %v1708 = vpack.c.b16 %v1412, %v1408
    %v1709 = vpack.c.b16 %v1417, %v1413
    %v1710 = vpack.c.b16 %v1418, %v1414
    %v1711 = vpack.c.b16 %v1419, %v1415
    %v1712 = vpack.c.b16 %v1420, %v1416
    %v1713 = vpack.c.b16 %v1425, %v1421
    %v1714 = vpack.c.b16 %v1426, %v1422
    %v1715 = vpack.c.b16 %v1427, %v1423
    %v1716 = vpack.c.b16 %v1428, %v1424
    %v1717 = vpack.c.b16 %v1433, %v1429
    %v1718 = vpack.c.b16 %v1434, %v1430
    %v1719 = vpack.c.b16 %v1435, %v1431
    %v1720 = vpack.c.b16 %v1436, %v1432
    %v1721 = vpack.c.b16 %v1441, %v1437
    %v1722 = vpack.c.b16 %v1442, %v1438
    %v1723 = vpack.c.b16 %v1443, %v1439
    %v1724 = vpack.c.b16 %v1444, %v1440
    %v1725 = vpack.c.b16 %v1449, %v1445
    %v1726 = vpack.c.b16 %v1450, %v1446
    %v1727 = vpack.c.b16 %v1451, %v1447
    %v1728 = vpack.c.b16 %v1452, %v1448
    %v1729 = vpack.c.b16 %v1457, %v1453
    %v1730 = vpack.c.b16 %v1458, %v1454
    %v1731 = vpack.c.b16 %v1459, %v1455
    %v1732 = vpack.c.b16 %v1460, %v1456
    %v1733 = vpack.c.b16 %v1465, %v1461
    %v1734 = vpack.c.b16 %v1466, %v1462
    %v1735 = vpack.c.b16 %v1467, %v1463
    %v1736 = vpack.c.b16 %v1468, %v1464
    %v1737 = vpack.c.b16 %v1473, %v1469
    %v1738 = vpack.c.b16 %v1474, %v1470
    %v1739 = vpack.c.b16 %v1475, %v1471
    %v1740 = vpack.c.b16 %v1476, %v1472
    %v1741 = vpack.c.b16 %v1481, %v1477
    %v1742 = vpack.c.b16 %v1482, %v1478
    %v1743 = vpack.c.b16 %v1483, %v1479
    %v1744 = vpack.c.b16 %v1484, %v1480
    %v1745 = vpack.c.b16 %v1489, %v1485
    %v1746 = vpack.c.b16 %v1490, %v1486
    %v1747 = vpack.c.b16 %v1491, %v1487
    %v1748 = vpack.c.b16 %v1492, %v1488
    %2005 = vmatprep.subr.bf16.mxu0 %v1522
    %2006 = vmatpush1.bf16.msra.mxu0 %v1521
    %2007 = vmatprep.subr.bf16.mxu0 %v1518
    %2008 = vmatpush1.bf16.msra.mxu0 %v1517
    %2009 = vmatprep.subr.bf16.mxu0 %v1514
    %2010 = vmatpush1.bf16.msra.mxu0 %v1513
    %2011 = vmatprep.subr.bf16.mxu0 %v1510
    %2012 = vmatpush1.bf16.msra.mxu0 %v1509
    %2013 = vmatprep.subr.bf16.mxu0 %v1506
    %2014 = vmatpush1.bf16.msra.mxu0 %v1505
    %2015 = vmatprep.subr.bf16.mxu0 %v1502
    %2016 = vmatpush1.bf16.msra.mxu0 %v1501
    %2017 = vmatprep.subr.bf16.mxu0 %v1498
    %2018 = vmatpush1.bf16.msra.mxu0 %v1497
    %2019 = vmatprep.subr.bf16.mxu0 %v1494
    %2020 = vmatpush1.bf16.msra.mxu0 %v1493
    %2021 = vmatprep.subr.bf16.mxu0 %v1554
    %2022 = vmatpush2.bf16.msra.mxu0 %v1553
    %2023 = vmatprep.subr.bf16.mxu0 %v1550
    %2024 = vmatpush2.bf16.msra.mxu0 %v1549
    %2025 = vmatprep.subr.bf16.mxu0 %v1546
    %2026 = vmatpush2.bf16.msra.mxu0 %v1545
    %2027 = vmatprep.subr.bf16.mxu0 %v1542
    %2028 = vmatpush2.bf16.msra.mxu0 %v1541
    %2029 = vmatprep.subr.bf16.mxu0 %v1538
    %2030 = vmatpush2.bf16.msra.mxu0 %v1537
    %2031 = vmatprep.subr.bf16.mxu0 %v1534
    %2032 = vmatpush2.bf16.msra.mxu0 %v1533
    %2033 = vmatprep.subr.bf16.mxu0 %v1530
    %2034 = vmatpush2.bf16.msra.mxu0 %v1529
    %2035 = vmatprep.subr.bf16.mxu0 %v1526
    %2036 = vmatpush2.bf16.msra.mxu0 %v1525
    %2037 = vmatprep.mubr.bf16.mxu0 %v440
    %2038 = vmatmul.mubr.bf16.gmra.mxu0 %v439
    %v2039 = vpop.f32.mrf.mxu0
    %v2040 = vadd.f32 %v708, %v2039
    %v2041 = vpop.f32.mrf.mxu0
    %v2042 = vadd.f32 %v712, %v2041
    %v2043 = vpop.f32.mrf.mxu0
    %v2044 = vadd.f32 %v708, %v2043
    %v2045 = vpop.f32.mrf.mxu0
    %v2046 = vadd.f32 %v712, %v2045
    %2047 = vdwg.mxu0
    %2048 = vmatprep.subr.bf16.mxu0 %v1586
    %2049 = vmatpush1.bf16.msra.mxu0 %v1585
    %2050 = vmatprep.subr.bf16.mxu0 %v1582
    %2051 = vmatpush1.bf16.msra.mxu0 %v1581
    %2052 = vmatprep.subr.bf16.mxu0 %v1578
    %2053 = vmatpush1.bf16.msra.mxu0 %v1577
    %2054 = vmatprep.subr.bf16.mxu0 %v1574
    %2055 = vmatpush1.bf16.msra.mxu0 %v1573
    %2056 = vmatprep.subr.bf16.mxu0 %v1570
    %2057 = vmatpush1.bf16.msra.mxu0 %v1569
    %2058 = vmatprep.subr.bf16.mxu0 %v1566
    %2059 = vmatpush1.bf16.msra.mxu0 %v1565
    %2060 = vmatprep.subr.bf16.mxu0 %v1562
    %2061 = vmatpush1.bf16.msra.mxu0 %v1561
    %2062 = vmatprep.subr.bf16.mxu0 %v1558
    %2063 = vmatpush1.bf16.msra.mxu0 %v1557
    %2064 = vmatprep.subr.bf16.mxu0 %v1618
    %2065 = vmatpush2.bf16.msra.mxu0 %v1617
    %2066 = vmatprep.subr.bf16.mxu0 %v1614
    %2067 = vmatpush2.bf16.msra.mxu0 %v1613
    %2068 = vmatprep.subr.bf16.mxu0 %v1610
    %2069 = vmatpush2.bf16.msra.mxu0 %v1609
    %2070 = vmatprep.subr.bf16.mxu0 %v1606
    %2071 = vmatpush2.bf16.msra.mxu0 %v1605
    %2072 = vmatprep.subr.bf16.mxu0 %v1602
    %2073 = vmatpush2.bf16.msra.mxu0 %v1601
    %2074 = vmatprep.subr.bf16.mxu0 %v1598
    %2075 = vmatpush2.bf16.msra.mxu0 %v1597
    %2076 = vmatprep.subr.bf16.mxu0 %v1594
    %2077 = vmatpush2.bf16.msra.mxu0 %v1593
    %2078 = vmatprep.subr.bf16.mxu0 %v1590
    %2079 = vmatpush2.bf16.msra.mxu0 %v1589
    %2080 = vmatprep.mubr.bf16.mxu0 %v442
    %2081 = vmatmul.mubr.bf16.gmra.mxu0 %v441
    %v2082 = vpop.f32.mrf.mxu0
    %v2083 = vadd.f32 %v2040, %v2082
    %v2084 = vpop.f32.mrf.mxu0
    %v2085 = vadd.f32 %v2042, %v2084
    %v2086 = vpop.f32.mrf.mxu0
    %v2087 = vadd.f32 %v2044, %v2086
    %v2088 = vpop.f32.mrf.mxu0
    %v2089 = vadd.f32 %v2046, %v2088
    %2090 = vdwg.mxu0
    %2091 = vmatprep.subr.bf16.mxu0 %v1650
    %2092 = vmatpush1.bf16.msra.mxu0 %v1649
    %2093 = vmatprep.subr.bf16.mxu0 %v1646
    %2094 = vmatpush1.bf16.msra.mxu0 %v1645
    %2095 = vmatprep.subr.bf16.mxu0 %v1642
    %2096 = vmatpush1.bf16.msra.mxu0 %v1641
    %2097 = vmatprep.subr.bf16.mxu0 %v1638
    %2098 = vmatpush1.bf16.msra.mxu0 %v1637
    %2099 = vmatprep.subr.bf16.mxu0 %v1634
    %2100 = vmatpush1.bf16.msra.mxu0 %v1633
    %2101 = vmatprep.subr.bf16.mxu0 %v1630
    %2102 = vmatpush1.bf16.msra.mxu0 %v1629
    %2103 = vmatprep.subr.bf16.mxu0 %v1626
    %2104 = vmatpush1.bf16.msra.mxu0 %v1625
    %2105 = vmatprep.subr.bf16.mxu0 %v1622
    %2106 = vmatpush1.bf16.msra.mxu0 %v1621
    %2107 = vmatprep.subr.bf16.mxu0 %v1682
    %2108 = vmatpush2.bf16.msra.mxu0 %v1681
    %2109 = vmatprep.subr.bf16.mxu0 %v1678
    %2110 = vmatpush2.bf16.msra.mxu0 %v1677
    %2111 = vmatprep.subr.bf16.mxu0 %v1674
    %2112 = vmatpush2.bf16.msra.mxu0 %v1673
    %2113 = vmatprep.subr.bf16.mxu0 %v1670
    %2114 = vmatpush2.bf16.msra.mxu0 %v1669
    %2115 = vmatprep.subr.bf16.mxu0 %v1666
    %2116 = vmatpush2.bf16.msra.mxu0 %v1665
    %2117 = vmatprep.subr.bf16.mxu0 %v1662
    %2118 = vmatpush2.bf16.msra.mxu0 %v1661
    %2119 = vmatprep.subr.bf16.mxu0 %v1658
    %2120 = vmatpush2.bf16.msra.mxu0 %v1657
    %2121 = vmatprep.subr.bf16.mxu0 %v1654
    %2122 = vmatpush2.bf16.msra.mxu0 %v1653
    %2123 = vmatprep.mubr.bf16.mxu0 %v444
    %2124 = vmatmul.mubr.bf16.gmra.mxu0 %v443
    %v2125 = vpop.f32.mrf.mxu0
    %v2126 = vadd.f32 %v2083, %v2125
    %v2127 = vpop.f32.mrf.mxu0
    %v2128 = vadd.f32 %v2085, %v2127
    %v2129 = vpop.f32.mrf.mxu0
    %v2130 = vadd.f32 %v2087, %v2129
    %v2131 = vpop.f32.mrf.mxu0
    %v2132 = vadd.f32 %v2089, %v2131
    %2133 = vdwg.mxu0
    %2134 = vmatprep.subr.bf16.mxu0 %v1714
    %2135 = vmatpush1.bf16.msra.mxu0 %v1713
    %2136 = vmatprep.subr.bf16.mxu0 %v1710
    %2137 = vmatpush1.bf16.msra.mxu0 %v1709
    %2138 = vmatprep.subr.bf16.mxu0 %v1706
    %2139 = vmatpush1.bf16.msra.mxu0 %v1705
    %2140 = vmatprep.subr.bf16.mxu0 %v1702
    %2141 = vmatpush1.bf16.msra.mxu0 %v1701
    %2142 = vmatprep.subr.bf16.mxu0 %v1698
    %2143 = vmatpush1.bf16.msra.mxu0 %v1697
    %2144 = vmatprep.subr.bf16.mxu0 %v1694
    %2145 = vmatpush1.bf16.msra.mxu0 %v1693
    %2146 = vmatprep.subr.bf16.mxu0 %v1690
    %2147 = vmatpush1.bf16.msra.mxu0 %v1689
    %2148 = vmatprep.subr.bf16.mxu0 %v1686
    %2149 = vmatpush1.bf16.msra.mxu0 %v1685
    %2150 = vmatprep.subr.bf16.mxu0 %v1746
    %2151 = vmatpush2.bf16.msra.mxu0 %v1745
    %2152 = vmatprep.subr.bf16.mxu0 %v1742
    %2153 = vmatpush2.bf16.msra.mxu0 %v1741
    %2154 = vmatprep.subr.bf16.mxu0 %v1738
    %2155 = vmatpush2.bf16.msra.mxu0 %v1737
    %2156 = vmatprep.subr.bf16.mxu0 %v1734
    %2157 = vmatpush2.bf16.msra.mxu0 %v1733
    %2158 = vmatprep.subr.bf16.mxu0 %v1730
    %2159 = vmatpush2.bf16.msra.mxu0 %v1729
    %2160 = vmatprep.subr.bf16.mxu0 %v1726
    %2161 = vmatpush2.bf16.msra.mxu0 %v1725
    %2162 = vmatprep.subr.bf16.mxu0 %v1722
    %2163 = vmatpush2.bf16.msra.mxu0 %v1721
    %2164 = vmatprep.subr.bf16.mxu0 %v1718
    %2165 = vmatpush2.bf16.msra.mxu0 %v1717
    %2166 = vmatprep.mubr.bf16.mxu0 %v446
    %2167 = vmatmul.mubr.bf16.gmra.mxu0 %v445
    %v2168 = vpop.f32.mrf.mxu0
    %v2169 = vadd.f32 %v2126, %v2168
    %v2170 = vpop.f32.mrf.mxu0
    %v2171 = vadd.f32 %v2128, %v2170
    %v2172 = vpop.f32.mrf.mxu0
    %v2173 = vadd.f32 %v2130, %v2172
    %v2174 = vpop.f32.mrf.mxu0
    %v2175 = vadd.f32 %v2132, %v2174
    %2176 = vdwg.mxu0
    %2177 = vmatprep.subr.bf16.mxu0 %v1524
    %2178 = vmatpush1.bf16.msra.mxu0 %v1523
    %2179 = vmatprep.subr.bf16.mxu0 %v1520
    %2180 = vmatpush1.bf16.msra.mxu0 %v1519
    %2181 = vmatprep.subr.bf16.mxu0 %v1516
    %2182 = vmatpush1.bf16.msra.mxu0 %v1515
    %2183 = vmatprep.subr.bf16.mxu0 %v1512
    %2184 = vmatpush1.bf16.msra.mxu0 %v1511
    %2185 = vmatprep.subr.bf16.mxu0 %v1508
    %2186 = vmatpush1.bf16.msra.mxu0 %v1507
    %2187 = vmatprep.subr.bf16.mxu0 %v1504
    %2188 = vmatpush1.bf16.msra.mxu0 %v1503
    %2189 = vmatprep.subr.bf16.mxu0 %v1500
    %2190 = vmatpush1.bf16.msra.mxu0 %v1499
    %2191 = vmatprep.subr.bf16.mxu0 %v1496
    %2192 = vmatpush1.bf16.msra.mxu0 %v1495
    %2193 = vmatprep.subr.bf16.mxu0 %v1556
    %2194 = vmatpush2.bf16.msra.mxu0 %v1555
    %2195 = vmatprep.subr.bf16.mxu0 %v1552
    %2196 = vmatpush2.bf16.msra.mxu0 %v1551
    %2197 = vmatprep.subr.bf16.mxu0 %v1548
    %2198 = vmatpush2.bf16.msra.mxu0 %v1547
    %2199 = vmatprep.subr.bf16.mxu0 %v1544
    %2200 = vmatpush2.bf16.msra.mxu0 %v1543
    %2201 = vmatprep.subr.bf16.mxu0 %v1540
    %2202 = vmatpush2.bf16.msra.mxu0 %v1539
    %2203 = vmatprep.subr.bf16.mxu0 %v1536
    %2204 = vmatpush2.bf16.msra.mxu0 %v1535
    %2205 = vmatprep.subr.bf16.mxu0 %v1532
    %2206 = vmatpush2.bf16.msra.mxu0 %v1531
    %2207 = vmatprep.subr.bf16.mxu0 %v1528
    %2208 = vmatpush2.bf16.msra.mxu0 %v1527
    %2209 = vmatprep.mubr.bf16.mxu0 %v440
    %2210 = vmatmul.mubr.bf16.gmra.mxu0 %v439
    %v2211 = vpop.f32.mrf.mxu0
    %v2212 = vadd.f32 %v716, %v2211
    %v2213 = vpop.f32.mrf.mxu0
    %v2214 = vadd.f32 %v720, %v2213
    %v2215 = vpop.f32.mrf.mxu0
    %v2216 = vadd.f32 %v716, %v2215
    %v2217 = vpop.f32.mrf.mxu0
    %v2218 = vadd.f32 %v720, %v2217
    %2219 = vdwg.mxu0
    %2220 = vmatprep.subr.bf16.mxu0 %v1588
    %2221 = vmatpush1.bf16.msra.mxu0 %v1587
    %2222 = vmatprep.subr.bf16.mxu0 %v1584
    %2223 = vmatpush1.bf16.msra.mxu0 %v1583
    %2224 = vmatprep.subr.bf16.mxu0 %v1580
    %2225 = vmatpush1.bf16.msra.mxu0 %v1579
    %2226 = vmatprep.subr.bf16.mxu0 %v1576
    %2227 = vmatpush1.bf16.msra.mxu0 %v1575
    %2228 = vmatprep.subr.bf16.mxu0 %v1572
    %2229 = vmatpush1.bf16.msra.mxu0 %v1571
    %2230 = vmatprep.subr.bf16.mxu0 %v1568
    %2231 = vmatpush1.bf16.msra.mxu0 %v1567
    %2232 = vmatprep.subr.bf16.mxu0 %v1564
    %2233 = vmatpush1.bf16.msra.mxu0 %v1563
    %2234 = vmatprep.subr.bf16.mxu0 %v1560
    %2235 = vmatpush1.bf16.msra.mxu0 %v1559
    %2236 = vmatprep.subr.bf16.mxu0 %v1620
    %2237 = vmatpush2.bf16.msra.mxu0 %v1619
    %2238 = vmatprep.subr.bf16.mxu0 %v1616
    %2239 = vmatpush2.bf16.msra.mxu0 %v1615
    %2240 = vmatprep.subr.bf16.mxu0 %v1612
    %2241 = vmatpush2.bf16.msra.mxu0 %v1611
    %2242 = vmatprep.subr.bf16.mxu0 %v1608
    %2243 = vmatpush2.bf16.msra.mxu0 %v1607
    %2244 = vmatprep.subr.bf16.mxu0 %v1604
    %2245 = vmatpush2.bf16.msra.mxu0 %v1603
    %2246 = vmatprep.subr.bf16.mxu0 %v1600
    %2247 = vmatpush2.bf16.msra.mxu0 %v1599
    %2248 = vmatprep.subr.bf16.mxu0 %v1596
    %2249 = vmatpush2.bf16.msra.mxu0 %v1595
    %2250 = vmatprep.subr.bf16.mxu0 %v1592
    %2251 = vmatpush2.bf16.msra.mxu0 %v1591
    %2252 = vmatprep.mubr.bf16.mxu0 %v442
    %2253 = vmatmul.mubr.bf16.gmra.mxu0 %v441
    %v2254 = vpop.f32.mrf.mxu0
    %v2255 = vadd.f32 %v2212, %v2254
    %v2256 = vpop.f32.mrf.mxu0
    %v2257 = vadd.f32 %v2214, %v2256
    %v2258 = vpop.f32.mrf.mxu0
    %v2259 = vadd.f32 %v2216, %v2258
    %v2260 = vpop.f32.mrf.mxu0
    %v2261 = vadd.f32 %v2218, %v2260
    %2262 = vdwg.mxu0
    %2263 = vmatprep.subr.bf16.mxu0 %v1652
    %2264 = vmatpush1.bf16.msra.mxu0 %v1651
    %2265 = vmatprep.subr.bf16.mxu0 %v1648
    %2266 = vmatpush1.bf16.msra.mxu0 %v1647
    %2267 = vmatprep.subr.bf16.mxu0 %v1644
    %2268 = vmatpush1.bf16.msra.mxu0 %v1643
    %2269 = vmatprep.subr.bf16.mxu0 %v1640
    %2270 = vmatpush1.bf16.msra.mxu0 %v1639
    %2271 = vmatprep.subr.bf16.mxu0 %v1636
    %2272 = vmatpush1.bf16.msra.mxu0 %v1635
    %2273 = vmatprep.subr.bf16.mxu0 %v1632
    %2274 = vmatpush1.bf16.msra.mxu0 %v1631
    %2275 = vmatprep.subr.bf16.mxu0 %v1628
    %2276 = vmatpush1.bf16.msra.mxu0 %v1627
    %2277 = vmatprep.subr.bf16.mxu0 %v1624
    %2278 = vmatpush1.bf16.msra.mxu0 %v1623
    %2279 = vmatprep.subr.bf16.mxu0 %v1684
    %2280 = vmatpush2.bf16.msra.mxu0 %v1683
    %2281 = vmatprep.subr.bf16.mxu0 %v1680
    %2282 = vmatpush2.bf16.msra.mxu0 %v1679
    %2283 = vmatprep.subr.bf16.mxu0 %v1676
    %2284 = vmatpush2.bf16.msra.mxu0 %v1675
    %2285 = vmatprep.subr.bf16.mxu0 %v1672
    %2286 = vmatpush2.bf16.msra.mxu0 %v1671
    %2287 = vmatprep.subr.bf16.mxu0 %v1668
    %2288 = vmatpush2.bf16.msra.mxu0 %v1667
    %2289 = vmatprep.subr.bf16.mxu0 %v1664
    %2290 = vmatpush2.bf16.msra.mxu0 %v1663
    %2291 = vmatprep.subr.bf16.mxu0 %v1660
    %2292 = vmatpush2.bf16.msra.mxu0 %v1659
    %2293 = vmatprep.subr.bf16.mxu0 %v1656
    %2294 = vmatpush2.bf16.msra.mxu0 %v1655
    %2295 = vmatprep.mubr.bf16.mxu0 %v444
    %2296 = vmatmul.mubr.bf16.gmra.mxu0 %v443
    %v2297 = vpop.f32.mrf.mxu0
    %v2298 = vadd.f32 %v2255, %v2297
    %v2299 = vpop.f32.mrf.mxu0
    %v2300 = vadd.f32 %v2257, %v2299
    %v2301 = vpop.f32.mrf.mxu0
    %v2302 = vadd.f32 %v2259, %v2301
    %v2303 = vpop.f32.mrf.mxu0
    %v2304 = vadd.f32 %v2261, %v2303
    %2305 = vdwg.mxu0
    %2306 = vmatprep.subr.bf16.mxu0 %v1716
    %2307 = vmatpush1.bf16.msra.mxu0 %v1715
    %2308 = vmatprep.subr.bf16.mxu0 %v1712
    %2309 = vmatpush1.bf16.msra.mxu0 %v1711
    %2310 = vmatprep.subr.bf16.mxu0 %v1708
    %2311 = vmatpush1.bf16.msra.mxu0 %v1707
    %2312 = vmatprep.subr.bf16.mxu0 %v1704
    %2313 = vmatpush1.bf16.msra.mxu0 %v1703
    %2314 = vmatprep.subr.bf16.mxu0 %v1700
    %2315 = vmatpush1.bf16.msra.mxu0 %v1699
    %2316 = vmatprep.subr.bf16.mxu0 %v1696
    %2317 = vmatpush1.bf16.msra.mxu0 %v1695
    %2318 = vmatprep.subr.bf16.mxu0 %v1692
    %2319 = vmatpush1.bf16.msra.mxu0 %v1691
    %2320 = vmatprep.subr.bf16.mxu0 %v1688
    %2321 = vmatpush1.bf16.msra.mxu0 %v1687
    %2322 = vmatprep.subr.bf16.mxu0 %v1748
    %2323 = vmatpush2.bf16.msra.mxu0 %v1747
    %2324 = vmatprep.subr.bf16.mxu0 %v1744
    %2325 = vmatpush2.bf16.msra.mxu0 %v1743
    %2326 = vmatprep.subr.bf16.mxu0 %v1740
    %2327 = vmatpush2.bf16.msra.mxu0 %v1739
    %2328 = vmatprep.subr.bf16.mxu0 %v1736
    %2329 = vmatpush2.bf16.msra.mxu0 %v1735
    %2330 = vmatprep.subr.bf16.mxu0 %v1732
    %2331 = vmatpush2.bf16.msra.mxu0 %v1731
    %2332 = vmatprep.subr.bf16.mxu0 %v1728
    %2333 = vmatpush2.bf16.msra.mxu0 %v1727
    %2334 = vmatprep.subr.bf16.mxu0 %v1724
    %2335 = vmatpush2.bf16.msra.mxu0 %v1723
    %2336 = vmatprep.subr.bf16.mxu0 %v1720
    %2337 = vmatpush2.bf16.msra.mxu0 %v1719
    %2338 = vmatprep.mubr.bf16.mxu0 %v446
    %2339 = vmatmul.mubr.bf16.gmra.mxu0 %v445
    %v2340 = vpop.f32.mrf.mxu0
    %v2341 = vadd.f32 %v2298, %v2340
    %v2342 = vpop.f32.mrf.mxu0
    %v2343 = vadd.f32 %v2300, %v2342
    %v2344 = vpop.f32.mrf.mxu0
    %v2345 = vadd.f32 %v2302, %v2344
    %v2346 = vpop.f32.mrf.mxu0
    %v2347 = vadd.f32 %v2304, %v2346
    %2348 = vdwg.mxu0
    %v2349 = vmax.f32 %v2169, 0.0
    %v2350 = vmax.f32 %v2171, 0.0
    %v2351 = vmax.f32 %v2341, 0.0
    %v2352 = vmax.f32 %v2343, 0.0
    %v2353 = vmax.f32 %v2173, 0.0
    %v2354 = vmax.f32 %v2175, 0.0
    %v2355 = vmax.f32 %v2345, 0.0
    %v2356 = vmax.f32 %v2347, 0.0
    %v2357 = vpack.c.bf16 %v2353, %v2349
    %v2358 = vpack.c.bf16 %v2354, %v2350
    %v2359 = vpack.c.bf16 %v2355, %v2351
    %v2360 = vpack.c.bf16 %v2356, %v2352
    %v2361 = vld [vmem:[#allocation7] sm:$0xff]
    %v2362 = vld [vmem:[#allocation7 + $0x8] sm:$0xff]
    %v2363 = vld [vmem:[#allocation7 + $0x10] sm:$0xff]
    %v2364 = vld [vmem:[#allocation7 + $0x18] sm:$0xff]
    %v2365 = vld [vmem:[#allocation7 + $0x20] sm:$0xff]
    %v2366 = vld [vmem:[#allocation7 + $0x28] sm:$0xff]
    %v2367 = vld [vmem:[#allocation7 + $0x30] sm:$0xff]
    %v2368 = vld [vmem:[#allocation7 + $0x38] sm:$0xff]
    %v2369 = vld [vmem:[#allocation7 + $0x40] sm:$0xff]
    %v2370 = vld [vmem:[#allocation7 + $0x48] sm:$0xff]
    %v2371 = vld [vmem:[#allocation7 + $0x50] sm:$0xff]
    %v2372 = vld [vmem:[#allocation7 + $0x58] sm:$0xff]
    %v2373 = vld [vmem:[#allocation7 + $0x60] sm:$0xff]
    %v2374 = vld [vmem:[#allocation7 + $0x68] sm:$0xff]
    %v2375 = vld [vmem:[#allocation7 + $0x70] sm:$0xff]
    %v2376 = vld [vmem:[#allocation7 + $0x78] sm:$0xff]
    %v2377 = vld [vmem:[#allocation7 + $0x80] sm:$0xff]
    %v2378 = vld [vmem:[#allocation7 + $0x88] sm:$0xff]
    %v2379 = vld [vmem:[#allocation7 + $0x90] sm:$0xff]
    %v2380 = vld [vmem:[#allocation7 + $0x98] sm:$0xff]
    %v2381 = vld [vmem:[#allocation7 + $0xa0] sm:$0xff]
    %v2382 = vld [vmem:[#allocation7 + $0xa8] sm:$0xff]
    %v2383 = vld [vmem:[#allocation7 + $0xb0] sm:$0xff]
    %v2384 = vld [vmem:[#allocation7 + $0xb8] sm:$0xff]
    %v2385 = vld [vmem:[#allocation7 + $0xc0] sm:$0xff]
    %v2386 = vld [vmem:[#allocation7 + $0xc8] sm:$0xff]
    %v2387 = vld [vmem:[#allocation7 + $0xd0] sm:$0xff]
    %v2388 = vld [vmem:[#allocation7 + $0xd8] sm:$0xff]
    %v2389 = vld [vmem:[#allocation7 + $0xe0] sm:$0xff]
    %v2390 = vld [vmem:[#allocation7 + $0xe8] sm:$0xff]
    %v2391 = vld [vmem:[#allocation7 + $0xf0] sm:$0xff]
    %v2392 = vld [vmem:[#allocation7 + $0xf8] sm:$0xff]
    %v2393 = vld [vmem:[#allocation7 + $0x100] sm:$0xff]
    %v2394 = vld [vmem:[#allocation7 + $0x108] sm:$0xff]
    %v2395 = vld [vmem:[#allocation7 + $0x110] sm:$0xff]
    %v2396 = vld [vmem:[#allocation7 + $0x118] sm:$0xff]
    %v2397 = vld [vmem:[#allocation7 + $0x120] sm:$0xff]
    %v2398 = vld [vmem:[#allocation7 + $0x128] sm:$0xff]
    %v2399 = vld [vmem:[#allocation7 + $0x130] sm:$0xff]
    %v2400 = vld [vmem:[#allocation7 + $0x138] sm:$0xff]
    %v2401 = vld [vmem:[#allocation7 + $0x140] sm:$0xff]
    %v2402 = vld [vmem:[#allocation7 + $0x148] sm:$0xff]
    %v2403 = vld [vmem:[#allocation7 + $0x150] sm:$0xff]
    %v2404 = vld [vmem:[#allocation7 + $0x158] sm:$0xff]
    %v2405 = vld [vmem:[#allocation7 + $0x160] sm:$0xff]
    %v2406 = vld [vmem:[#allocation7 + $0x168] sm:$0xff]
    %v2407 = vld [vmem:[#allocation7 + $0x170] sm:$0xff]
    %v2408 = vld [vmem:[#allocation7 + $0x178] sm:$0xff]
    %v2409 = vld [vmem:[#allocation7 + $0x180] sm:$0xff]
    %v2410 = vld [vmem:[#allocation7 + $0x188] sm:$0xff]
    %v2411 = vld [vmem:[#allocation7 + $0x190] sm:$0xff]
    %v2412 = vld [vmem:[#allocation7 + $0x198] sm:$0xff]
    %v2413 = vld [vmem:[#allocation7 + $0x1a0] sm:$0xff]
    %v2414 = vld [vmem:[#allocation7 + $0x1a8] sm:$0xff]
    %v2415 = vld [vmem:[#allocation7 + $0x1b0] sm:$0xff]
    %v2416 = vld [vmem:[#allocation7 + $0x1b8] sm:$0xff]
    %v2417 = vld [vmem:[#allocation7 + $0x1c0] sm:$0xff]
    %v2418 = vld [vmem:[#allocation7 + $0x1c8] sm:$0xff]
    %v2419 = vld [vmem:[#allocation7 + $0x1d0] sm:$0xff]
    %v2420 = vld [vmem:[#allocation7 + $0x1d8] sm:$0xff]
    %v2421 = vld [vmem:[#allocation7 + $0x1e0] sm:$0xff]
    %v2422 = vld [vmem:[#allocation7 + $0x1e8] sm:$0xff]
    %v2423 = vld [vmem:[#allocation7 + $0x1f0] sm:$0xff]
    %v2424 = vld [vmem:[#allocation7 + $0x1f8] sm:$0xff]
    %v2425 = vld [vmem:[%s6] sm:$0x3]
    %v2427 = vlaneseq
    %v2428 = vshrl.u32 %v2427, 7
    %v2429 = vsub.s32 0, %v2428
    %v2430 = vrot.slane %v2425, %v2429
    %v2431 = vlaneseq
    %v2432 = vshrl.u32 %v2431, 7
    %v2433 = vsub.s32 1, %v2432
    %v2434 = vrot.slane %v2425, %v2433
    %v2501 = vunpack.c.l.b16 %v2361
    %v2502 = vunpack.c.h.b16 %v2361
    %v2503 = vunpack.c.l.b16 %v2362
    %v2504 = vunpack.c.h.b16 %v2362
    %v2505 = vunpack.c.l.b16 %v2363
    %v2506 = vunpack.c.h.b16 %v2363
    %v2507 = vunpack.c.l.b16 %v2364
    %v2508 = vunpack.c.h.b16 %v2364
    %v2509 = vunpack.c.l.b16 %v2365
    %v2510 = vunpack.c.h.b16 %v2365
    %v2511 = vunpack.c.l.b16 %v2366
    %v2512 = vunpack.c.h.b16 %v2366
    %v2513 = vunpack.c.l.b16 %v2367
    %v2514 = vunpack.c.h.b16 %v2367
    %v2515 = vunpack.c.l.b16 %v2368
    %v2516 = vunpack.c.h.b16 %v2368
    %v2517 = vunpack.c.l.b16 %v2369
    %v2518 = vunpack.c.h.b16 %v2369
    %v2519 = vunpack.c.l.b16 %v2370
    %v2520 = vunpack.c.h.b16 %v2370
    %v2521 = vunpack.c.l.b16 %v2371
    %v2522 = vunpack.c.h.b16 %v2371
    %v2523 = vunpack.c.l.b16 %v2372
    %v2524 = vunpack.c.h.b16 %v2372
    %v2525 = vunpack.c.l.b16 %v2373
    %v2526 = vunpack.c.h.b16 %v2373
    %v2527 = vunpack.c.l.b16 %v2374
    %v2528 = vunpack.c.h.b16 %v2374
    %v2529 = vunpack.c.l.b16 %v2375
    %v2530 = vunpack.c.h.b16 %v2375
    %v2531 = vunpack.c.l.b16 %v2376
    %v2532 = vunpack.c.h.b16 %v2376
    %v2533 = vunpack.c.l.b16 %v2377
    %v2534 = vunpack.c.h.b16 %v2377
    %v2535 = vunpack.c.l.b16 %v2378
    %v2536 = vunpack.c.h.b16 %v2378
    %v2537 = vunpack.c.l.b16 %v2379
    %v2538 = vunpack.c.h.b16 %v2379
    %v2539 = vunpack.c.l.b16 %v2380
    %v2540 = vunpack.c.h.b16 %v2380
    %v2541 = vunpack.c.l.b16 %v2381
    %v2542 = vunpack.c.h.b16 %v2381
    %v2543 = vunpack.c.l.b16 %v2382
    %v2544 = vunpack.c.h.b16 %v2382
    %v2545 = vunpack.c.l.b16 %v2383
    %v2546 = vunpack.c.h.b16 %v2383
    %v2547 = vunpack.c.l.b16 %v2384
    %v2548 = vunpack.c.h.b16 %v2384
    %v2549 = vunpack.c.l.b16 %v2385
    %v2550 = vunpack.c.h.b16 %v2385
    %v2551 = vunpack.c.l.b16 %v2386
    %v2552 = vunpack.c.h.b16 %v2386
    %v2553 = vunpack.c.l.b16 %v2387
    %v2554 = vunpack.c.h.b16 %v2387
    %v2555 = vunpack.c.l.b16 %v2388
    %v2556 = vunpack.c.h.b16 %v2388
    %v2557 = vunpack.c.l.b16 %v2389
    %v2558 = vunpack.c.h.b16 %v2389
    %v2559 = vunpack.c.l.b16 %v2390
    %v2560 = vunpack.c.h.b16 %v2390
    %v2561 = vunpack.c.l.b16 %v2391
    %v2562 = vunpack.c.h.b16 %v2391
    %v2563 = vunpack.c.l.b16 %v2392
    %v2564 = vunpack.c.h.b16 %v2392
    %v2565 = vunpack.c.l.b16 %v2393
    %v2566 = vunpack.c.h.b16 %v2393
    %v2567 = vunpack.c.l.b16 %v2394
    %v2568 = vunpack.c.h.b16 %v2394
    %v2569 = vunpack.c.l.b16 %v2395
    %v2570 = vunpack.c.h.b16 %v2395
    %v2571 = vunpack.c.l.b16 %v2396
    %v2572 = vunpack.c.h.b16 %v2396
    %v2573 = vunpack.c.l.b16 %v2397
    %v2574 = vunpack.c.h.b16 %v2397
    %v2575 = vunpack.c.l.b16 %v2398
    %v2576 = vunpack.c.h.b16 %v2398
    %v2577 = vunpack.c.l.b16 %v2399
    %v2578 = vunpack.c.h.b16 %v2399
    %v2579 = vunpack.c.l.b16 %v2400
    %v2580 = vunpack.c.h.b16 %v2400
    %v2581 = vunpack.c.l.b16 %v2401
    %v2582 = vunpack.c.h.b16 %v2401
    %v2583 = vunpack.c.l.b16 %v2402
    %v2584 = vunpack.c.h.b16 %v2402
    %v2585 = vunpack.c.l.b16 %v2403
    %v2586 = vunpack.c.h.b16 %v2403
    %v2587 = vunpack.c.l.b16 %v2404
    %v2588 = vunpack.c.h.b16 %v2404
    %v2589 = vunpack.c.l.b16 %v2405
    %v2590 = vunpack.c.h.b16 %v2405
    %v2591 = vunpack.c.l.b16 %v2406
    %v2592 = vunpack.c.h.b16 %v2406
    %v2593 = vunpack.c.l.b16 %v2407
    %v2594 = vunpack.c.h.b16 %v2407
    %v2595 = vunpack.c.l.b16 %v2408
    %v2596 = vunpack.c.h.b16 %v2408
    %v2597 = vunpack.c.l.b16 %v2409
    %v2598 = vunpack.c.h.b16 %v2409
    %v2599 = vunpack.c.l.b16 %v2410
    %v2600 = vunpack.c.h.b16 %v2410
    %v2601 = vunpack.c.l.b16 %v2411
    %v2602 = vunpack.c.h.b16 %v2411
    %v2603 = vunpack.c.l.b16 %v2412
    %v2604 = vunpack.c.h.b16 %v2412
    %v2605 = vunpack.c.l.b16 %v2413
    %v2606 = vunpack.c.h.b16 %v2413
    %v2607 = vunpack.c.l.b16 %v2414
    %v2608 = vunpack.c.h.b16 %v2414
    %v2609 = vunpack.c.l.b16 %v2415
    %v2610 = vunpack.c.h.b16 %v2415
    %v2611 = vunpack.c.l.b16 %v2416
    %v2612 = vunpack.c.h.b16 %v2416
    %v2613 = vunpack.c.l.b16 %v2417
    %v2614 = vunpack.c.h.b16 %v2417
    %v2615 = vunpack.c.l.b16 %v2418
    %v2616 = vunpack.c.h.b16 %v2418
    %v2617 = vunpack.c.l.b16 %v2419
    %v2618 = vunpack.c.h.b16 %v2419
    %v2619 = vunpack.c.l.b16 %v2420
    %v2620 = vunpack.c.h.b16 %v2420
    %v2621 = vunpack.c.l.b16 %v2421
    %v2622 = vunpack.c.h.b16 %v2421
    %v2623 = vunpack.c.l.b16 %v2422
    %v2624 = vunpack.c.h.b16 %v2422
    %v2625 = vunpack.c.l.b16 %v2423
    %v2626 = vunpack.c.h.b16 %v2423
    %v2627 = vunpack.c.l.b16 %v2424
    %v2628 = vunpack.c.h.b16 %v2424
    %v2629 = vpack.c.b16 %v2503, %v2501
    %v2630 = vpack.c.b16 %v2504, %v2502
    %v2631 = vpack.c.b16 %v2507, %v2505
    %v2632 = vpack.c.b16 %v2508, %v2506
    %v2633 = vpack.c.b16 %v2511, %v2509
    %v2634 = vpack.c.b16 %v2512, %v2510
    %v2635 = vpack.c.b16 %v2515, %v2513
    %v2636 = vpack.c.b16 %v2516, %v2514
    %v2637 = vpack.c.b16 %v2519, %v2517
    %v2638 = vpack.c.b16 %v2520, %v2518
    %v2639 = vpack.c.b16 %v2523, %v2521
    %v2640 = vpack.c.b16 %v2524, %v2522
    %v2641 = vpack.c.b16 %v2527, %v2525
    %v2642 = vpack.c.b16 %v2528, %v2526
    %v2643 = vpack.c.b16 %v2531, %v2529
    %v2644 = vpack.c.b16 %v2532, %v2530
    %v2645 = vpack.c.b16 %v2535, %v2533
    %v2646 = vpack.c.b16 %v2536, %v2534
    %v2647 = vpack.c.b16 %v2539, %v2537
    %v2648 = vpack.c.b16 %v2540, %v2538
    %v2649 = vpack.c.b16 %v2543, %v2541
    %v2650 = vpack.c.b16 %v2544, %v2542
    %v2651 = vpack.c.b16 %v2547, %v2545
    %v2652 = vpack.c.b16 %v2548, %v2546
    %v2653 = vpack.c.b16 %v2551, %v2549
    %v2654 = vpack.c.b16 %v2552, %v2550
    %v2655 = vpack.c.b16 %v2555, %v2553
    %v2656 = vpack.c.b16 %v2556, %v2554
    %v2657 = vpack.c.b16 %v2559, %v2557
    %v2658 = vpack.c.b16 %v2560, %v2558
    %v2659 = vpack.c.b16 %v2563, %v2561
    %v2660 = vpack.c.b16 %v2564, %v2562
    %v2661 = vpack.c.b16 %v2567, %v2565
    %v2662 = vpack.c.b16 %v2568, %v2566
    %v2663 = vpack.c.b16 %v2571, %v2569
    %v2664 = vpack.c.b16 %v2572, %v2570
    %v2665 = vpack.c.b16 %v2575, %v2573
    %v2666 = vpack.c.b16 %v2576, %v2574
    %v2667 = vpack.c.b16 %v2579, %v2577
    %v2668 = vpack.c.b16 %v2580, %v2578
    %v2669 = vpack.c.b16 %v2583, %v2581
    %v2670 = vpack.c.b16 %v2584, %v2582
    %v2671 = vpack.c.b16 %v2587, %v2585
    %v2672 = vpack.c.b16 %v2588, %v2586
    %v2673 = vpack.c.b16 %v2591, %v2589
    %v2674 = vpack.c.b16 %v2592, %v2590
    %v2675 = vpack.c.b16 %v2595, %v2593
    %v2676 = vpack.c.b16 %v2596, %v2594
    %v2677 = vpack.c.b16 %v2599, %v2597
    %v2678 = vpack.c.b16 %v2600, %v2598
    %v2679 = vpack.c.b16 %v2603, %v2601
    %v2680 = vpack.c.b16 %v2604, %v2602
    %v2681 = vpack.c.b16 %v2607, %v2605
    %v2682 = vpack.c.b16 %v2608, %v2606
    %v2683 = vpack.c.b16 %v2611, %v2609
    %v2684 = vpack.c.b16 %v2612, %v2610
    %v2685 = vpack.c.b16 %v2615, %v2613
    %v2686 = vpack.c.b16 %v2616, %v2614
    %v2687 = vpack.c.b16 %v2619, %v2617
    %v2688 = vpack.c.b16 %v2620, %v2618
    %v2689 = vpack.c.b16 %v2623, %v2621
    %v2690 = vpack.c.b16 %v2624, %v2622
    %v2691 = vpack.c.b16 %v2627, %v2625
    %v2692 = vpack.c.b16 %v2628, %v2626
    %2757 = vmatprep.subr.bf16.mxu0 %v2644
    %2758 = vmatpush1.bf16.msra.mxu0 %v2643
    %2759 = vmatprep.subr.bf16.mxu0 %v2642
    %2760 = vmatpush1.bf16.msra.mxu0 %v2641
    %2761 = vmatprep.subr.bf16.mxu0 %v2640
    %2762 = vmatpush1.bf16.msra.mxu0 %v2639
    %2763 = vmatprep.subr.bf16.mxu0 %v2638
    %2764 = vmatpush1.bf16.msra.mxu0 %v2637
    %2765 = vmatprep.subr.bf16.mxu0 %v2636
    %2766 = vmatpush1.bf16.msra.mxu0 %v2635
    %2767 = vmatprep.subr.bf16.mxu0 %v2634
    %2768 = vmatpush1.bf16.msra.mxu0 %v2633
    %2769 = vmatprep.subr.bf16.mxu0 %v2632
    %2770 = vmatpush1.bf16.msra.mxu0 %v2631
    %2771 = vmatprep.subr.bf16.mxu0 %v2630
    %2772 = vmatpush1.bf16.msra.mxu0 %v2629
    %2773 = vmatprep.subr.bf16.mxu0 %v2660
    %2774 = vmatpush2.bf16.msra.mxu0 %v2659
    %2775 = vmatprep.subr.bf16.mxu0 %v2658
    %2776 = vmatpush2.bf16.msra.mxu0 %v2657
    %2777 = vmatprep.subr.bf16.mxu0 %v2656
    %2778 = vmatpush2.bf16.msra.mxu0 %v2655
    %2779 = vmatprep.subr.bf16.mxu0 %v2654
    %2780 = vmatpush2.bf16.msra.mxu0 %v2653
    %2781 = vmatprep.subr.bf16.mxu0 %v2652
    %2782 = vmatpush2.bf16.msra.mxu0 %v2651
    %2783 = vmatprep.subr.bf16.mxu0 %v2650
    %2784 = vmatpush2.bf16.msra.mxu0 %v2649
    %2785 = vmatprep.subr.bf16.mxu0 %v2648
    %2786 = vmatpush2.bf16.msra.mxu0 %v2647
    %2787 = vmatprep.subr.bf16.mxu0 %v2646
    %2788 = vmatpush2.bf16.msra.mxu0 %v2645
    %2789 = vmatprep.mubr.bf16.mxu0 %v2358
    %2790 = vmatmul.mubr.bf16.gmra.mxu0 %v2357
    %v2791 = vpop.f32.mrf.mxu0
    %v2792 = vadd.f32 %v2430, %v2791
    %v2793 = vpop.f32.mrf.mxu0
    %v2794 = vadd.f32 %v2434, %v2793
    %v2795 = vpop.f32.mrf.mxu0
    %v2796 = vadd.f32 %v2430, %v2795
    %v2797 = vpop.f32.mrf.mxu0
    %v2798 = vadd.f32 %v2434, %v2797
    %2799 = vdwg.mxu0
    %2800 = vmatprep.subr.bf16.mxu0 %v2676
    %2801 = vmatpush1.bf16.msra.mxu0 %v2675
    %2802 = vmatprep.subr.bf16.mxu0 %v2674
    %2803 = vmatpush1.bf16.msra.mxu0 %v2673
    %2804 = vmatprep.subr.bf16.mxu0 %v2672
    %2805 = vmatpush1.bf16.msra.mxu0 %v2671
    %2806 = vmatprep.subr.bf16.mxu0 %v2670
    %2807 = vmatpush1.bf16.msra.mxu0 %v2669
    %2808 = vmatprep.subr.bf16.mxu0 %v2668
    %2809 = vmatpush1.bf16.msra.mxu0 %v2667
    %2810 = vmatprep.subr.bf16.mxu0 %v2666
    %2811 = vmatpush1.bf16.msra.mxu0 %v2665
    %2812 = vmatprep.subr.bf16.mxu0 %v2664
    %2813 = vmatpush1.bf16.msra.mxu0 %v2663
    %2814 = vmatprep.subr.bf16.mxu0 %v2662
    %2815 = vmatpush1.bf16.msra.mxu0 %v2661
    %2816 = vmatprep.subr.bf16.mxu0 %v2692
    %2817 = vmatpush2.bf16.msra.mxu0 %v2691
    %2818 = vmatprep.subr.bf16.mxu0 %v2690
    %2819 = vmatpush2.bf16.msra.mxu0 %v2689
    %2820 = vmatprep.subr.bf16.mxu0 %v2688
    %2821 = vmatpush2.bf16.msra.mxu0 %v2687
    %2822 = vmatprep.subr.bf16.mxu0 %v2686
    %2823 = vmatpush2.bf16.msra.mxu0 %v2685
    %2824 = vmatprep.subr.bf16.mxu0 %v2684
    %2825 = vmatpush2.bf16.msra.mxu0 %v2683
    %2826 = vmatprep.subr.bf16.mxu0 %v2682
    %2827 = vmatpush2.bf16.msra.mxu0 %v2681
    %2828 = vmatprep.subr.bf16.mxu0 %v2680
    %2829 = vmatpush2.bf16.msra.mxu0 %v2679
    %2830 = vmatprep.subr.bf16.mxu0 %v2678
    %2831 = vmatpush2.bf16.msra.mxu0 %v2677
    %2832 = vmatprep.mubr.bf16.mxu0 %v2360
    %2833 = vmatmul.mubr.bf16.gmra.mxu0 %v2359
    %v2834 = vpop.f32.mrf.mxu0
    %v2835 = vadd.f32 %v2792, %v2834
    %v2836 = vpop.f32.mrf.mxu0
    %v2837 = vadd.f32 %v2794, %v2836
    %v2838 = vpop.f32.mrf.mxu0
    %v2839 = vadd.f32 %v2796, %v2838
    %v2840 = vpop.f32.mrf.mxu0
    %v2841 = vadd.f32 %v2798, %v2840
    %2842 = vdwg.mxu0
    %v2843 = vmax.f32 %v2835, 0.0
    %v2844 = vmax.f32 %v2837, 0.0
    %v2845 = vmax.f32 %v2839, 0.0
    %v2846 = vmax.f32 %v2841, 0.0
    %v2847 = vpack.c.bf16 %v2845, %v2843
    %v2848 = vpack.c.bf16 %v2846, %v2844
    %v2849 = vld [vmem:[#allocation8] sm:$0xf]
    %v2850 = vld [vmem:[#allocation8 + $0x4] sm:$0xf]
    %v2851 = vld [vmem:[#allocation8 + $0x8] sm:$0xf]
    %v2852 = vld [vmem:[#allocation8 + $0xc] sm:$0xf]
    %v2853 = vld [vmem:[#allocation8 + $0x10] sm:$0xf]
    %v2854 = vld [vmem:[#allocation8 + $0x14] sm:$0xf]
    %v2855 = vld [vmem:[#allocation8 + $0x18] sm:$0xf]
    %v2856 = vld [vmem:[#allocation8 + $0x1c] sm:$0xf]
    %v2857 = vld [vmem:[#allocation8 + $0x20] sm:$0xf]
    %v2858 = vld [vmem:[#allocation8 + $0x24] sm:$0xf]
    %v2859 = vld [vmem:[#allocation8 + $0x28] sm:$0xf]
    %v2860 = vld [vmem:[#allocation8 + $0x2c] sm:$0xf]
    %v2861 = vld [vmem:[#allocation8 + $0x30] sm:$0xf]
    %v2862 = vld [vmem:[#allocation8 + $0x34] sm:$0xf]
    %v2863 = vld [vmem:[#allocation8 + $0x38] sm:$0xf]
    %v2864 = vld [vmem:[#allocation8 + $0x3c] sm:$0xf]
    %v2865 = vld [vmem:[#allocation8 + $0x40] sm:$0xf]
    %v2866 = vld [vmem:[#allocation8 + $0x44] sm:$0xf]
    %v2867 = vld [vmem:[#allocation8 + $0x48] sm:$0xf]
    %v2868 = vld [vmem:[#allocation8 + $0x4c] sm:$0xf]
    %v2869 = vld [vmem:[#allocation8 + $0x50] sm:$0xf]
    %v2870 = vld [vmem:[#allocation8 + $0x54] sm:$0xf]
    %v2871 = vld [vmem:[#allocation8 + $0x58] sm:$0xf]
    %v2872 = vld [vmem:[#allocation8 + $0x5c] sm:$0xf]
    %v2873 = vld [vmem:[#allocation8 + $0x60] sm:$0xf]
    %v2874 = vld [vmem:[#allocation8 + $0x64] sm:$0xf]
    %v2875 = vld [vmem:[#allocation8 + $0x68] sm:$0xf]
    %v2876 = vld [vmem:[#allocation8 + $0x6c] sm:$0xf]
    %v2877 = vld [vmem:[#allocation8 + $0x70] sm:$0xf]
    %v2878 = vld [vmem:[#allocation8 + $0x74] sm:$0xf]
    %v2879 = vld [vmem:[#allocation8 + $0x78] sm:$0xf]
    %v2880 = vld [vmem:[#allocation8 + $0x7c] sm:$0xf]
    %v2881 = vld [vmem:[%s8] sm:$0x1]
    %v2883 = vlaneseq
    %v2884 = vshrl.u32 %v2883, 7
    %v2885 = vsub.s32 0, %v2884
    %v2886 = vrot.slane %v2881, %v2885
    %v2920 = vunpack.c.l.b16 %v2849
    %v2921 = vunpack.c.l.b16 %v2850
    %v2922 = vunpack.c.l.b16 %v2851
    %v2923 = vunpack.c.l.b16 %v2852
    %v2924 = vunpack.c.l.b16 %v2853
    %v2925 = vunpack.c.l.b16 %v2854
    %v2926 = vunpack.c.l.b16 %v2855
    %v2927 = vunpack.c.l.b16 %v2856
    %v2928 = vunpack.c.l.b16 %v2857
    %v2929 = vunpack.c.l.b16 %v2858
    %v2930 = vunpack.c.l.b16 %v2859
    %v2931 = vunpack.c.l.b16 %v2860
    %v2932 = vunpack.c.l.b16 %v2861
    %v2933 = vunpack.c.l.b16 %v2862
    %v2934 = vunpack.c.l.b16 %v2863
    %v2935 = vunpack.c.l.b16 %v2864
    %v2936 = vunpack.c.l.b16 %v2865
    %v2937 = vunpack.c.l.b16 %v2866
    %v2938 = vunpack.c.l.b16 %v2867
    %v2939 = vunpack.c.l.b16 %v2868
    %v2940 = vunpack.c.l.b16 %v2869
    %v2941 = vunpack.c.l.b16 %v2870
    %v2942 = vunpack.c.l.b16 %v2871
    %v2943 = vunpack.c.l.b16 %v2872
    %v2944 = vunpack.c.l.b16 %v2873
    %v2945 = vunpack.c.l.b16 %v2874
    %v2946 = vunpack.c.l.b16 %v2875
    %v2947 = vunpack.c.l.b16 %v2876
    %v2948 = vunpack.c.l.b16 %v2877
    %v2949 = vunpack.c.l.b16 %v2878
    %v2950 = vunpack.c.l.b16 %v2879
    %v2951 = vunpack.c.l.b16 %v2880
    %v2952 = vpack.c.b16 %v2921, %v2920
    %v2953 = vpack.c.b16 %v2923, %v2922
    %v2954 = vpack.c.b16 %v2925, %v2924
    %v2955 = vpack.c.b16 %v2927, %v2926
    %v2956 = vpack.c.b16 %v2929, %v2928
    %v2957 = vpack.c.b16 %v2931, %v2930
    %v2958 = vpack.c.b16 %v2933, %v2932
    %v2959 = vpack.c.b16 %v2935, %v2934
    %v2960 = vpack.c.b16 %v2937, %v2936
    %v2961 = vpack.c.b16 %v2939, %v2938
    %v2962 = vpack.c.b16 %v2941, %v2940
    %v2963 = vpack.c.b16 %v2943, %v2942
    %v2964 = vpack.c.b16 %v2945, %v2944
    %v2965 = vpack.c.b16 %v2947, %v2946
    %v2966 = vpack.c.b16 %v2949, %v2948
    %v2967 = vpack.c.b16 %v2951, %v2950
    %2984 = vmatprep.subr.bf16.mxu0 0
    %2985 = vmatpush1.bf16.msra.mxu0 %v2959
    %2986 = vmatprep.subr.bf16.mxu0 0
    %2987 = vmatpush1.bf16.msra.mxu0 %v2958
    %2988 = vmatprep.subr.bf16.mxu0 0
    %2989 = vmatpush1.bf16.msra.mxu0 %v2957
    %2990 = vmatprep.subr.bf16.mxu0 0
    %2991 = vmatpush1.bf16.msra.mxu0 %v2956
    %2992 = vmatprep.subr.bf16.mxu0 0
    %2993 = vmatpush1.bf16.msra.mxu0 %v2955
    %2994 = vmatprep.subr.bf16.mxu0 0
    %2995 = vmatpush1.bf16.msra.mxu0 %v2954
    %2996 = vmatprep.subr.bf16.mxu0 0
    %2997 = vmatpush1.bf16.msra.mxu0 %v2953
    %2998 = vmatprep.subr.bf16.mxu0 0
    %2999 = vmatpush1.bf16.msra.mxu0 %v2952
    %3000 = vmatprep.subr.bf16.mxu0 0
    %3001 = vmatpush2.bf16.msra.mxu0 %v2967
    %3002 = vmatprep.subr.bf16.mxu0 0
    %3003 = vmatpush2.bf16.msra.mxu0 %v2966
    %3004 = vmatprep.subr.bf16.mxu0 0
    %3005 = vmatpush2.bf16.msra.mxu0 %v2965
    %3006 = vmatprep.subr.bf16.mxu0 0
    %3007 = vmatpush2.bf16.msra.mxu0 %v2964
    %3008 = vmatprep.subr.bf16.mxu0 0
    %3009 = vmatpush2.bf16.msra.mxu0 %v2963
    %3010 = vmatprep.subr.bf16.mxu0 0
    %3011 = vmatpush2.bf16.msra.mxu0 %v2962
    %3012 = vmatprep.subr.bf16.mxu0 0
    %3013 = vmatpush2.bf16.msra.mxu0 %v2961
    %3014 = vmatprep.subr.bf16.mxu0 0
    %3015 = vmatpush2.bf16.msra.mxu0 %v2960
    %3016 = vmatprep.mubr.bf16.mxu0 %v2848
    %3017 = vmatmul.mubr.bf16.gmra.mxu0 %v2847
    %v3018 = vpop.f32.mrf.mxu0
    %v3019 = vadd.f32 %v2886, %v3018
    %v3020 = vpop.f32.mrf.mxu0
    %v3021 = vpop.f32.mrf.mxu0
    %v3022 = vadd.f32 %v2886, %v3021
    %v3023 = vpop.f32.mrf.mxu0
    %3024 = vdwg.mxu0
    %v3025 = vmax.f32 %v3019, 0.0
    %v3026 = vmax.f32 %v3022, 0.0
    %v3027 = vpack.c.bf16 %v3026, %v3025
    %v3028 = vld [vmem:[%s9] sm:$0xf]
    %v3029 = vld [vmem:[%s9 + $0x4] sm:$0xf]
    %v3030 = vld [vmem:[%s9 + $0x8] sm:$0xf]
    %v3031 = vld [vmem:[%s9 + $0xc] sm:$0xf]
    %v3032 = vld [vmem:[%s9 + $0x10] sm:$0xf]
    %v3033 = vld [vmem:[%s9 + $0x14] sm:$0xf]
    %v3034 = vld [vmem:[%s9 + $0x18] sm:$0xf]
    %v3035 = vld [vmem:[%s9 + $0x1c] sm:$0xf]
    %v3036 = vld [vmem:[%s9 + $0x20] sm:$0xf]
    %v3037 = vld [vmem:[%s9 + $0x24] sm:$0xf]
    %v3038 = vld [vmem:[%s9 + $0x28] sm:$0xf]
    %v3039 = vld [vmem:[%s9 + $0x2c] sm:$0xf]
    %v3040 = vld [vmem:[%s9 + $0x30] sm:$0xf]
    %v3041 = vld [vmem:[%s9 + $0x34] sm:$0xf]
    %v3042 = vld [vmem:[%s9 + $0x38] sm:$0xf]
    %v3043 = vld [vmem:[%s9 + $0x3c] sm:$0xf]
    %v3044 = vld [vmem:[%s10] sm:$0x1]
    %v3046 = vlaneseq
    %v3047 = vshrl.u32 %v3046, 7
    %v3048 = vsub.s32 0, %v3047
    %v3049 = vrot.slane %v3044, %v3048
    %v3067 = vunpack.c.l.b16 %v3028
    %v3068 = vunpack.c.l.b16 %v3029
    %v3069 = vunpack.c.l.b16 %v3030
    %v3070 = vunpack.c.l.b16 %v3031
    %v3071 = vunpack.c.l.b16 %v3032
    %v3072 = vunpack.c.l.b16 %v3033
    %v3073 = vunpack.c.l.b16 %v3034
    %v3074 = vunpack.c.l.b16 %v3035
    %v3075 = vunpack.c.l.b16 %v3036
    %v3076 = vunpack.c.l.b16 %v3037
    %v3077 = vunpack.c.l.b16 %v3038
    %v3078 = vunpack.c.l.b16 %v3039
    %v3079 = vunpack.c.l.b16 %v3040
    %v3080 = vunpack.c.l.b16 %v3041
    %v3081 = vunpack.c.l.b16 %v3042
    %v3082 = vunpack.c.l.b16 %v3043
    %v3083 = vpack.c.b16 %v3068, %v3067
    %v3084 = vpack.c.b16 %v3070, %v3069
    %v3085 = vpack.c.b16 %v3072, %v3071
    %v3086 = vpack.c.b16 %v3074, %v3073
    %v3087 = vpack.c.b16 %v3076, %v3075
    %v3088 = vpack.c.b16 %v3078, %v3077
    %v3089 = vpack.c.b16 %v3080, %v3079
    %v3090 = vpack.c.b16 %v3082, %v3081
    %3099 = vmatprep.subr.bf16.mxu0 0
    %3100 = vmatpush1.bf16.msra.mxu0 %v3090
    %3101 = vmatprep.subr.bf16.mxu0 0
    %3102 = vmatpush1.bf16.msra.mxu0 %v3089
    %3103 = vmatprep.subr.bf16.mxu0 0
    %3104 = vmatpush1.bf16.msra.mxu0 %v3088
    %3105 = vmatprep.subr.bf16.mxu0 0
    %3106 = vmatpush1.bf16.msra.mxu0 %v3087
    %3107 = vmatprep.subr.bf16.mxu0 0
    %3108 = vmatpush1.bf16.msra.mxu0 %v3086
    %3109 = vmatprep.subr.bf16.mxu0 0
    %3110 = vmatpush1.bf16.msra.mxu0 %v3085
    %3111 = vmatprep.subr.bf16.mxu0 0
    %3112 = vmatpush1.bf16.msra.mxu0 %v3084
    %3113 = vmatprep.subr.bf16.mxu0 0
    %3114 = vmatpush1.bf16.msra.mxu0 %v3083
    %3115 = vmatprep.subr.bf16.mxu0 0
    %3116 = vmatpush2.bf16.msra.mxu0 0
    %3117 = vmatprep.subr.bf16.mxu0 0
    %3118 = vmatpush2.bf16.msra.mxu0 0
    %3119 = vmatprep.subr.bf16.mxu0 0
    %3120 = vmatpush2.bf16.msra.mxu0 0
    %3121 = vmatprep.subr.bf16.mxu0 0
    %3122 = vmatpush2.bf16.msra.mxu0 0
    %3123 = vmatprep.subr.bf16.mxu0 0
    %3124 = vmatpush2.bf16.msra.mxu0 0
    %3125 = vmatprep.subr.bf16.mxu0 0
    %3126 = vmatpush2.bf16.msra.mxu0 0
    %3127 = vmatprep.subr.bf16.mxu0 0
    %3128 = vmatpush2.bf16.msra.mxu0 0
    %3129 = vmatprep.subr.bf16.mxu0 0
    %3130 = vmatpush2.bf16.msra.mxu0 0
    %3131 = vmatprep.mubr.bf16.mxu0 0
    %3132 = vmatmul.mubr.bf16.gmra.mxu0 %v3027
    %v3133 = vpop.f32.mrf.mxu0
    %v3134 = vadd.f32 %v3049, %v3133
    %v3135 = vpop.f32.mrf.mxu0
    %v3136 = vpop.f32.mrf.mxu0
    %v3137 = vadd.f32 %v3049, %v3136
    %v3138 = vpop.f32.mrf.mxu0
    %3139 = vdwg.mxu0
    %v3140 = vmax.f32 %v3134, 0.0
    %v3141 = vmax.f32 %v3137, 0.0
    %v3142 = vld [vmem:[%s11] sm:$0x1]
    %v3144 = vlaneseq
    %v3145 = vshrl.u32 %v3144, 7
    %v3146 = vsub.s32 0, %v3145
    %v3147 = vrot.slane %v3142, %v3146
    %v3149 = vmul.f32 %v3140, %v3147
    %v3150 = vmul.f32 %v3141, %v3147
    %vm3151 = vcmask 523264
    %v3152 = vsel %vm3151, %v3149, 0.0
    %3153 = vadd.xlane.f32.xlu0 %v3152
    %v3154 = vpop.xlane.xlu0 %3153
    %v3155 = vsel %vm3151, %v3150, 0.0
    %3156 = vadd.xlane.f32.xlu0 %v3155
    %v3157 = vpop.xlane.xlu0 %3156
    %v3158 = vld [vmem:[#allocation2] sm:$0x1]
    %v3160 = vlaneseq
    %v3161 = vshrl.u32 %v3160, 7
    %v3162 = vsub.s32 0, %v3161
    %v3163 = vrot.slane %v3158, %v3162
    %v3165 = vadd.f32 %v3154, %v3163
    %v3166 = vadd.f32 %v3157, %v3163
    %v3167 = vxor.u32 %v3165, 2147483648
    %v3168 = vxor.u32 %v3166, 2147483648
    %v3169 = vmul.f32 %v3167, 1.442695
    %v3170 = vpow.pop %v3169
    %v3171 = vmul.f32 %v3168, 1.442695
    %v3172 = vpow.pop %v3171
    %v3173 = vadd.f32 %v3170, 1.0
    %v3174 = vadd.f32 %v3172, 1.0
    %v3175 = vrcp.pop %v3173
    %v3176 = vmul.f32 1.0, %v3175
    %v3177 = vrcp.pop %v3174
    %v3178 = vmul.f32 1.0, %v3177
    %vm3179 = vcmask 7168
    %3180 = vst.msk [vmem:[%s13] sm:$0xff] %vm3179, %v3176
    %3181 = vst.msk [vmem:[%s13 + $0x8] sm:$0xff] %vm3179, %v3178
    // Predicated region
    $region70: #{tpu_custom_call.1} parent=1 // pred_check
      _
    $region71: #{tpu_custom_call.1} parent=1 // pred_check_branch
      %3183 = sbr.rel (0) target = $region73
    $region72: #{tpu_custom_call.1} parent=1 // pred_region
      _
    $region73: #{tpu_custom_call.1} parent=1 // pred_fallthru
      _
    // Predicated region
    $region74: #{tpu_custom_call.1} parent=1 // pred_check
      _
    $region75: #{tpu_custom_call.1} parent=1 // pred_check_branch
      %3185 = sbr.rel (0) target = $region77
    $region76: #{tpu_custom_call.1} parent=1 // pred_region
      _
    $region77: #{tpu_custom_call.1} parent=1 // pred_fallthru
      _
    %3186 = vsyncpa [#allocation4], 1
    %3187 = vsyncpa [#allocation6], 1
    %3188 = vsyncpa [#allocation9], 1

// kernel: tpu_custom_call.1
$region0: #{tpu_custom_call.1}
  #allocation0 [shape = 'u32[]', space=smem, size = 0x4, offset = 0x4, fixed_abs, tag = 'smem constant byte address 0x4 - core index']
  #allocation1 [shape = 'u32[144,128]{1,0:T(1,128)}', space=vmem, size = 0x12000, scoped, tag = 'internal scratch']
  #allocation2 [shape = 'f32[1,1]{1,0:T(1,128)S(1)}', space=vmem, size = 0x200, scoped, tag = 'scoped memory for tpu_custom_call.1']
  %s0 = inlined_call_operand.vmem [shape: bf16[16,32], index: 0, kind: input, shape index: {}]
  %s1 = inlined_call_operand.hbm [shape: bf16[32,1024], index: 1, kind: input, shape index: {}]
  %s2 = inlined_call_operand.vmem [shape: f32[1,1024], index: 2, kind: input, shape index: {}]
  %s3 = inlined_call_operand.hbm [shape: bf16[1024,512], index: 3, kind: input, shape index: {}]
  %s4 = inlined_call_operand.vmem [shape: f32[1,512], index: 4, kind: input, shape index: {}]
  %s5 = inlined_call_operand.hbm [shape: bf16[512,256], index: 5, kind: input, shape index: {}]
  %s6 = inlined_call_operand.vmem [shape: f32[1,256], index: 6, kind: input, shape index: {}]
  %s7 = inlined_call_operand.hbm [shape: bf16[256,128], index: 7, kind: input, shape index: {}]
  %s8 = inlined_call_operand.vmem [shape: f32[1,128], index: 8, kind: input, shape index: {}]
  %s9 = inlined_call_operand.vmem [shape: bf16[128,64], index: 9, kind: input, shape index: {}]
  %s10 = inlined_call_operand.vmem [shape: f32[1,64], index: 10, kind: input, shape index: {}]
  %s11 = inlined_call_operand.vmem [shape: f32[1,64], index: 11, kind: input, shape index: {}]
  %s12 = inlined_call_operand.<no memory space> [shape: f32[1,1], index: 12, kind: input, shape index: {}]
  %s13 = inlined_call_operand.vmem [shape: f32[16,1], index: 13, kind: output, shape index: {}]
  %s14 = sld [smem:[#allocation0]]
  $region78: #{tpu_custom_call.1} parent=0
    _
  %s16 = ssub.s32 1, %s14
  %s17 = scalar_select 0, %s16, %s14
  %v18 = vstv %s12
  %19 = vst [vmem:[#allocation2] sm:$0x1] %v18
  $region1: #{tpu_custom_call.1} parent=0
    #allocation3 [shape = 'u8[65536]{0}', space=vmem, size = 0x10000, scoped, tag = 'input window, operand 1, single buffered']
    #allocation4 [shape = 's32[1]{0}', space=sflag, size = 0x4, scoped, tag = 'scoped memory for tpu_custom_call.1']
    #allocation5 [shape = 'u8[1048576]{0}', space=vmem, size = 0x100000, scoped, tag = 'input window, operand 3, single buffered']
    #allocation6 [shape = 's32[1]{0}', space=sflag, size = 0x4, scoped, tag = 'scoped memory for tpu_custom_call.1']
    #allocation7 [shape = 'u8[262144]{0}', space=vmem, size = 0x40000, scoped, tag = 'input window, operand 5, single buffered']
    #allocation8 [shape = 'u8[65536]{0}', space=vmem, size = 0x10000, scoped, tag = 'input window, operand 7, single buffered']
    #allocation9 [shape = 's32[1]{0}', space=sflag, size = 0x4, scoped, tag = 'scoped memory for tpu_custom_call.1']
    %20 = vsyncpa [#allocation4], 0
    %21 = vsyncpa [#allocation6], 0
    %22 = vsyncpa [#allocation9], 0
    // Predicated region
    $region2: #{tpu_custom_call.1} parent=1 // pred_check
      _
    $region3: #{tpu_custom_call.1} parent=1 // pred_check_branch
      %24 = sbr.rel (0) target = $region5
    $region4: #{tpu_custom_call.1} parent=1 // pred_region
      _
    $region5: #{tpu_custom_call.1} parent=1 // pred_fallthru
      _
    // Predicated region
    $region6: #{tpu_custom_call.1} parent=1 // pred_check
      _
    $region7: #{tpu_custom_call.1} parent=1 // pred_check_branch
      %26 = sbr.rel (0) target = $region9
    $region8: #{tpu_custom_call.1} parent=1 // pred_region
      %s28 = ssub.s32 2048, 2048
      %29 = vsyncadd [#allocation4], %s28
      %s30 = sshll.u32 [#allocation3], 4
      %s31 = int_to_ptr.vmem [resolvable:$true] %s30
      %36 = dma.hbm_to_vmem [thread:$0]  %s1, 2048, %s31, [#allocation4], 512, 512, 32
    $region9: #{tpu_custom_call.1} parent=1 // pred_fallthru
      _
    // Predicated region
    $region10: #{tpu_custom_call.1} parent=1 // pred_check
      _
    $region11: #{tpu_custom_call.1} parent=1 // pred_check_branch
      %38 = sbr.rel (0) target = $region13
    $region12: #{tpu_custom_call.1} parent=1 // pred_region
      _
    $region13: #{tpu_custom_call.1} parent=1 // pred_fallthru
      _
    // Predicated region
    $region14: #{tpu_custom_call.1} parent=1 // pred_check
      _
    $region15: #{tpu_custom_call.1} parent=1 // pred_check_branch
      %40 = sbr.rel (0) target = $region17
    $region16: #{tpu_custom_call.1} parent=1 // pred_region
      %s42 = ssub.s32 32768, 32768
      %43 = vsyncadd [#allocation6], %s42
      %s44 = sshll.u32 [#allocation5], 4
      %s45 = int_to_ptr.vmem [resolvable:$true] %s44
      %50 = dma.hbm_to_vmem [thread:$0]  %s3, 32768, %s45, [#allocation6], 256, 256, 16
    $region17: #{tpu_custom_call.1} parent=1 // pred_fallthru
      _
    // Predicated region
    $region18: #{tpu_custom_call.1} parent=1 // pred_check
      _
    $region19: #{tpu_custom_call.1} parent=1 // pred_check_branch
      %52 = sbr.rel (0) target = $region21
    $region20: #{tpu_custom_call.1} parent=1 // pred_region
      _
    $region21: #{tpu_custom_call.1} parent=1 // pred_fallthru
      _
    // Predicated region
    $region22: #{tpu_custom_call.1} parent=1 // pred_check
      _
    $region23: #{tpu_custom_call.1} parent=1 // pred_check_branch
      %54 = sbr.rel (0) target = $region25
    $region24: #{tpu_custom_call.1} parent=1 // pred_region
      %s56 = ssub.s32 8192, 8192
      %57 = vsyncadd [#allocation6], %s56
      %s58 = sshll.u32 [#allocation7], 4
      %s59 = int_to_ptr.vmem [resolvable:$true] %s58
      %64 = dma.hbm_to_vmem [thread:$0]  %s5, 8192, %s59, [#allocation6], 128, 128, 8
    $region25: #{tpu_custom_call.1} parent=1 // pred_fallthru
      _
    // Predicated region
    $region26: #{tpu_custom_call.1} parent=1 // pred_check
      _
    $region27: #{tpu_custom_call.1} parent=1 // pred_check_branch
      %66 = sbr.rel (0) target = $region29
    $region28: #{tpu_custom_call.1} parent=1 // pred_region
      _
    $region29: #{tpu_custom_call.1} parent=1 // pred_fallthru
      _
    // Predicated region
    $region30: #{tpu_custom_call.1} parent=1 // pred_check
      _
    $region31: #{tpu_custom_call.1} parent=1 // pred_check_branch
      %68 = sbr.rel (0) target = $region33
    $region32: #{tpu_custom_call.1} parent=1 // pred_region
      %s70 = ssub.s32 2048, 2048
      %71 = vsyncadd [#allocation9], %s70
      %s72 = sshll.u32 [#allocation8], 4
      %s73 = int_to_ptr.vmem [resolvable:$true] %s72
      %78 = dma.hbm_to_vmem [thread:$0]  %s7, 2048, %s73, [#allocation9], 64, 64, 4
    $region33: #{tpu_custom_call.1} parent=1 // pred_fallthru
      _
    // Predicated region
    $region34: #{tpu_custom_call.1} parent=1 // pred_check
      _
    $region35: #{tpu_custom_call.1} parent=1 // pred_check_branch
      %80 = sbr.rel (0) target = $region37
    $region36: #{tpu_custom_call.1} parent=1 // pred_region
      _
    $region37: #{tpu_custom_call.1} parent=1 // pred_fallthru
      _
    // Predicated region
    $region38: #{tpu_custom_call.1} parent=1 // pred_check
      _
    $region39: #{tpu_custom_call.1} parent=1 // pred_check_branch
      %82 = sbr.rel (0) target = $region41
    $region40: #{tpu_custom_call.1} parent=1 // pred_region
      _
    $region41: #{tpu_custom_call.1} parent=1 // pred_fallthru
      _
    // Predicated region
    $region42: #{tpu_custom_call.1} parent=1 // pred_check
      _
    $region43: #{tpu_custom_call.1} parent=1 // pred_check_branch
      %84 = sbr.rel (0) target = $region45
    $region44: #{tpu_custom_call.1} parent=1 // pred_region
      _
    $region45: #{tpu_custom_call.1} parent=1 // pred_fallthru
      _
    // Predicated region
    $region46: #{tpu_custom_call.1} parent=1 // pred_check
      _
    $region47: #{tpu_custom_call.1} parent=1 // pred_check_branch
      %86 = sbr.rel (0) target = $region49
    $region48: #{tpu_custom_call.1} parent=1 // pred_region
      _
    $region49: #{tpu_custom_call.1} parent=1 // pred_fallthru
      _
    // Predicated region
    $region50: #{tpu_custom_call.1} parent=1 // pred_check
      _
    $region51: #{tpu_custom_call.1} parent=1 // pred_check_branch
      %88 = sbr.rel (0) target = $region53
    $region52: #{tpu_custom_call.1} parent=1 // pred_region
      _
    $region53: #{tpu_custom_call.1} parent=1 // pred_fallthru
      _
    // Predicated region
    $region54: #{tpu_custom_call.1} parent=1 // pred_check
      _
    $region55: #{tpu_custom_call.1} parent=1 // pred_check_branch
      %90 = sbr.rel (0) target = $region57
    $region56: #{tpu_custom_call.1} parent=1 // pred_region
      %91 = dma.done [#allocation4], 2048
    $region57: #{tpu_custom_call.1} parent=1 // pred_fallthru
      _
    // Predicated region
    $region58: #{tpu_custom_call.1} parent=1 // pred_check
      _
    $region59: #{tpu_custom_call.1} parent=1 // pred_check_branch
      %93 = sbr.rel (0) target = $region61
    $region60: #{tpu_custom_call.1} parent=1 // pred_region
      %94 = dma.done [#allocation6], 32768
    $region61: #{tpu_custom_call.1} parent=1 // pred_fallthru
      _
    // Predicated region
    $region62: #{tpu_custom_call.1} parent=1 // pred_check
      _
    $region63: #{tpu_custom_call.1} parent=1 // pred_check_branch
      %96 = sbr.rel (0) target = $region65
    $region64: #{tpu_custom_call.1} parent=1 // pred_region
      %97 = dma.done [#allocation6], 8192
    $region65: #{tpu_custom_call.1} parent=1 // pred_fallthru
      _
    // Predicated region
    $region66: #{tpu_custom_call.1} parent=1 // pred_check
      _
    $region67: #{tpu_custom_call.1} parent=1 // pred_check_branch
      %99 = sbr.rel (0) target = $region69
    $region68: #{tpu_custom_call.1} parent=1 // pred_region
      %100 = dma.done [#allocation9], 2048
    $region69: #{tpu_custom_call.1} parent=1 // pred_fallthru
      _
    %v102 = vld [vmem:[%s0] sm:$0xf]
    %v103 = vld [vmem:[%s0 + $0x4] sm:$0xf]
    %v104 = vld [vmem:[#allocation3] sm:$0xff]
    %v105 = vld [vmem:[#allocation3 + $0x8] sm:$0xff]
    %v106 = vld [vmem:[#allocation3 + $0x10] sm:$0xff]
    %v107 = vld [vmem:[#allocation3 + $0x18] sm:$0xff]
    %v108 = vld [vmem:[#allocation3 + $0x20] sm:$0xff]
    %v109 = vld [vmem:[#allocation3 + $0x28] sm:$0xff]
    %v110 = vld [vmem:[#allocation3 + $0x30] sm:$0xff]
    %v111 = vld [vmem:[#allocation3 + $0x38] sm:$0xff]
    %v112 = vld [vmem:[#allocation3 + $0x40] sm:$0xff]
    %v113 = vld [vmem:[#allocation3 + $0x48] sm:$0xff]
    %v114 = vld [vmem:[#allocation3 + $0x50] sm:$0xff]
    %v115 = vld [vmem:[#allocation3 + $0x58] sm:$0xff]
    %v116 = vld [vmem:[#allocation3 + $0x60] sm:$0xff]
    %v117 = vld [vmem:[#allocation3 + $0x68] sm:$0xff]
    %v118 = vld [vmem:[#allocation3 + $0x70] sm:$0xff]
    %v119 = vld [vmem:[#allocation3 + $0x78] sm:$0xff]
    %v120 = vld [vmem:[%s2] sm:$0xff]
    %v122 = vlaneseq
    %v123 = vshrl.u32 %v122, 7
    %v124 = vsub.s32 0, %v123
    %v125 = vrot.slane %v120, %v124
    %v126 = vlaneseq
    %v127 = vshrl.u32 %v126, 7
    %v128 = vsub.s32 1, %v127
    %v129 = vrot.slane %v120, %v128
    %v130 = vlaneseq
    %v131 = vshrl.u32 %v130, 7
    %v132 = vsub.s32 2, %v131
    %v133 = vrot.slane %v120, %v132
    %v134 = vlaneseq
    %v135 = vshrl.u32 %v134, 7
    %v136 = vsub.s32 3, %v135
    %v137 = vrot.slane %v120, %v136
    %v138 = vlaneseq
    %v139 = vshrl.u32 %v138, 7
    %v140 = vsub.s32 4, %v139
    %v141 = vrot.slane %v120, %v140
    %v142 = vlaneseq
    %v143 = vshrl.u32 %v142, 7
    %v144 = vsub.s32 5, %v143
    %v145 = vrot.slane %v120, %v144
    %v146 = vlaneseq
    %v147 = vshrl.u32 %v146, 7
    %v148 = vsub.s32 6, %v147
    %v149 = vrot.slane %v120, %v148
    %v150 = vlaneseq
    %v151 = vshrl.u32 %v150, 7
    %v152 = vsub.s32 7, %v151
    %v153 = vrot.slane %v120, %v152
    %v164 = vunpack.c.l.b16 %v102
    %v165 = vunpack.c.l.b16 %v103
    %v166 = vpack.c.b16 %v165, %v164
    %v183 = vunpack.c.l.b16 %v104
    %v184 = vunpack.c.h.b16 %v104
    %v185 = vunpack.c.l.b16 %v105
    %v186 = vunpack.c.h.b16 %v105
    %v187 = vunpack.c.l.b16 %v106
    %v188 = vunpack.c.h.b16 %v106
    %v189 = vunpack.c.l.b16 %v107
    %v190 = vunpack.c.h.b16 %v107
    %v191 = vunpack.c.l.b16 %v108
    %v192 = vunpack.c.h.b16 %v108
    %v193 = vunpack.c.l.b16 %v109
    %v194 = vunpack.c.h.b16 %v109
    %v195 = vunpack.c.l.b16 %v110
    %v196 = vunpack.c.h.b16 %v110
    %v197 = vunpack.c.l.b16 %v111
    %v198 = vunpack.c.h.b16 %v111
    %v199 = vunpack.c.l.b16 %v112
    %v200 = vunpack.c.h.b16 %v112
    %v201 = vunpack.c.l.b16 %v113
    %v202 = vunpack.c.h.b16 %v113
    %v203 = vunpack.c.l.b16 %v114
    %v204 = vunpack.c.h.b16 %v114
    %v205 = vunpack.c.l.b16 %v115
    %v206 = vunpack.c.h.b16 %v115
    %v207 = vunpack.c.l.b16 %v116
    %v208 = vunpack.c.h.b16 %v116
    %v209 = vunpack.c.l.b16 %v117
    %v210 = vunpack.c.h.b16 %v117
    %v211 = vunpack.c.l.b16 %v118
    %v212 = vunpack.c.h.b16 %v118
    %v213 = vunpack.c.l.b16 %v119
    %v214 = vunpack.c.h.b16 %v119
    %v215 = vpack.c.b16 %v191, %v183
    %v216 = vpack.c.b16 %v192, %v184
    %v217 = vpack.c.b16 %v193, %v185
    %v218 = vpack.c.b16 %v194, %v186
    %v219 = vpack.c.b16 %v195, %v187
    %v220 = vpack.c.b16 %v196, %v188
    %v221 = vpack.c.b16 %v197, %v189
    %v222 = vpack.c.b16 %v198, %v190
    %v223 = vpack.c.b16 %v207, %v199
    %v224 = vpack.c.b16 %v208, %v200
    %v225 = vpack.c.b16 %v209, %v201
    %v226 = vpack.c.b16 %v210, %v202
    %v227 = vpack.c.b16 %v211, %v203
    %v228 = vpack.c.b16 %v212, %v204
    %v229 = vpack.c.b16 %v213, %v205
    %v230 = vpack.c.b16 %v214, %v206
    %vm247 = vcmask 261120
    %v249 = vsel %vm247, %v166, 0
    %251 = vmatprep.subr.bf16.mxu0 0
    %252 = vmatpush1.bf16.msra.mxu0 0
    %253 = vmatprep.subr.bf16.mxu0 0
    %254 = vmatpush1.bf16.msra.mxu0 0
    %255 = vmatprep.subr.bf16.mxu0 0
    %256 = vmatpush1.bf16.msra.mxu0 0
    %257 = vmatprep.subr.bf16.mxu0 0
    %258 = vmatpush1.bf16.msra.mxu0 0
    %259 = vmatprep.subr.bf16.mxu0 0
    %260 = vmatpush1.bf16.msra.mxu0 0
    %261 = vmatprep.subr.bf16.mxu0 0
    %262 = vmatpush1.bf16.msra.mxu0 0
    %263 = vmatprep.subr.bf16.mxu0 %v224
    %264 = vmatpush1.bf16.msra.mxu0 %v223
    %265 = vmatprep.subr.bf16.mxu0 %v216
    %266 = vmatpush1.bf16.msra.mxu0 %v215
    %267 = vmatprep.subr.bf16.mxu0 0
    %268 = vmatpush2.bf16.msra.mxu0 0
    %269 = vmatprep.subr.bf16.mxu0 0
    %270 = vmatpush2.bf16.msra.mxu0 0
    %271 = vmatprep.subr.bf16.mxu0 0
    %272 = vmatpush2.bf16.msra.mxu0 0
    %273 = vmatprep.subr.bf16.mxu0 0
    %274 = vmatpush2.bf16.msra.mxu0 0
    %275 = vmatprep.subr.bf16.mxu0 0
    %276 = vmatpush2.bf16.msra.mxu0 0
    %277 = vmatprep.subr.bf16.mxu0 0
    %278 = vmatpush2.bf16.msra.mxu0 0
    %279 = vmatprep.subr.bf16.mxu0 0
    %280 = vmatpush2.bf16.msra.mxu0 0
    %281 = vmatprep.subr.bf16.mxu0 0
    %282 = vmatpush2.bf16.msra.mxu0 0
    %283 = vmatprep.mubr.bf16.mxu0 0
    %284 = vmatmul.mubr.bf16.gmra.mxu0 %v249
    %v285 = vpop.f32.mrf.mxu0
    %v286 = vadd.f32 %v125, %v285
    %v287 = vpop.f32.mrf.mxu0
    %v288 = vadd.f32 %v129, %v287
    %v289 = vpop.f32.mrf.mxu0
    %v290 = vadd.f32 %v125, %v289
    %v291 = vpop.f32.mrf.mxu0
    %v292 = vadd.f32 %v129, %v291
    %293 = vdwg.mxu0
    %294 = vmatprep.subr.bf16.mxu0 0
    %295 = vmatpush1.bf16.msra.mxu0 0
    %296 = vmatprep.subr.bf16.mxu0 0
    %297 = vmatpush1.bf16.msra.mxu0 0
    %298 = vmatprep.subr.bf16.mxu0 0
    %299 = vmatpush1.bf16.msra.mxu0 0
    %300 = vmatprep.subr.bf16.mxu0 0
    %301 = vmatpush1.bf16.msra.mxu0 0
    %302 = vmatprep.subr.bf16.mxu0 0
    %303 = vmatpush1.bf16.msra.mxu0 0
    %304 = vmatprep.subr.bf16.mxu0 0
    %305 = vmatpush1.bf16.msra.mxu0 0
    %306 = vmatprep.subr.bf16.mxu0 %v226
    %307 = vmatpush1.bf16.msra.mxu0 %v225
    %308 = vmatprep.subr.bf16.mxu0 %v218
    %309 = vmatpush1.bf16.msra.mxu0 %v217
    %310 = vmatprep.subr.bf16.mxu0 0
    %311 = vmatpush2.bf16.msra.mxu0 0
    %312 = vmatprep.subr.bf16.mxu0 0
    %313 = vmatpush2.bf16.msra.mxu0 0
    %314 = vmatprep.subr.bf16.mxu0 0
    %315 = vmatpush2.bf16.msra.mxu0 0
    %316 = vmatprep.subr.bf16.mxu0 0
    %317 = vmatpush2.bf16.msra.mxu0 0
    %318 = vmatprep.subr.bf16.mxu0 0
    %319 = vmatpush2.bf16.msra.mxu0 0
    %320 = vmatprep.subr.bf16.mxu0 0
    %321 = vmatpush2.bf16.msra.mxu0 0
    %322 = vmatprep.subr.bf16.mxu0 0
    %323 = vmatpush2.bf16.msra.mxu0 0
    %324 = vmatprep.subr.bf16.mxu0 0
    %325 = vmatpush2.bf16.msra.mxu0 0
    %326 = vmatprep.mubr.bf16.mxu0 0
    %327 = vmatmul.mubr.bf16.gmra.mxu0 %v249
    %v328 = vpop.f32.mrf.mxu0
    %v329 = vadd.f32 %v133, %v328
    %v330 = vpop.f32.mrf.mxu0
    %v331 = vadd.f32 %v137, %v330
    %v332 = vpop.f32.mrf.mxu0
    %v333 = vadd.f32 %v133, %v332
    %v334 = vpop.f32.mrf.mxu0
    %v335 = vadd.f32 %v137, %v334
    %336 = vdwg.mxu0
    %337 = vmatprep.subr.bf16.mxu0 0
    %338 = vmatpush1.bf16.msra.mxu0 0
    %339 = vmatprep.subr.bf16.mxu0 0
    %340 = vmatpush1.bf16.msra.mxu0 0
    %341 = vmatprep.subr.bf16.mxu0 0
    %342 = vmatpush1.bf16.msra.mxu0 0
    %343 = vmatprep.subr.bf16.mxu0 0
    %344 = vmatpush1.bf16.msra.mxu0 0
    %345 = vmatprep.subr.bf16.mxu0 0
    %346 = vmatpush1.bf16.msra.mxu0 0
    %347 = vmatprep.subr.bf16.mxu0 0
    %348 = vmatpush1.bf16.msra.mxu0 0
    %349 = vmatprep.subr.bf16.mxu0 %v228
    %350 = vmatpush1.bf16.msra.mxu0 %v227
    %351 = vmatprep.subr.bf16.mxu0 %v220
    %352 = vmatpush1.bf16.msra.mxu0 %v219
    %353 = vmatprep.subr.bf16.mxu0 0
    %354 = vmatpush2.bf16.msra.mxu0 0
    %355 = vmatprep.subr.bf16.mxu0 0
    %356 = vmatpush2.bf16.msra.mxu0 0
    %357 = vmatprep.subr.bf16.mxu0 0
    %358 = vmatpush2.bf16.msra.mxu0 0
    %359 = vmatprep.subr.bf16.mxu0 0
    %360 = vmatpush2.bf16.msra.mxu0 0
    %361 = vmatprep.subr.bf16.mxu0 0
    %362 = vmatpush2.bf16.msra.mxu0 0
    %363 = vmatprep.subr.bf16.mxu0 0
    %364 = vmatpush2.bf16.msra.mxu0 0
    %365 = vmatprep.subr.bf16.mxu0 0
    %366 = vmatpush2.bf16.msra.mxu0 0
    %367 = vmatprep.subr.bf16.mxu0 0
    %368 = vmatpush2.bf16.msra.mxu0 0
    %369 = vmatprep.mubr.bf16.mxu0 0
    %370 = vmatmul.mubr.bf16.gmra.mxu0 %v249
    %v371 = vpop.f32.mrf.mxu0
    %v372 = vadd.f32 %v141, %v371
    %v373 = vpop.f32.mrf.mxu0
    %v374 = vadd.f32 %v145, %v373
    %v375 = vpop.f32.mrf.mxu0
    %v376 = vadd.f32 %v141, %v375
    %v377 = vpop.f32.mrf.mxu0
    %v378 = vadd.f32 %v145, %v377
    %379 = vdwg.mxu0
    %380 = vmatprep.subr.bf16.mxu0 0
    %381 = vmatpush1.bf16.msra.mxu0 0
    %382 = vmatprep.subr.bf16.mxu0 0
    %383 = vmatpush1.bf16.msra.mxu0 0
    %384 = vmatprep.subr.bf16.mxu0 0
    %385 = vmatpush1.bf16.msra.mxu0 0
    %386 = vmatprep.subr.bf16.mxu0 0
    %387 = vmatpush1.bf16.msra.mxu0 0
    %388 = vmatprep.subr.bf16.mxu0 0
    %389 = vmatpush1.bf16.msra.mxu0 0
    %390 = vmatprep.subr.bf16.mxu0 0
    %391 = vmatpush1.bf16.msra.mxu0 0
    %392 = vmatprep.subr.bf16.mxu0 %v230
    %393 = vmatpush1.bf16.msra.mxu0 %v229
    %394 = vmatprep.subr.bf16.mxu0 %v222
    %395 = vmatpush1.bf16.msra.mxu0 %v221
    %396 = vmatprep.subr.bf16.mxu0 0
    %397 = vmatpush2.bf16.msra.mxu0 0
    %398 = vmatprep.subr.bf16.mxu0 0
    %399 = vmatpush2.bf16.msra.mxu0 0
    %400 = vmatprep.subr.bf16.mxu0 0
    %401 = vmatpush2.bf16.msra.mxu0 0
    %402 = vmatprep.subr.bf16.mxu0 0
    %403 = vmatpush2.bf16.msra.mxu0 0
    %404 = vmatprep.subr.bf16.mxu0 0
    %405 = vmatpush2.bf16.msra.mxu0 0
    %406 = vmatprep.subr.bf16.mxu0 0
    %407 = vmatpush2.bf16.msra.mxu0 0
    %408 = vmatprep.subr.bf16.mxu0 0
    %409 = vmatpush2.bf16.msra.mxu0 0
    %410 = vmatprep.subr.bf16.mxu0 0
    %411 = vmatpush2.bf16.msra.mxu0 0
    %412 = vmatprep.mubr.bf16.mxu0 0
    %413 = vmatmul.mubr.bf16.gmra.mxu0 %v249
    %v414 = vpop.f32.mrf.mxu0
    %v415 = vadd.f32 %v149, %v414
    %v416 = vpop.f32.mrf.mxu0
    %v417 = vadd.f32 %v153, %v416
    %v418 = vpop.f32.mrf.mxu0
    %v419 = vadd.f32 %v149, %v418
    %v420 = vpop.f32.mrf.mxu0
    %v421 = vadd.f32 %v153, %v420
    %422 = vdwg.mxu0
    %v423 = vmax.f32 %v286, 0.0
    %v424 = vmax.f32 %v288, 0.0
    %v425 = vmax.f32 %v329, 0.0
    %v426 = vmax.f32 %v331, 0.0
    %v427 = vmax.f32 %v372, 0.0
    %v428 = vmax.f32 %v374, 0.0
    %v429 = vmax.f32 %v415, 0.0
    %v430 = vmax.f32 %v417, 0.0
    %v431 = vmax.f32 %v290, 0.0
    %v432 = vmax.f32 %v292, 0.0
    %v433 = vmax.f32 %v333, 0.0
    %v434 = vmax.f32 %v335, 0.0
    %v435 = vmax.f32 %v376, 0.0
    %v436 = vmax.f32 %v378, 0.0
    %v437 = vmax.f32 %v419, 0.0
    %v438 = vmax.f32 %v421, 0.0
    %v439 = vpack.c.bf16 %v431, %v423
    %v440 = vpack.c.bf16 %v432, %v424
    %v441 = vpack.c.bf16 %v433, %v425
    %v442 = vpack.c.bf16 %v434, %v426
    %v443 = vpack.c.bf16 %v435, %v427
    %v444 = vpack.c.bf16 %v436, %v428
    %v445 = vpack.c.bf16 %v437, %v429
    %v446 = vpack.c.bf16 %v438, %v430
    %v447 = vld [vmem:[#allocation5] sm:$0xff]
    %v448 = vld [vmem:[#allocation5 + $0x8] sm:$0xff]
    %v449 = vld [vmem:[#allocation5 + $0x10] sm:$0xff]
    %v450 = vld [vmem:[#allocation5 + $0x18] sm:$0xff]
    %v451 = vld [vmem:[#allocation5 + $0x20] sm:$0xff]
    %v452 = vld [vmem:[#allocation5 + $0x28] sm:$0xff]
    %v453 = vld [vmem:[#allocation5 + $0x30] sm:$0xff]
    %v454 = vld [vmem:[#allocation5 + $0x38] sm:$0xff]
    %v455 = vld [vmem:[#allocation5 + $0x40] sm:$0xff]
    %v456 = vld [vmem:[#allocation5 + $0x48] sm:$0xff]
    %v457 = vld [vmem:[#allocation5 + $0x50] sm:$0xff]
    %v458 = vld [vmem:[#allocation5 + $0x58] sm:$0xff]
    %v459 = vld [vmem:[#allocation5 + $0x60] sm:$0xff]
    %v460 = vld [vmem:[#allocation5 + $0x68] sm:$0xff]
    %v461 = vld [vmem:[#allocation5 + $0x70] sm:$0xff]
    %v462 = vld [vmem:[#allocation5 + $0x78] sm:$0xff]
    %v463 = vld [vmem:[#allocation5 + $0x80] sm:$0xff]
    %v464 = vld [vmem:[#allocation5 + $0x88] sm:$0xff]
    %v465 = vld [vmem:[#allocation5 + $0x90] sm:$0xff]
    %v466 = vld [vmem:[#allocation5 + $0x98] sm:$0xff]
    %v467 = vld [vmem:[#allocation5 + $0xa0] sm:$0xff]
    %v468 = vld [vmem:[#allocation5 + $0xa8] sm:$0xff]
    %v469 = vld [vmem:[#allocation5 + $0xb0] sm:$0xff]
    %v470 = vld [vmem:[#allocation5 + $0xb8] sm:$0xff]
    %v471 = vld [vmem:[#allocation5 + $0xc0] sm:$0xff]
    %v472 = vld [vmem:[#allocation5 + $0xc8] sm:$0xff]
    %v473 = vld [vmem:[#allocation5 + $0xd0] sm:$0xff]
    %v474 = vld [vmem:[#allocation5 + $0xd8] sm:$0xff]
    %v475 = vld [vmem:[#allocation5 + $0xe0] sm:$0xff]
    %v476 = vld [vmem:[#allocation5 + $0xe8] sm:$0xff]
    %v477 = vld [vmem:[#allocation5 + $0xf0] sm:$0xff]
    %v478 = vld [vmem:[#allocation5 + $0xf8] sm:$0xff]
    %v479 = vld [vmem:[#allocation5 + $0x100] sm:$0xff]
    %v480 = vld [vmem:[#allocation5 + $0x108] sm:$0xff]
    %v481 = vld [vmem:[#allocation5 + $0x110] sm:$0xff]
    %v482 = vld [vmem:[#allocation5 + $0x118] sm:$0xff]
    %v483 = vld [vmem:[#allocation5 + $0x120] sm:$0xff]
    %v484 = vld [vmem:[#allocation5 + $0x128] sm:$0xff]
    %v485 = vld [vmem:[#allocation5 + $0x130] sm:$0xff]
    %v486 = vld [vmem:[#allocation5 + $0x138] sm:$0xff]
    %v487 = vld [vmem:[#allocation5 + $0x140] sm:$0xff]
    %v488 = vld [vmem:[#allocation5 + $0x148] sm:$0xff]
    %v489 = vld [vmem:[#allocation5 + $0x150] sm:$0xff]
    %v490 = vld [vmem:[#allocation5 + $0x158] sm:$0xff]
    %v491 = vld [vmem:[#allocation5 + $0x160] sm:$0xff]
    %v492 = vld [vmem:[#allocation5 + $0x168] sm:$0xff]
    %v493 = vld [vmem:[#allocation5 + $0x170] sm:$0xff]
    %v494 = vld [vmem:[#allocation5 + $0x178] sm:$0xff]
    %v495 = vld [vmem:[#allocation5 + $0x180] sm:$0xff]
    %v496 = vld [vmem:[#allocation5 + $0x188] sm:$0xff]
    %v497 = vld [vmem:[#allocation5 + $0x190] sm:$0xff]
    %v498 = vld [vmem:[#allocation5 + $0x198] sm:$0xff]
    %v499 = vld [vmem:[#allocation5 + $0x1a0] sm:$0xff]
    %v500 = vld [vmem:[#allocation5 + $0x1a8] sm:$0xff]
    %v501 = vld [vmem:[#allocation5 + $0x1b0] sm:$0xff]
    %v502 = vld [vmem:[#allocation5 + $0x1b8] sm:$0xff]
    %v503 = vld [vmem:[#allocation5 + $0x1c0] sm:$0xff]
    %v504 = vld [vmem:[#allocation5 + $0x1c8] sm:$0xff]
    %v505 = vld [vmem:[#allocation5 + $0x1d0] sm:$0xff]
    %v506 = vld [vmem:[#allocation5 + $0x1d8] sm:$0xff]
    %v507 = vld [vmem:[#allocation5 + $0x1e0] sm:$0xff]
    %v508 = vld [vmem:[#allocation5 + $0x1e8] sm:$0xff]
    %v509 = vld [vmem:[#allocation5 + $0x1f0] sm:$0xff]
    %v510 = vld [vmem:[#allocation5 + $0x1f8] sm:$0xff]
    %v511 = vld [vmem:[#allocation5 + $0x200] sm:$0xff]
    %v512 = vld [vmem:[#allocation5 + $0x208] sm:$0xff]
    %v513 = vld [vmem:[#allocation5 + $0x210] sm:$0xff]
    %v514 = vld [vmem:[#allocation5 + $0x218] sm:$0xff]
    %v515 = vld [vmem:[#allocation5 + $0x220] sm:$0xff]
    %v516 = vld [vmem:[#allocation5 + $0x228] sm:$0xff]
    %v517 = vld [vmem:[#allocation5 + $0x230] sm:$0xff]
    %v518 = vld [vmem:[#allocation5 + $0x238] sm:$0xff]
    %v519 = vld [vmem:[#allocation5 + $0x240] sm:$0xff]
    %v520 = vld [vmem:[#allocation5 + $0x248] sm:$0xff]
    %v521 = vld [vmem:[#allocation5 + $0x250] sm:$0xff]
    %v522 = vld [vmem:[#allocation5 + $0x258] sm:$0xff]
    %v523 = vld [vmem:[#allocation5 + $0x260] sm:$0xff]
    %v524 = vld [vmem:[#allocation5 + $0x268] sm:$0xff]
    %v525 = vld [vmem:[#allocation5 + $0x270] sm:$0xff]
    %v526 = vld [vmem:[#allocation5 + $0x278] sm:$0xff]
    %v527 = vld [vmem:[#allocation5 + $0x280] sm:$0xff]
    %v528 = vld [vmem:[#allocation5 + $0x288] sm:$0xff]
    %v529 = vld [vmem:[#allocation5 + $0x290] sm:$0xff]
    %v530 = vld [vmem:[#allocation5 + $0x298] sm:$0xff]
    %v531 = vld [vmem:[#allocation5 + $0x2a0] sm:$0xff]
    %v532 = vld [vmem:[#allocation5 + $0x2a8] sm:$0xff]
    %v533 = vld [vmem:[#allocation5 + $0x2b0] sm:$0xff]
    %v534 = vld [vmem:[#allocation5 + $0x2b8] sm:$0xff]
    %v535 = vld [vmem:[#allocation5 + $0x2c0] sm:$0xff]
    %v536 = vld [vmem:[#allocation5 + $0x2c8] sm:$0xff]
    %v537 = vld [vmem:[#allocation5 + $0x2d0] sm:$0xff]
    %v538 = vld [vmem:[#allocation5 + $0x2d8] sm:$0xff]
    %v539 = vld [vmem:[#allocation5 + $0x2e0] sm:$0xff]
    %v540 = vld [vmem:[#allocation5 + $0x2e8] sm:$0xff]
    %v541 = vld [vmem:[#allocation5 + $0x2f0] sm:$0xff]
    %v542 = vld [vmem:[#allocation5 + $0x2f8] sm:$0xff]
    %v543 = vld [vmem:[#allocation5 + $0x300] sm:$0xff]
    %v544 = vld [vmem:[#allocation5 + $0x308] sm:$0xff]
    %v545 = vld [vmem:[#allocation5 + $0x310] sm:$0xff]
    %v546 = vld [vmem:[#allocation5 + $0x318] sm:$0xff]
    %v547 = vld [vmem:[#allocation5 + $0x320] sm:$0xff]
    %v548 = vld [vmem:[#allocation5 + $0x328] sm:$0xff]
    %v549 = vld [vmem:[#allocation5 + $0x330] sm:$0xff]
    %v550 = vld [vmem:[#allocation5 + $0x338] sm:$0xff]
    %v551 = vld [vmem:[#allocation5 + $0x340] sm:$0xff]
    %v552 = vld [vmem:[#allocation5 + $0x348] sm:$0xff]
    %v553 = vld [vmem:[#allocation5 + $0x350] sm:$0xff]
    %v554 = vld [vmem:[#allocation5 + $0x358] sm:$0xff]
    %v555 = vld [vmem:[#allocation5 + $0x360] sm:$0xff]
    %v556 = vld [vmem:[#allocation5 + $0x368] sm:$0xff]
    %v557 = vld [vmem:[#allocation5 + $0x370] sm:$0xff]
    %v558 = vld [vmem:[#allocation5 + $0x378] sm:$0xff]
    %v559 = vld [vmem:[#allocation5 + $0x380] sm:$0xff]
    %v560 = vld [vmem:[#allocation5 + $0x388] sm:$0xff]
    %v561 = vld [vmem:[#allocation5 + $0x390] sm:$0xff]
    %v562 = vld [vmem:[#allocation5 + $0x398] sm:$0xff]
    %v563 = vld [vmem:[#allocation5 + $0x3a0] sm:$0xff]
    %v564 = vld [vmem:[#allocation5 + $0x3a8] sm:$0xff]
    %v565 = vld [vmem:[#allocation5 + $0x3b0] sm:$0xff]
    %v566 = vld [vmem:[#allocation5 + $0x3b8] sm:$0xff]
    %v567 = vld [vmem:[#allocation5 + $0x3c0] sm:$0xff]
    %v568 = vld [vmem:[#allocation5 + $0x3c8] sm:$0xff]
    %v569 = vld [vmem:[#allocation5 + $0x3d0] sm:$0xff]
    %v570 = vld [vmem:[#allocation5 + $0x3d8] sm:$0xff]
    %v571 = vld [vmem:[#allocation5 + $0x3e0] sm:$0xff]
    %v572 = vld [vmem:[#allocation5 + $0x3e8] sm:$0xff]
    %v573 = vld [vmem:[#allocation5 + $0x3f0] sm:$0xff]
    %v574 = vld [vmem:[#allocation5 + $0x3f8] sm:$0xff]
    %v575 = vld [vmem:[#allocation5 + $0x400] sm:$0xff]
    %v576 = vld [vmem:[#allocation5 + $0x408] sm:$0xff]
    %v577 = vld [vmem:[#allocation5 + $0x410] sm:$0xff]
    %v578 = vld [vmem:[#allocation5 + $0x418] sm:$0xff]
    %v579 = vld [vmem:[#allocation5 + $0x420] sm:$0xff]
    %v580 = vld [vmem:[#allocation5 + $0x428] sm:$0xff]
    %v581 = vld [vmem:[#allocation5 + $0x430] sm:$0xff]
    %v582 = vld [vmem:[#allocation5 + $0x438] sm:$0xff]
    %v583 = vld [vmem:[#allocation5 + $0x440] sm:$0xff]
    %v584 = vld [vmem:[#allocation5 + $0x448] sm:$0xff]
    %v585 = vld [vmem:[#allocation5 + $0x450] sm:$0xff]
    %v586 = vld [vmem:[#allocation5 + $0x458] sm:$0xff]
    %v587 = vld [vmem:[#allocation5 + $0x460] sm:$0xff]
    %v588 = vld [vmem:[#allocation5 + $0x468] sm:$0xff]
    %v589 = vld [vmem:[#allocation5 + $0x470] sm:$0xff]
    %v590 = vld [vmem:[#allocation5 + $0x478] sm:$0xff]
    %v591 = vld [vmem:[#allocation5 + $0x480] sm:$0xff]
    %v592 = vld [vmem:[#allocation5 + $0x488] sm:$0xff]
    %v593 = vld [vmem:[#allocation5 + $0x490] sm:$0xff]
    %v594 = vld [vmem:[#allocation5 + $0x498] sm:$0xff]
    %v595 = vld [vmem:[#allocation5 + $0x4a0] sm:$0xff]
    %v596 = vld [vmem:[#allocation5 + $0x4a8] sm:$0xff]
    %v597 = vld [vmem:[#allocation5 + $0x4b0] sm:$0xff]
    %v598 = vld [vmem:[#allocation5 + $0x4b8] sm:$0xff]
    %v599 = vld [vmem:[#allocation5 + $0x4c0] sm:$0xff]
    %v600 = vld [vmem:[#allocation5 + $0x4c8] sm:$0xff]
    %v601 = vld [vmem:[#allocation5 + $0x4d0] sm:$0xff]
    %v602 = vld [vmem:[#allocation5 + $0x4d8] sm:$0xff]
    %v603 = vld [vmem:[#allocation5 + $0x4e0] sm:$0xff]
    %v604 = vld [vmem:[#allocation5 + $0x4e8] sm:$0xff]
    %v605 = vld [vmem:[#allocation5 + $0x4f0] sm:$0xff]
    %v606 = vld [vmem:[#allocation5 + $0x4f8] sm:$0xff]
    %v607 = vld [vmem:[#allocation5 + $0x500] sm:$0xff]
    %v608 = vld [vmem:[#allocation5 + $0x508] sm:$0xff]
    %v609 = vld [vmem:[#allocation5 + $0x510] sm:$0xff]
    %v610 = vld [vmem:[#allocation5 + $0x518] sm:$0xff]
    %v611 = vld [vmem:[#allocation5 + $0x520] sm:$0xff]
    %v612 = vld [vmem:[#allocation5 + $0x528] sm:$0xff]
    %v613 = vld [vmem:[#allocation5 + $0x530] sm:$0xff]
    %v614 = vld [vmem:[#allocation5 + $0x538] sm:$0xff]
    %v615 = vld [vmem:[#allocation5 + $0x540] sm:$0xff]
    %v616 = vld [vmem:[#allocation5 + $0x548] sm:$0xff]
    %v617 = vld [vmem:[#allocation5 + $0x550] sm:$0xff]
    %v618 = vld [vmem:[#allocation5 + $0x558] sm:$0xff]
    %v619 = vld [vmem:[#allocation5 + $0x560] sm:$0xff]
    %v620 = vld [vmem:[#allocation5 + $0x568] sm:$0xff]
    %v621 = vld [vmem:[#allocation5 + $0x570] sm:$0xff]
    %v622 = vld [vmem:[#allocation5 + $0x578] sm:$0xff]
    %v623 = vld [vmem:[#allocation5 + $0x580] sm:$0xff]
    %v624 = vld [vmem:[#allocation5 + $0x588] sm:$0xff]
    %v625 = vld [vmem:[#allocation5 + $0x590] sm:$0xff]
    %v626 = vld [vmem:[#allocation5 + $0x598] sm:$0xff]
    %v627 = vld [vmem:[#allocation5 + $0x5a0] sm:$0xff]
    %v628 = vld [vmem:[#allocation5 + $0x5a8] sm:$0xff]
    %v629 = vld [vmem:[#allocation5 + $0x5b0] sm:$0xff]
    %v630 = vld [vmem:[#allocation5 + $0x5b8] sm:$0xff]
    %v631 = vld [vmem:[#allocation5 + $0x5c0] sm:$0xff]
    %v632 = vld [vmem:[#allocation5 + $0x5c8] sm:$0xff]
    %v633 = vld [vmem:[#allocation5 + $0x5d0] sm:$0xff]
    %v634 = vld [vmem:[#allocation5 + $0x5d8] sm:$0xff]
    %v635 = vld [vmem:[#allocation5 + $0x5e0] sm:$0xff]
    %v636 = vld [vmem:[#allocation5 + $0x5e8] sm:$0xff]
    %v637 = vld [vmem:[#allocation5 + $0x5f0] sm:$0xff]
    %v638 = vld [vmem:[#allocation5 + $0x5f8] sm:$0xff]
    %v639 = vld [vmem:[#allocation5 + $0x600] sm:$0xff]
    %v640 = vld [vmem:[#allocation5 + $0x608] sm:$0xff]
    %v641 = vld [vmem:[#allocation5 + $0x610] sm:$0xff]
    %v642 = vld [vmem:[#allocation5 + $0x618] sm:$0xff]
    %v643 = vld [vmem:[#allocation5 + $0x620] sm:$0xff]
    %v644 = vld [vmem:[#allocation5 + $0x628] sm:$0xff]
    %v645 = vld [vmem:[#allocation5 + $0x630] sm:$0xff]
    %v646 = vld [vmem:[#allocation5 + $0x638] sm:$0xff]
    %v647 = vld [vmem:[#allocation5 + $0x640] sm:$0xff]
    %v648 = vld [vmem:[#allocation5 + $0x648] sm:$0xff]
    %v649 = vld [vmem:[#allocation5 + $0x650] sm:$0xff]
    %v650 = vld [vmem:[#allocation5 + $0x658] sm:$0xff]
    %v651 = vld [vmem:[#allocation5 + $0x660] sm:$0xff]
    %v652 = vld [vmem:[#allocation5 + $0x668] sm:$0xff]
    %v653 = vld [vmem:[#allocation5 + $0x670] sm:$0xff]
    %v654 = vld [vmem:[#allocation5 + $0x678] sm:$0xff]
    %v655 = vld [vmem:[#allocation5 + $0x680] sm:$0xff]
    %v656 = vld [vmem:[#allocation5 + $0x688] sm:$0xff]
    %v657 = vld [vmem:[#allocation5 + $0x690] sm:$0xff]
    %v658 = vld [vmem:[#allocation5 + $0x698] sm:$0xff]
    %v659 = vld [vmem:[#allocation5 + $0x6a0] sm:$0xff]
    %v660 = vld [vmem:[#allocation5 + $0x6a8] sm:$0xff]
    %v661 = vld [vmem:[#allocation5 + $0x6b0] sm:$0xff]
    %v662 = vld [vmem:[#allocation5 + $0x6b8] sm:$0xff]
    %v663 = vld [vmem:[#allocation5 + $0x6c0] sm:$0xff]
    %v664 = vld [vmem:[#allocation5 + $0x6c8] sm:$0xff]
    %v665 = vld [vmem:[#allocation5 + $0x6d0] sm:$0xff]
    %v666 = vld [vmem:[#allocation5 + $0x6d8] sm:$0xff]
    %v667 = vld [vmem:[#allocation5 + $0x6e0] sm:$0xff]
    %v668 = vld [vmem:[#allocation5 + $0x6e8] sm:$0xff]
    %v669 = vld [vmem:[#allocation5 + $0x6f0] sm:$0xff]
    %v670 = vld [vmem:[#allocation5 + $0x6f8] sm:$0xff]
    %v671 = vld [vmem:[#allocation5 + $0x700] sm:$0xff]
    %v672 = vld [vmem:[#allocation5 + $0x708] sm:$0xff]
    %v673 = vld [vmem:[#allocation5 + $0x710] sm:$0xff]
    %v674 = vld [vmem:[#allocation5 + $0x718] sm:$0xff]
    %v675 = vld [vmem:[#allocation5 + $0x720] sm:$0xff]
    %v676 = vld [vmem:[#allocation5 + $0x728] sm:$0xff]
    %v677 = vld [vmem:[#allocation5 + $0x730] sm:$0xff]
    %v678 = vld [vmem:[#allocation5 + $0x738] sm:$0xff]
    %v679 = vld [vmem:[#allocation5 + $0x740] sm:$0xff]
    %v680 = vld [vmem:[#allocation5 + $0x748] sm:$0xff]
    %v681 = vld [vmem:[#allocation5 + $0x750] sm:$0xff]
    %v682 = vld [vmem:[#allocation5 + $0x758] sm:$0xff]
    %v683 = vld [vmem:[#allocation5 + $0x760] sm:$0xff]
    %v684 = vld [vmem:[#allocation5 + $0x768] sm:$0xff]
    %v685 = vld [vmem:[#allocation5 + $0x770] sm:$0xff]
    %v686 = vld [vmem:[#allocation5 + $0x778] sm:$0xff]
    %v687 = vld [vmem:[#allocation5 + $0x780] sm:$0xff]
    %v688 = vld [vmem:[#allocation5 + $0x788] sm:$0xff]
    %v689 = vld [vmem:[#allocation5 + $0x790] sm:$0xff]
    %v690 = vld [vmem:[#allocation5 + $0x798] sm:$0xff]
    %v691 = vld [vmem:[#allocation5 + $0x7a0] sm:$0xff]
    %v692 = vld [vmem:[#allocation5 + $0x7a8] sm:$0xff]
    %v693 = vld [vmem:[#allocation5 + $0x7b0] sm:$0xff]
    %v694 = vld [vmem:[#allocation5 + $0x7b8] sm:$0xff]
    %v695 = vld [vmem:[#allocation5 + $0x7c0] sm:$0xff]
    %v696 = vld [vmem:[#allocation5 + $0x7c8] sm:$0xff]
    %v697 = vld [vmem:[#allocation5 + $0x7d0] sm:$0xff]
    %v698 = vld [vmem:[#allocation5 + $0x7d8] sm:$0xff]
    %v699 = vld [vmem:[#allocation5 + $0x7e0] sm:$0xff]
    %v700 = vld [vmem:[#allocation5 + $0x7e8] sm:$0xff]
    %v701 = vld [vmem:[#allocation5 + $0x7f0] sm:$0xff]
    %v702 = vld [vmem:[#allocation5 + $0x7f8] sm:$0xff]
    %v703 = vld [vmem:[%s4] sm:$0xf]
    %v705 = vlaneseq
    %v706 = vshrl.u32 %v705, 7
    %v707 = vsub.s32 0, %v706
    %v708 = vrot.slane %v703, %v707
    %v709 = vlaneseq
    %v710 = vshrl.u32 %v709, 7
    %v711 = vsub.s32 1, %v710
    %v712 = vrot.slane %v703, %v711
    %v713 = vlaneseq
    %v714 = vshrl.u32 %v713, 7
    %v715 = vsub.s32 2, %v714
    %v716 = vrot.slane %v703, %v715
    %v717 = vlaneseq
    %v718 = vshrl.u32 %v717, 7
    %v719 = vsub.s32 3, %v718
    %v720 = vrot.slane %v703, %v719
    %v981 = vunpack.c.l.b16 %v447
    %v982 = vunpack.c.h.b16 %v447
    %v983 = vunpack.c.l.b16 %v448
    %v984 = vunpack.c.h.b16 %v448
    %v985 = vunpack.c.l.b16 %v449
    %v986 = vunpack.c.h.b16 %v449
    %v987 = vunpack.c.l.b16 %v450
    %v988 = vunpack.c.h.b16 %v450
    %v989 = vunpack.c.l.b16 %v451
    %v990 = vunpack.c.h.b16 %v451
    %v991 = vunpack.c.l.b16 %v452
    %v992 = vunpack.c.h.b16 %v452
    %v993 = vunpack.c.l.b16 %v453
    %v994 = vunpack.c.h.b16 %v453
    %v995 = vunpack.c.l.b16 %v454
    %v996 = vunpack.c.h.b16 %v454
    %v997 = vunpack.c.l.b16 %v455
    %v998 = vunpack.c.h.b16 %v455
    %v999 = vunpack.c.l.b16 %v456
    %v1000 = vunpack.c.h.b16 %v456
    %v1001 = vunpack.c.l.b16 %v457
    %v1002 = vunpack.c.h.b16 %v457
    %v1003 = vunpack.c.l.b16 %v458
    %v1004 = vunpack.c.h.b16 %v458
    %v1005 = vunpack.c.l.b16 %v459
    %v1006 = vunpack.c.h.b16 %v459
    %v1007 = vunpack.c.l.b16 %v460
    %v1008 = vunpack.c.h.b16 %v460
    %v1009 = vunpack.c.l.b16 %v461
    %v1010 = vunpack.c.h.b16 %v461
    %v1011 = vunpack.c.l.b16 %v462
    %v1012 = vunpack.c.h.b16 %v462
    %v1013 = vunpack.c.l.b16 %v463
    %v1014 = vunpack.c.h.b16 %v463
    %v1015 = vunpack.c.l.b16 %v464
    %v1016 = vunpack.c.h.b16 %v464
    %v1017 = vunpack.c.l.b16 %v465
    %v1018 = vunpack.c.h.b16 %v465
    %v1019 = vunpack.c.l.b16 %v466
    %v1020 = vunpack.c.h.b16 %v466
    %v1021 = vunpack.c.l.b16 %v467
    %v1022 = vunpack.c.h.b16 %v467
    %v1023 = vunpack.c.l.b16 %v468
    %v1024 = vunpack.c.h.b16 %v468
    %v1025 = vunpack.c.l.b16 %v469
    %v1026 = vunpack.c.h.b16 %v469
    %v1027 = vunpack.c.l.b16 %v470
    %v1028 = vunpack.c.h.b16 %v470
    %v1029 = vunpack.c.l.b16 %v471
    %v1030 = vunpack.c.h.b16 %v471
    %v1031 = vunpack.c.l.b16 %v472
    %v1032 = vunpack.c.h.b16 %v472
    %v1033 = vunpack.c.l.b16 %v473
    %v1034 = vunpack.c.h.b16 %v473
    %v1035 = vunpack.c.l.b16 %v474
    %v1036 = vunpack.c.h.b16 %v474
    %v1037 = vunpack.c.l.b16 %v475
    %v1038 = vunpack.c.h.b16 %v475
    %v1039 = vunpack.c.l.b16 %v476
    %v1040 = vunpack.c.h.b16 %v476
    %v1041 = vunpack.c.l.b16 %v477
    %v1042 = vunpack.c.h.b16 %v477
    %v1043 = vunpack.c.l.b16 %v478
    %v1044 = vunpack.c.h.b16 %v478
    %v1045 = vunpack.c.l.b16 %v479
    %v1046 = vunpack.c.h.b16 %v479
    %v1047 = vunpack.c.l.b16 %v480
    %v1048 = vunpack.c.h.b16 %v480
    %v1049 = vunpack.c.l.b16 %v481
    %v1050 = vunpack.c.h.b16 %v481
    %v1051 = vunpack.c.l.b16 %v482
    %v1052 = vunpack.c.h.b16 %v482
    %v1053 = vunpack.c.l.b16 %v483
    %v1054 = vunpack.c.h.b16 %v483
    %v1055 = vunpack.c.l.b16 %v484
    %v1056 = vunpack.c.h.b16 %v484
    %v1057 = vunpack.c.l.b16 %v485
    %v1058 = vunpack.c.h.b16 %v485
    %v1059 = vunpack.c.l.b16 %v486
    %v1060 = vunpack.c.h.b16 %v486
    %v1061 = vunpack.c.l.b16 %v487
    %v1062 = vunpack.c.h.b16 %v487
    %v1063 = vunpack.c.l.b16 %v488
    %v1064 = vunpack.c.h.b16 %v488
    %v1065 = vunpack.c.l.b16 %v489
    %v1066 = vunpack.c.h.b16 %v489
    %v1067 = vunpack.c.l.b16 %v490
    %v1068 = vunpack.c.h.b16 %v490
    %v1069 = vunpack.c.l.b16 %v491
    %v1070 = vunpack.c.h.b16 %v491
    %v1071 = vunpack.c.l.b16 %v492
    %v1072 = vunpack.c.h.b16 %v492
    %v1073 = vunpack.c.l.b16 %v493
    %v1074 = vunpack.c.h.b16 %v493
    %v1075 = vunpack.c.l.b16 %v494
    %v1076 = vunpack.c.h.b16 %v494
    %v1077 = vunpack.c.l.b16 %v495
    %v1078 = vunpack.c.h.b16 %v495
    %v1079 = vunpack.c.l.b16 %v496
    %v1080 = vunpack.c.h.b16 %v496
    %v1081 = vunpack.c.l.b16 %v497
    %v1082 = vunpack.c.h.b16 %v497
    %v1083 = vunpack.c.l.b16 %v498
    %v1084 = vunpack.c.h.b16 %v498
    %v1085 = vunpack.c.l.b16 %v499
    %v1086 = vunpack.c.h.b16 %v499
    %v1087 = vunpack.c.l.b16 %v500
    %v1088 = vunpack.c.h.b16 %v500
    %v1089 = vunpack.c.l.b16 %v501
    %v1090 = vunpack.c.h.b16 %v501
    %v1091 = vunpack.c.l.b16 %v502
    %v1092 = vunpack.c.h.b16 %v502
    %v1093 = vunpack.c.l.b16 %v503
    %v1094 = vunpack.c.h.b16 %v503
    %v1095 = vunpack.c.l.b16 %v504
    %v1096 = vunpack.c.h.b16 %v504
    %v1097 = vunpack.c.l.b16 %v505
    %v1098 = vunpack.c.h.b16 %v505
    %v1099 = vunpack.c.l.b16 %v506
    %v1100 = vunpack.c.h.b16 %v506
    %v1101 = vunpack.c.l.b16 %v507
    %v1102 = vunpack.c.h.b16 %v507
    %v1103 = vunpack.c.l.b16 %v508
    %v1104 = vunpack.c.h.b16 %v508
    %v1105 = vunpack.c.l.b16 %v509
    %v1106 = vunpack.c.h.b16 %v509
    %v1107 = vunpack.c.l.b16 %v510
    %v1108 = vunpack.c.h.b16 %v510
    %v1109 = vunpack.c.l.b16 %v511
    %v1110 = vunpack.c.h.b16 %v511
    %v1111 = vunpack.c.l.b16 %v512
    %v1112 = vunpack.c.h.b16 %v512
    %v1113 = vunpack.c.l.b16 %v513
    %v1114 = vunpack.c.h.b16 %v513
    %v1115 = vunpack.c.l.b16 %v514
    %v1116 = vunpack.c.h.b16 %v514
    %v1117 = vunpack.c.l.b16 %v515
    %v1118 = vunpack.c.h.b16 %v515
    %v1119 = vunpack.c.l.b16 %v516
    %v1120 = vunpack.c.h.b16 %v516
    %v1121 = vunpack.c.l.b16 %v517
    %v1122 = vunpack.c.h.b16 %v517
    %v1123 = vunpack.c.l.b16 %v518
    %v1124 = vunpack.c.h.b16 %v518
    %v1125 = vunpack.c.l.b16 %v519
    %v1126 = vunpack.c.h.b16 %v519
    %v1127 = vunpack.c.l.b16 %v520
    %v1128 = vunpack.c.h.b16 %v520
    %v1129 = vunpack.c.l.b16 %v521
    %v1130 = vunpack.c.h.b16 %v521
    %v1131 = vunpack.c.l.b16 %v522
    %v1132 = vunpack.c.h.b16 %v522
    %v1133 = vunpack.c.l.b16 %v523
    %v1134 = vunpack.c.h.b16 %v523
    %v1135 = vunpack.c.l.b16 %v524
    %v1136 = vunpack.c.h.b16 %v524
    %v1137 = vunpack.c.l.b16 %v525
    %v1138 = vunpack.c.h.b16 %v525
    %v1139 = vunpack.c.l.b16 %v526
    %v1140 = vunpack.c.h.b16 %v526
    %v1141 = vunpack.c.l.b16 %v527
    %v1142 = vunpack.c.h.b16 %v527
    %v1143 = vunpack.c.l.b16 %v528
    %v1144 = vunpack.c.h.b16 %v528
    %v1145 = vunpack.c.l.b16 %v529
    %v1146 = vunpack.c.h.b16 %v529
    %v1147 = vunpack.c.l.b16 %v530
    %v1148 = vunpack.c.h.b16 %v530
    %v1149 = vunpack.c.l.b16 %v531
    %v1150 = vunpack.c.h.b16 %v531
    %v1151 = vunpack.c.l.b16 %v532
    %v1152 = vunpack.c.h.b16 %v532
    %v1153 = vunpack.c.l.b16 %v533
    %v1154 = vunpack.c.h.b16 %v533
    %v1155 = vunpack.c.l.b16 %v534
    %v1156 = vunpack.c.h.b16 %v534
    %v1157 = vunpack.c.l.b16 %v535
    %v1158 = vunpack.c.h.b16 %v535
    %v1159 = vunpack.c.l.b16 %v536
    %v1160 = vunpack.c.h.b16 %v536
    %v1161 = vunpack.c.l.b16 %v537
    %v1162 = vunpack.c.h.b16 %v537
    %v1163 = vunpack.c.l.b16 %v538
    %v1164 = vunpack.c.h.b16 %v538
    %v1165 = vunpack.c.l.b16 %v539
    %v1166 = vunpack.c.h.b16 %v539
    %v1167 = vunpack.c.l.b16 %v540
    %v1168 = vunpack.c.h.b16 %v540
    %v1169 = vunpack.c.l.b16 %v541
    %v1170 = vunpack.c.h.b16 %v541
    %v1171 = vunpack.c.l.b16 %v542
    %v1172 = vunpack.c.h.b16 %v542
    %v1173 = vunpack.c.l.b16 %v543
    %v1174 = vunpack.c.h.b16 %v543
    %v1175 = vunpack.c.l.b16 %v544
    %v1176 = vunpack.c.h.b16 %v544
    %v1177 = vunpack.c.l.b16 %v545
    %v1178 = vunpack.c.h.b16 %v545
    %v1179 = vunpack.c.l.b16 %v546
    %v1180 = vunpack.c.h.b16 %v546
    %v1181 = vunpack.c.l.b16 %v547
    %v1182 = vunpack.c.h.b16 %v547
    %v1183 = vunpack.c.l.b16 %v548
    %v1184 = vunpack.c.h.b16 %v548
    %v1185 = vunpack.c.l.b16 %v549
    %v1186 = vunpack.c.h.b16 %v549
    %v1187 = vunpack.c.l.b16 %v550
    %v1188 = vunpack.c.h.b16 %v550
    %v1189 = vunpack.c.l.b16 %v551
    %v1190 = vunpack.c.h.b16 %v551
    %v1191 = vunpack.c.l.b16 %v552
    %v1192 = vunpack.c.h.b16 %v552
    %v1193 = vunpack.c.l.b16 %v553
    %v1194 = vunpack.c.h.b16 %v553
    %v1195 = vunpack.c.l.b16 %v554
    %v1196 = vunpack.c.h.b16 %v554
    %v1197 = vunpack.c.l.b16 %v555
    %v1198 = vunpack.c.h.b16 %v555
    %v1199 = vunpack.c.l.b16 %v556
    %v1200 = vunpack.c.h.b16 %v556
    %v1201 = vunpack.c.l.b16 %v557
    %v1202 = vunpack.c.h.b16 %v557
    %v1203 = vunpack.c.l.b16 %v558
    %v1204 = vunpack.c.h.b16 %v558
    %v1205 = vunpack.c.l.b16 %v559
    %v1206 = vunpack.c.h.b16 %v559
    %v1207 = vunpack.c.l.b16 %v560
    %v1208 = vunpack.c.h.b16 %v560
    %v1209 = vunpack.c.l.b16 %v561
    %v1210 = vunpack.c.h.b16 %v561
    %v1211 = vunpack.c.l.b16 %v562
    %v1212 = vunpack.c.h.b16 %v562
    %v1213 = vunpack.c.l.b16 %v563
    %v1214 = vunpack.c.h.b16 %v563
    %v1215 = vunpack.c.l.b16 %v564
    %v1216 = vunpack.c.h.b16 %v564
    %v1217 = vunpack.c.l.b16 %v565
    %v1218 = vunpack.c.h.b16 %v565
    %v1219 = vunpack.c.l.b16 %v566
    %v1220 = vunpack.c.h.b16 %v566
    %v1221 = vunpack.c.l.b16 %v567
    %v1222 = vunpack.c.h.b16 %v567
    %v1223 = vunpack.c.l.b16 %v568
    %v1224 = vunpack.c.h.b16 %v568
    %v1225 = vunpack.c.l.b16 %v569
    %v1226 = vunpack.c.h.b16 %v569
    %v1227 = vunpack.c.l.b16 %v570
    %v1228 = vunpack.c.h.b16 %v570
    %v1229 = vunpack.c.l.b16 %v571
    %v1230 = vunpack.c.h.b16 %v571
    %v1231 = vunpack.c.l.b16 %v572
    %v1232 = vunpack.c.h.b16 %v572
    %v1233 = vunpack.c.l.b16 %v573
    %v1234 = vunpack.c.h.b16 %v573
    %v1235 = vunpack.c.l.b16 %v574
    %v1236 = vunpack.c.h.b16 %v574
    %v1237 = vunpack.c.l.b16 %v575
    %v1238 = vunpack.c.h.b16 %v575
    %v1239 = vunpack.c.l.b16 %v576
    %v1240 = vunpack.c.h.b16 %v576
    %v1241 = vunpack.c.l.b16 %v577
    %v1242 = vunpack.c.h.b16 %v577
    %v1243 = vunpack.c.l.b16 %v578
    %v1244 = vunpack.c.h.b16 %v578
    %v1245 = vunpack.c.l.b16 %v579
    %v1246 = vunpack.c.h.b16 %v579
    %v1247 = vunpack.c.l.b16 %v580
    %v1248 = vunpack.c.h.b16 %v580
    %v1249 = vunpack.c.l.b16 %v581
    %v1250 = vunpack.c.h.b16 %v581
    %v1251 = vunpack.c.l.b16 %v582
    %v1252 = vunpack.c.h.b16 %v582
    %v1253 = vunpack.c.l.b16 %v583
    %v1254 = vunpack.c.h.b16 %v583
    %v1255 = vunpack.c.l.b16 %v584
    %v1256 = vunpack.c.h.b16 %v584
    %v1257 = vunpack.c.l.b16 %v585
    %v1258 = vunpack.c.h.b16 %v585
    %v1259 = vunpack.c.l.b16 %v586
    %v1260 = vunpack.c.h.b16 %v586
    %v1261 = vunpack.c.l.b16 %v587
    %v1262 = vunpack.c.h.b16 %v587
    %v1263 = vunpack.c.l.b16 %v588
    %v1264 = vunpack.c.h.b16 %v588
    %v1265 = vunpack.c.l.b16 %v589
    %v1266 = vunpack.c.h.b16 %v589
    %v1267 = vunpack.c.l.b16 %v590
    %v1268 = vunpack.c.h.b16 %v590
    %v1269 = vunpack.c.l.b16 %v591
    %v1270 = vunpack.c.h.b16 %v591
    %v1271 = vunpack.c.l.b16 %v592
    %v1272 = vunpack.c.h.b16 %v592
    %v1273 = vunpack.c.l.b16 %v593
    %v1274 = vunpack.c.h.b16 %v593
    %v1275 = vunpack.c.l.b16 %v594
    %v1276 = vunpack.c.h.b16 %v594
    %v1277 = vunpack.c.l.b16 %v595
    %v1278 = vunpack.c.h.b16 %v595
    %v1279 = vunpack.c.l.b16 %v596
    %v1280 = vunpack.c.h.b16 %v596
    %v1281 = vunpack.c.l.b16 %v597
    %v1282 = vunpack.c.h.b16 %v597
    %v1283 = vunpack.c.l.b16 %v598
    %v1284 = vunpack.c.h.b16 %v598
    %v1285 = vunpack.c.l.b16 %v599
    %v1286 = vunpack.c.h.b16 %v599
    %v1287 = vunpack.c.l.b16 %v600
    %v1288 = vunpack.c.h.b16 %v600
    %v1289 = vunpack.c.l.b16 %v601
    %v1290 = vunpack.c.h.b16 %v601
    %v1291 = vunpack.c.l.b16 %v602
    %v1292 = vunpack.c.h.b16 %v602
    %v1293 = vunpack.c.l.b16 %v603
    %v1294 = vunpack.c.h.b16 %v603
    %v1295 = vunpack.c.l.b16 %v604
    %v1296 = vunpack.c.h.b16 %v604
    %v1297 = vunpack.c.l.b16 %v605
    %v1298 = vunpack.c.h.b16 %v605
    %v1299 = vunpack.c.l.b16 %v606
    %v1300 = vunpack.c.h.b16 %v606
    %v1301 = vunpack.c.l.b16 %v607
    %v1302 = vunpack.c.h.b16 %v607
    %v1303 = vunpack.c.l.b16 %v608
    %v1304 = vunpack.c.h.b16 %v608
    %v1305 = vunpack.c.l.b16 %v609
    %v1306 = vunpack.c.h.b16 %v609
    %v1307 = vunpack.c.l.b16 %v610
    %v1308 = vunpack.c.h.b16 %v610
    %v1309 = vunpack.c.l.b16 %v611
    %v1310 = vunpack.c.h.b16 %v611
    %v1311 = vunpack.c.l.b16 %v612
    %v1312 = vunpack.c.h.b16 %v612
    %v1313 = vunpack.c.l.b16 %v613
    %v1314 = vunpack.c.h.b16 %v613
    %v1315 = vunpack.c.l.b16 %v614
    %v1316 = vunpack.c.h.b16 %v614
    %v1317 = vunpack.c.l.b16 %v615
    %v1318 = vunpack.c.h.b16 %v615
    %v1319 = vunpack.c.l.b16 %v616
    %v1320 = vunpack.c.h.b16 %v616
    %v1321 = vunpack.c.l.b16 %v617
    %v1322 = vunpack.c.h.b16 %v617
    %v1323 = vunpack.c.l.b16 %v618
    %v1324 = vunpack.c.h.b16 %v618
    %v1325 = vunpack.c.l.b16 %v619
    %v1326 = vunpack.c.h.b16 %v619
    %v1327 = vunpack.c.l.b16 %v620
    %v1328 = vunpack.c.h.b16 %v620
    %v1329 = vunpack.c.l.b16 %v621
    %v1330 = vunpack.c.h.b16 %v621
    %v1331 = vunpack.c.l.b16 %v622
    %v1332 = vunpack.c.h.b16 %v622
    %v1333 = vunpack.c.l.b16 %v623
    %v1334 = vunpack.c.h.b16 %v623
    %v1335 = vunpack.c.l.b16 %v624
    %v1336 = vunpack.c.h.b16 %v624
    %v1337 = vunpack.c.l.b16 %v625
    %v1338 = vunpack.c.h.b16 %v625
    %v1339 = vunpack.c.l.b16 %v626
    %v1340 = vunpack.c.h.b16 %v626
    %v1341 = vunpack.c.l.b16 %v627
    %v1342 = vunpack.c.h.b16 %v627
    %v1343 = vunpack.c.l.b16 %v628
    %v1344 = vunpack.c.h.b16 %v628
    %v1345 = vunpack.c.l.b16 %v629
    %v1346 = vunpack.c.h.b16 %v629
    %v1347 = vunpack.c.l.b16 %v630
    %v1348 = vunpack.c.h.b16 %v630
    %v1349 = vunpack.c.l.b16 %v631
    %v1350 = vunpack.c.h.b16 %v631
    %v1351 = vunpack.c.l.b16 %v632
    %v1352 = vunpack.c.h.b16 %v632
    %v1353 = vunpack.c.l.b16 %v633
    %v1354 = vunpack.c.h.b16 %v633
    %v1355 = vunpack.c.l.b16 %v634
    %v1356 = vunpack.c.h.b16 %v634
    %v1357 = vunpack.c.l.b16 %v635
    %v1358 = vunpack.c.h.b16 %v635
    %v1359 = vunpack.c.l.b16 %v636
    %v1360 = vunpack.c.h.b16 %v636
    %v1361 = vunpack.c.l.b16 %v637
    %v1362 = vunpack.c.h.b16 %v637
    %v1363 = vunpack.c.l.b16 %v638
    %v1364 = vunpack.c.h.b16 %v638
    %v1365 = vunpack.c.l.b16 %v639
    %v1366 = vunpack.c.h.b16 %v639
    %v1367 = vunpack.c.l.b16 %v640
    %v1368 = vunpack.c.h.b16 %v640
    %v1369 = vunpack.c.l.b16 %v641
    %v1370 = vunpack.c.h.b16 %v641
    %v1371 = vunpack.c.l.b16 %v642
    %v1372 = vunpack.c.h.b16 %v642
    %v1373 = vunpack.c.l.b16 %v643
    %v1374 = vunpack.c.h.b16 %v643
    %v1375 = vunpack.c.l.b16 %v644
    %v1376 = vunpack.c.h.b16 %v644
    %v1377 = vunpack.c.l.b16 %v645
    %v1378 = vunpack.c.h.b16 %v645
    %v1379 = vunpack.c.l.b16 %v646
    %v1380 = vunpack.c.h.b16 %v646
    %v1381 = vunpack.c.l.b16 %v647
    %v1382 = vunpack.c.h.b16 %v647
    %v1383 = vunpack.c.l.b16 %v648
    %v1384 = vunpack.c.h.b16 %v648
    %v1385 = vunpack.c.l.b16 %v649
    %v1386 = vunpack.c.h.b16 %v649
    %v1387 = vunpack.c.l.b16 %v650
    %v1388 = vunpack.c.h.b16 %v650
    %v1389 = vunpack.c.l.b16 %v651
    %v1390 = vunpack.c.h.b16 %v651
    %v1391 = vunpack.c.l.b16 %v652
    %v1392 = vunpack.c.h.b16 %v652
    %v1393 = vunpack.c.l.b16 %v653
    %v1394 = vunpack.c.h.b16 %v653
    %v1395 = vunpack.c.l.b16 %v654
    %v1396 = vunpack.c.h.b16 %v654
    %v1397 = vunpack.c.l.b16 %v655
    %v1398 = vunpack.c.h.b16 %v655
    %v1399 = vunpack.c.l.b16 %v656
    %v1400 = vunpack.c.h.b16 %v656
    %v1401 = vunpack.c.l.b16 %v657
    %v1402 = vunpack.c.h.b16 %v657
    %v1403 = vunpack.c.l.b16 %v658
    %v1404 = vunpack.c.h.b16 %v658
    %v1405 = vunpack.c.l.b16 %v659
    %v1406 = vunpack.c.h.b16 %v659
    %v1407 = vunpack.c.l.b16 %v660
    %v1408 = vunpack.c.h.b16 %v660
    %v1409 = vunpack.c.l.b16 %v661
    %v1410 = vunpack.c.h.b16 %v661
    %v1411 = vunpack.c.l.b16 %v662
    %v1412 = vunpack.c.h.b16 %v662
    %v1413 = vunpack.c.l.b16 %v663
    %v1414 = vunpack.c.h.b16 %v663
    %v1415 = vunpack.c.l.b16 %v664
    %v1416 = vunpack.c.h.b16 %v664
    %v1417 = vunpack.c.l.b16 %v665
    %v1418 = vunpack.c.h.b16 %v665
    %v1419 = vunpack.c.l.b16 %v666
    %v1420 = vunpack.c.h.b16 %v666
    %v1421 = vunpack.c.l.b16 %v667
    %v1422 = vunpack.c.h.b16 %v667
    %v1423 = vunpack.c.l.b16 %v668
    %v1424 = vunpack.c.h.b16 %v668
    %v1425 = vunpack.c.l.b16 %v669
    %v1426 = vunpack.c.h.b16 %v669
    %v1427 = vunpack.c.l.b16 %v670
    %v1428 = vunpack.c.h.b16 %v670
    %v1429 = vunpack.c.l.b16 %v671
    %v1430 = vunpack.c.h.b16 %v671
    %v1431 = vunpack.c.l.b16 %v672
    %v1432 = vunpack.c.h.b16 %v672
    %v1433 = vunpack.c.l.b16 %v673
    %v1434 = vunpack.c.h.b16 %v673
    %v1435 = vunpack.c.l.b16 %v674
    %v1436 = vunpack.c.h.b16 %v674
    %v1437 = vunpack.c.l.b16 %v675
    %v1438 = vunpack.c.h.b16 %v675
    %v1439 = vunpack.c.l.b16 %v676
    %v1440 = vunpack.c.h.b16 %v676
    %v1441 = vunpack.c.l.b16 %v677
    %v1442 = vunpack.c.h.b16 %v677
    %v1443 = vunpack.c.l.b16 %v678
    %v1444 = vunpack.c.h.b16 %v678
    %v1445 = vunpack.c.l.b16 %v679
    %v1446 = vunpack.c.h.b16 %v679
    %v1447 = vunpack.c.l.b16 %v680
    %v1448 = vunpack.c.h.b16 %v680
    %v1449 = vunpack.c.l.b16 %v681
    %v1450 = vunpack.c.h.b16 %v681
    %v1451 = vunpack.c.l.b16 %v682
    %v1452 = vunpack.c.h.b16 %v682
    %v1453 = vunpack.c.l.b16 %v683
    %v1454 = vunpack.c.h.b16 %v683
    %v1455 = vunpack.c.l.b16 %v684
    %v1456 = vunpack.c.h.b16 %v684
    %v1457 = vunpack.c.l.b16 %v685
    %v1458 = vunpack.c.h.b16 %v685
    %v1459 = vunpack.c.l.b16 %v686
    %v1460 = vunpack.c.h.b16 %v686
    %v1461 = vunpack.c.l.b16 %v687
    %v1462 = vunpack.c.h.b16 %v687
    %v1463 = vunpack.c.l.b16 %v688
    %v1464 = vunpack.c.h.b16 %v688
    %v1465 = vunpack.c.l.b16 %v689
    %v1466 = vunpack.c.h.b16 %v689
    %v1467 = vunpack.c.l.b16 %v690
    %v1468 = vunpack.c.h.b16 %v690
    %v1469 = vunpack.c.l.b16 %v691
    %v1470 = vunpack.c.h.b16 %v691
    %v1471 = vunpack.c.l.b16 %v692
    %v1472 = vunpack.c.h.b16 %v692
    %v1473 = vunpack.c.l.b16 %v693
    %v1474 = vunpack.c.h.b16 %v693
    %v1475 = vunpack.c.l.b16 %v694
    %v1476 = vunpack.c.h.b16 %v694
    %v1477 = vunpack.c.l.b16 %v695
    %v1478 = vunpack.c.h.b16 %v695
    %v1479 = vunpack.c.l.b16 %v696
    %v1480 = vunpack.c.h.b16 %v696
    %v1481 = vunpack.c.l.b16 %v697
    %v1482 = vunpack.c.h.b16 %v697
    %v1483 = vunpack.c.l.b16 %v698
    %v1484 = vunpack.c.h.b16 %v698
    %v1485 = vunpack.c.l.b16 %v699
    %v1486 = vunpack.c.h.b16 %v699
    %v1487 = vunpack.c.l.b16 %v700
    %v1488 = vunpack.c.h.b16 %v700
    %v1489 = vunpack.c.l.b16 %v701
    %v1490 = vunpack.c.h.b16 %v701
    %v1491 = vunpack.c.l.b16 %v702
    %v1492 = vunpack.c.h.b16 %v702
    %v1493 = vpack.c.b16 %v985, %v981
    %v1494 = vpack.c.b16 %v986, %v982
    %v1495 = vpack.c.b16 %v987, %v983
    %v1496 = vpack.c.b16 %v988, %v984
    %v1497 = vpack.c.b16 %v993, %v989
    %v1498 = vpack.c.b16 %v994, %v990
    %v1499 = vpack.c.b16 %v995, %v991
    %v1500 = vpack.c.b16 %v996, %v992
    %v1501 = vpack.c.b16 %v1001, %v997
    %v1502 = vpack.c.b16 %v1002, %v998
    %v1503 = vpack.c.b16 %v1003, %v999
    %v1504 = vpack.c.b16 %v1004, %v1000
    %v1505 = vpack.c.b16 %v1009, %v1005
    %v1506 = vpack.c.b16 %v1010, %v1006
    %v1507 = vpack.c.b16 %v1011, %v1007
    %v1508 = vpack.c.b16 %v1012, %v1008
    %v1509 = vpack.c.b16 %v1017, %v1013
    %v1510 = vpack.c.b16 %v1018, %v1014
    %v1511 = vpack.c.b16 %v1019, %v1015
    %v1512 = vpack.c.b16 %v1020, %v1016
    %v1513 = vpack.c.b16 %v1025, %v1021
    %v1514 = vpack.c.b16 %v1026, %v1022
    %v1515 = vpack.c.b16 %v1027, %v1023
    %v1516 = vpack.c.b16 %v1028, %v1024
    %v1517 = vpack.c.b16 %v1033, %v1029
    %v1518 = vpack.c.b16 %v1034, %v1030
    %v1519 = vpack.c.b16 %v1035, %v1031
    %v1520 = vpack.c.b16 %v1036, %v1032
    %v1521 = vpack.c.b16 %v1041, %v1037
    %v1522 = vpack.c.b16 %v1042, %v1038
    %v1523 = vpack.c.b16 %v1043, %v1039
    %v1524 = vpack.c.b16 %v1044, %v1040
    %v1525 = vpack.c.b16 %v1049, %v1045
    %v1526 = vpack.c.b16 %v1050, %v1046
    %v1527 = vpack.c.b16 %v1051, %v1047
    %v1528 = vpack.c.b16 %v1052, %v1048
    %v1529 = vpack.c.b16 %v1057, %v1053
    %v1530 = vpack.c.b16 %v1058, %v1054
    %v1531 = vpack.c.b16 %v1059, %v1055
    %v1532 = vpack.c.b16 %v1060, %v1056
    %v1533 = vpack.c.b16 %v1065, %v1061
    %v1534 = vpack.c.b16 %v1066, %v1062
    %v1535 = vpack.c.b16 %v1067, %v1063
    %v1536 = vpack.c.b16 %v1068, %v1064
    %v1537 = vpack.c.b16 %v1073, %v1069
    %v1538 = vpack.c.b16 %v1074, %v1070
    %v1539 = vpack.c.b16 %v1075, %v1071
    %v1540 = vpack.c.b16 %v1076, %v1072
    %v1541 = vpack.c.b16 %v1081, %v1077
    %v1542 = vpack.c.b16 %v1082, %v1078
    %v1543 = vpack.c.b16 %v1083, %v1079
    %v1544 = vpack.c.b16 %v1084, %v1080
    %v1545 = vpack.c.b16 %v1089, %v1085
    %v1546 = vpack.c.b16 %v1090, %v1086
    %v1547 = vpack.c.b16 %v1091, %v1087
    %v1548 = vpack.c.b16 %v1092, %v1088
    %v1549 = vpack.c.b16 %v1097, %v1093
    %v1550 = vpack.c.b16 %v1098, %v1094
    %v1551 = vpack.c.b16 %v1099, %v1095
    %v1552 = vpack.c.b16 %v1100, %v1096
    %v1553 = vpack.c.b16 %v1105, %v1101
    %v1554 = vpack.c.b16 %v1106, %v1102
    %v1555 = vpack.c.b16 %v1107, %v1103
    %v1556 = vpack.c.b16 %v1108, %v1104
    %v1557 = vpack.c.b16 %v1113, %v1109
    %v1558 = vpack.c.b16 %v1114, %v1110
    %v1559 = vpack.c.b16 %v1115, %v1111
    %v1560 = vpack.c.b16 %v1116, %v1112
    %v1561 = vpack.c.b16 %v1121, %v1117
    %v1562 = vpack.c.b16 %v1122, %v1118
    %v1563 = vpack.c.b16 %v1123, %v1119
    %v1564 = vpack.c.b16 %v1124, %v1120
    %v1565 = vpack.c.b16 %v1129, %v1125
    %v1566 = vpack.c.b16 %v1130, %v1126
    %v1567 = vpack.c.b16 %v1131, %v1127
    %v1568 = vpack.c.b16 %v1132, %v1128
    %v1569 = vpack.c.b16 %v1137, %v1133
    %v1570 = vpack.c.b16 %v1138, %v1134
    %v1571 = vpack.c.b16 %v1139, %v1135
    %v1572 = vpack.c.b16 %v1140, %v1136
    %v1573 = vpack.c.b16 %v1145, %v1141
    %v1574 = vpack.c.b16 %v1146, %v1142
    %v1575 = vpack.c.b16 %v1147, %v1143
    %v1576 = vpack.c.b16 %v1148, %v1144
    %v1577 = vpack.c.b16 %v1153, %v1149
    %v1578 = vpack.c.b16 %v1154, %v1150
    %v1579 = vpack.c.b16 %v1155, %v1151
    %v1580 = vpack.c.b16 %v1156, %v1152
    %v1581 = vpack.c.b16 %v1161, %v1157
    %v1582 = vpack.c.b16 %v1162, %v1158
    %v1583 = vpack.c.b16 %v1163, %v1159
    %v1584 = vpack.c.b16 %v1164, %v1160
    %v1585 = vpack.c.b16 %v1169, %v1165
    %v1586 = vpack.c.b16 %v1170, %v1166
    %v1587 = vpack.c.b16 %v1171, %v1167
    %v1588 = vpack.c.b16 %v1172, %v1168
    %v1589 = vpack.c.b16 %v1177, %v1173
    %v1590 = vpack.c.b16 %v1178, %v1174
    %v1591 = vpack.c.b16 %v1179, %v1175
    %v1592 = vpack.c.b16 %v1180, %v1176
    %v1593 = vpack.c.b16 %v1185, %v1181
    %v1594 = vpack.c.b16 %v1186, %v1182
    %v1595 = vpack.c.b16 %v1187, %v1183
    %v1596 = vpack.c.b16 %v1188, %v1184
    %v1597 = vpack.c.b16 %v1193, %v1189
    %v1598 = vpack.c.b16 %v1194, %v1190
    %v1599 = vpack.c.b16 %v1195, %v1191
    %v1600 = vpack.c.b16 %v1196, %v1192
    %v1601 = vpack.c.b16 %v1201, %v1197
    %v1602 = vpack.c.b16 %v1202, %v1198
    %v1603 = vpack.c.b16 %v1203, %v1199
    %v1604 = vpack.c.b16 %v1204, %v1200
    %v1605 = vpack.c.b16 %v1209, %v1205
    %v1606 = vpack.c.b16 %v1210, %v1206
    %v1607 = vpack.c.b16 %v1211, %v1207
    %v1608 = vpack.c.b16 %v1212, %v1208
    %v1609 = vpack.c.b16 %v1217, %v1213
    %v1610 = vpack.c.b16 %v1218, %v1214
    %v1611 = vpack.c.b16 %v1219, %v1215
    %v1612 = vpack.c.b16 %v1220, %v1216
    %v1613 = vpack.c.b16 %v1225, %v1221
    %v1614 = vpack.c.b16 %v1226, %v1222
    %v1615 = vpack.c.b16 %v1227, %v1223
    %v1616 = vpack.c.b16 %v1228, %v1224
    %v1617 = vpack.c.b16 %v1233, %v1229
    %v1618 = vpack.c.b16 %v1234, %v1230
    %v1619 = vpack.c.b16 %v1235, %v1231
    %v1620 = vpack.c.b16 %v1236, %v1232
    %v1621 = vpack.c.b16 %v1241, %v1237
    %v1622 = vpack.c.b16 %v1242, %v1238
    %v1623 = vpack.c.b16 %v1243, %v1239
    %v1624 = vpack.c.b16 %v1244, %v1240
    %v1625 = vpack.c.b16 %v1249, %v1245
    %v1626 = vpack.c.b16 %v1250, %v1246
    %v1627 = vpack.c.b16 %v1251, %v1247
    %v1628 = vpack.c.b16 %v1252, %v1248
    %v1629 = vpack.c.b16 %v1257, %v1253
    %v1630 = vpack.c.b16 %v1258, %v1254
    %v1631 = vpack.c.b16 %v1259, %v1255
    %v1632 = vpack.c.b16 %v1260, %v1256
    %v1633 = vpack.c.b16 %v1265, %v1261
    %v1634 = vpack.c.b16 %v1266, %v1262
    %v1635 = vpack.c.b16 %v1267, %v1263
    %v1636 = vpack.c.b16 %v1268, %v1264
    %v1637 = vpack.c.b16 %v1273, %v1269
    %v1638 = vpack.c.b16 %v1274, %v1270
    %v1639 = vpack.c.b16 %v1275, %v1271
    %v1640 = vpack.c.b16 %v1276, %v1272
    %v1641 = vpack.c.b16 %v1281, %v1277
    %v1642 = vpack.c.b16 %v1282, %v1278
    %v1643 = vpack.c.b16 %v1283, %v1279
    %v1644 = vpack.c.b16 %v1284, %v1280
    %v1645 = vpack.c.b16 %v1289, %v1285
    %v1646 = vpack.c.b16 %v1290, %v1286
    %v1647 = vpack.c.b16 %v1291, %v1287
    %v1648 = vpack.c.b16 %v1292, %v1288
    %v1649 = vpack.c.b16 %v1297, %v1293
    %v1650 = vpack.c.b16 %v1298, %v1294
    %v1651 = vpack.c.b16 %v1299, %v1295
    %v1652 = vpack.c.b16 %v1300, %v1296
    %v1653 = vpack.c.b16 %v1305, %v1301
    %v1654 = vpack.c.b16 %v1306, %v1302
    %v1655 = vpack.c.b16 %v1307, %v1303
    %v1656 = vpack.c.b16 %v1308, %v1304
    %v1657 = vpack.c.b16 %v1313, %v1309
    %v1658 = vpack.c.b16 %v1314, %v1310
    %v1659 = vpack.c.b16 %v1315, %v1311
    %v1660 = vpack.c.b16 %v1316, %v1312
    %v1661 = vpack.c.b16 %v1321, %v1317
    %v1662 = vpack.c.b16 %v1322, %v1318
    %v1663 = vpack.c.b16 %v1323, %v1319
    %v1664 = vpack.c.b16 %v1324, %v1320
    %v1665 = vpack.c.b16 %v1329, %v1325
    %v1666 = vpack.c.b16 %v1330, %v1326
    %v1667 = vpack.c.b16 %v1331, %v1327
    %v1668 = vpack.c.b16 %v1332, %v1328
    %v1669 = vpack.c.b16 %v1337, %v1333
    %v1670 = vpack.c.b16 %v1338, %v1334
    %v1671 = vpack.c.b16 %v1339, %v1335
    %v1672 = vpack.c.b16 %v1340, %v1336
    %v1673 = vpack.c.b16 %v1345, %v1341
    %v1674 = vpack.c.b16 %v1346, %v1342
    %v1675 = vpack.c.b16 %v1347, %v1343
    %v1676 = vpack.c.b16 %v1348, %v1344
    %v1677 = vpack.c.b16 %v1353, %v1349
    %v1678 = vpack.c.b16 %v1354, %v1350
    %v1679 = vpack.c.b16 %v1355, %v1351
    %v1680 = vpack.c.b16 %v1356, %v1352
    %v1681 = vpack.c.b16 %v1361, %v1357
    %v1682 = vpack.c.b16 %v1362, %v1358
    %v1683 = vpack.c.b16 %v1363, %v1359
    %v1684 = vpack.c.b16 %v1364, %v1360
    %v1685 = vpack.c.b16 %v1369, %v1365
    %v1686 = vpack.c.b16 %v1370, %v1366
    %v1687 = vpack.c.b16 %v1371, %v1367
    %v1688 = vpack.c.b16 %v1372, %v1368
    %v1689 = vpack.c.b16 %v1377, %v1373
    %v1690 = vpack.c.b16 %v1378, %v1374
    %v1691 = vpack.c.b16 %v1379, %v1375
    %v1692 = vpack.c.b16 %v1380, %v1376
    %v1693 = vpack.c.b16 %v1385, %v1381
    %v1694 = vpack.c.b16 %v1386, %v1382
    %v1695 = vpack.c.b16 %v1387, %v1383
    %v1696 = vpack.c.b16 %v1388, %v1384
    %v1697 = vpack.c.b16 %v1393, %v1389
    %v1698 = vpack.c.b16 %v1394, %v1390
    %v1699 = vpack.c.b16 %v1395, %v1391
    %v1700 = vpack.c.b16 %v1396, %v1392
    %v1701 = vpack.c.b16 %v1401, %v1397
    %v1702 = vpack.c.b16 %v1402, %v1398
    %v1703 = vpack.c.b16 %v1403, %v1399
    %v1704 = vpack.c.b16 %v1404, %v1400
    %v1705 = vpack.c.b16 %v1409, %v1405
    %v1706 = vpack.c.b16 %v1410, %v1406
    %v1707 = vpack.c.b16 %v1411, %v1407
    %v1708 = vpack.c.b16 %v1412, %v1408
    %v1709 = vpack.c.b16 %v1417, %v1413
    %v1710 = vpack.c.b16 %v1418, %v1414
    %v1711 = vpack.c.b16 %v1419, %v1415
    %v1712 = vpack.c.b16 %v1420, %v1416
    %v1713 = vpack.c.b16 %v1425, %v1421
    %v1714 = vpack.c.b16 %v1426, %v1422
    %v1715 = vpack.c.b16 %v1427, %v1423
    %v1716 = vpack.c.b16 %v1428, %v1424
    %v1717 = vpack.c.b16 %v1433, %v1429
    %v1718 = vpack.c.b16 %v1434, %v1430
    %v1719 = vpack.c.b16 %v1435, %v1431
    %v1720 = vpack.c.b16 %v1436, %v1432
    %v1721 = vpack.c.b16 %v1441, %v1437
    %v1722 = vpack.c.b16 %v1442, %v1438
    %v1723 = vpack.c.b16 %v1443, %v1439
    %v1724 = vpack.c.b16 %v1444, %v1440
    %v1725 = vpack.c.b16 %v1449, %v1445
    %v1726 = vpack.c.b16 %v1450, %v1446
    %v1727 = vpack.c.b16 %v1451, %v1447
    %v1728 = vpack.c.b16 %v1452, %v1448
    %v1729 = vpack.c.b16 %v1457, %v1453
    %v1730 = vpack.c.b16 %v1458, %v1454
    %v1731 = vpack.c.b16 %v1459, %v1455
    %v1732 = vpack.c.b16 %v1460, %v1456
    %v1733 = vpack.c.b16 %v1465, %v1461
    %v1734 = vpack.c.b16 %v1466, %v1462
    %v1735 = vpack.c.b16 %v1467, %v1463
    %v1736 = vpack.c.b16 %v1468, %v1464
    %v1737 = vpack.c.b16 %v1473, %v1469
    %v1738 = vpack.c.b16 %v1474, %v1470
    %v1739 = vpack.c.b16 %v1475, %v1471
    %v1740 = vpack.c.b16 %v1476, %v1472
    %v1741 = vpack.c.b16 %v1481, %v1477
    %v1742 = vpack.c.b16 %v1482, %v1478
    %v1743 = vpack.c.b16 %v1483, %v1479
    %v1744 = vpack.c.b16 %v1484, %v1480
    %v1745 = vpack.c.b16 %v1489, %v1485
    %v1746 = vpack.c.b16 %v1490, %v1486
    %v1747 = vpack.c.b16 %v1491, %v1487
    %v1748 = vpack.c.b16 %v1492, %v1488
    %2005 = vmatprep.subr.bf16.mxu0 %v1522
    %2006 = vmatpush1.bf16.msra.mxu0 %v1521
    %2007 = vmatprep.subr.bf16.mxu0 %v1518
    %2008 = vmatpush1.bf16.msra.mxu0 %v1517
    %2009 = vmatprep.subr.bf16.mxu0 %v1514
    %2010 = vmatpush1.bf16.msra.mxu0 %v1513
    %2011 = vmatprep.subr.bf16.mxu0 %v1510
    %2012 = vmatpush1.bf16.msra.mxu0 %v1509
    %2013 = vmatprep.subr.bf16.mxu0 %v1506
    %2014 = vmatpush1.bf16.msra.mxu0 %v1505
    %2015 = vmatprep.subr.bf16.mxu0 %v1502
    %2016 = vmatpush1.bf16.msra.mxu0 %v1501
    %2017 = vmatprep.subr.bf16.mxu0 %v1498
    %2018 = vmatpush1.bf16.msra.mxu0 %v1497
    %2019 = vmatprep.subr.bf16.mxu0 %v1494
    %2020 = vmatpush1.bf16.msra.mxu0 %v1493
    %2021 = vmatprep.subr.bf16.mxu0 %v1554
    %2022 = vmatpush2.bf16.msra.mxu0 %v1553
    %2023 = vmatprep.subr.bf16.mxu0 %v1550
    %2024 = vmatpush2.bf16.msra.mxu0 %v1549
    %2025 = vmatprep.subr.bf16.mxu0 %v1546
    %2026 = vmatpush2.bf16.msra.mxu0 %v1545
    %2027 = vmatprep.subr.bf16.mxu0 %v1542
    %2028 = vmatpush2.bf16.msra.mxu0 %v1541
    %2029 = vmatprep.subr.bf16.mxu0 %v1538
    %2030 = vmatpush2.bf16.msra.mxu0 %v1537
    %2031 = vmatprep.subr.bf16.mxu0 %v1534
    %2032 = vmatpush2.bf16.msra.mxu0 %v1533
    %2033 = vmatprep.subr.bf16.mxu0 %v1530
    %2034 = vmatpush2.bf16.msra.mxu0 %v1529
    %2035 = vmatprep.subr.bf16.mxu0 %v1526
    %2036 = vmatpush2.bf16.msra.mxu0 %v1525
    %2037 = vmatprep.mubr.bf16.mxu0 %v440
    %2038 = vmatmul.mubr.bf16.gmra.mxu0 %v439
    %v2039 = vpop.f32.mrf.mxu0
    %v2040 = vadd.f32 %v708, %v2039
    %v2041 = vpop.f32.mrf.mxu0
    %v2042 = vadd.f32 %v712, %v2041
    %v2043 = vpop.f32.mrf.mxu0
    %v2044 = vadd.f32 %v708, %v2043
    %v2045 = vpop.f32.mrf.mxu0
    %v2046 = vadd.f32 %v712, %v2045
    %2047 = vdwg.mxu0
    %2048 = vmatprep.subr.bf16.mxu0 %v1586
    %2049 = vmatpush1.bf16.msra.mxu0 %v1585
    %2050 = vmatprep.subr.bf16.mxu0 %v1582
    %2051 = vmatpush1.bf16.msra.mxu0 %v1581
    %2052 = vmatprep.subr.bf16.mxu0 %v1578
    %2053 = vmatpush1.bf16.msra.mxu0 %v1577
    %2054 = vmatprep.subr.bf16.mxu0 %v1574
    %2055 = vmatpush1.bf16.msra.mxu0 %v1573
    %2056 = vmatprep.subr.bf16.mxu0 %v1570
    %2057 = vmatpush1.bf16.msra.mxu0 %v1569
    %2058 = vmatprep.subr.bf16.mxu0 %v1566
    %2059 = vmatpush1.bf16.msra.mxu0 %v1565
    %2060 = vmatprep.subr.bf16.mxu0 %v1562
    %2061 = vmatpush1.bf16.msra.mxu0 %v1561
    %2062 = vmatprep.subr.bf16.mxu0 %v1558
    %2063 = vmatpush1.bf16.msra.mxu0 %v1557
    %2064 = vmatprep.subr.bf16.mxu0 %v1618
    %2065 = vmatpush2.bf16.msra.mxu0 %v1617
    %2066 = vmatprep.subr.bf16.mxu0 %v1614
    %2067 = vmatpush2.bf16.msra.mxu0 %v1613
    %2068 = vmatprep.subr.bf16.mxu0 %v1610
    %2069 = vmatpush2.bf16.msra.mxu0 %v1609
    %2070 = vmatprep.subr.bf16.mxu0 %v1606
    %2071 = vmatpush2.bf16.msra.mxu0 %v1605
    %2072 = vmatprep.subr.bf16.mxu0 %v1602
    %2073 = vmatpush2.bf16.msra.mxu0 %v1601
    %2074 = vmatprep.subr.bf16.mxu0 %v1598
    %2075 = vmatpush2.bf16.msra.mxu0 %v1597
    %2076 = vmatprep.subr.bf16.mxu0 %v1594
    %2077 = vmatpush2.bf16.msra.mxu0 %v1593
    %2078 = vmatprep.subr.bf16.mxu0 %v1590
    %2079 = vmatpush2.bf16.msra.mxu0 %v1589
    %2080 = vmatprep.mubr.bf16.mxu0 %v442
    %2081 = vmatmul.mubr.bf16.gmra.mxu0 %v441
    %v2082 = vpop.f32.mrf.mxu0
    %v2083 = vadd.f32 %v2040, %v2082
    %v2084 = vpop.f32.mrf.mxu0
    %v2085 = vadd.f32 %v2042, %v2084
    %v2086 = vpop.f32.mrf.mxu0
    %v2087 = vadd.f32 %v2044, %v2086
    %v2088 = vpop.f32.mrf.mxu0
    %v2089 = vadd.f32 %v2046, %v2088
    %2090 = vdwg.mxu0
    %2091 = vmatprep.subr.bf16.mxu0 %v1650
    %2092 = vmatpush1.bf16.msra.mxu0 %v1649
    %2093 = vmatprep.subr.bf16.mxu0 %v1646
    %2094 = vmatpush1.bf16.msra.mxu0 %v1645
    %2095 = vmatprep.subr.bf16.mxu0 %v1642
    %2096 = vmatpush1.bf16.msra.mxu0 %v1641
    %2097 = vmatprep.subr.bf16.mxu0 %v1638
    %2098 = vmatpush1.bf16.msra.mxu0 %v1637
    %2099 = vmatprep.subr.bf16.mxu0 %v1634
    %2100 = vmatpush1.bf16.msra.mxu0 %v1633
    %2101 = vmatprep.subr.bf16.mxu0 %v1630
    %2102 = vmatpush1.bf16.msra.mxu0 %v1629
    %2103 = vmatprep.subr.bf16.mxu0 %v1626
    %2104 = vmatpush1.bf16.msra.mxu0 %v1625
    %2105 = vmatprep.subr.bf16.mxu0 %v1622
    %2106 = vmatpush1.bf16.msra.mxu0 %v1621
    %2107 = vmatprep.subr.bf16.mxu0 %v1682
    %2108 = vmatpush2.bf16.msra.mxu0 %v1681
    %2109 = vmatprep.subr.bf16.mxu0 %v1678
    %2110 = vmatpush2.bf16.msra.mxu0 %v1677
    %2111 = vmatprep.subr.bf16.mxu0 %v1674
    %2112 = vmatpush2.bf16.msra.mxu0 %v1673
    %2113 = vmatprep.subr.bf16.mxu0 %v1670
    %2114 = vmatpush2.bf16.msra.mxu0 %v1669
    %2115 = vmatprep.subr.bf16.mxu0 %v1666
    %2116 = vmatpush2.bf16.msra.mxu0 %v1665
    %2117 = vmatprep.subr.bf16.mxu0 %v1662
    %2118 = vmatpush2.bf16.msra.mxu0 %v1661
    %2119 = vmatprep.subr.bf16.mxu0 %v1658
    %2120 = vmatpush2.bf16.msra.mxu0 %v1657
    %2121 = vmatprep.subr.bf16.mxu0 %v1654
    %2122 = vmatpush2.bf16.msra.mxu0 %v1653
    %2123 = vmatprep.mubr.bf16.mxu0 %v444
    %2124 = vmatmul.mubr.bf16.gmra.mxu0 %v443
    %v2125 = vpop.f32.mrf.mxu0
    %v2126 = vadd.f32 %v2083, %v2125
    %v2127 = vpop.f32.mrf.mxu0
    %v2128 = vadd.f32 %v2085, %v2127
    %v2129 = vpop.f32.mrf.mxu0
    %v2130 = vadd.f32 %v2087, %v2129
    %v2131 = vpop.f32.mrf.mxu0
    %v2132 = vadd.f32 %v2089, %v2131
    %2133 = vdwg.mxu0
    %2134 = vmatprep.subr.bf16.mxu0 %v1714
    %2135 = vmatpush1.bf16.msra.mxu0 %v1713
    %2136 = vmatprep.subr.bf16.mxu0 %v1710
    %2137 = vmatpush1.bf16.msra.mxu0 %v1709
    %2138 = vmatprep.subr.bf16.mxu0 %v1706
    %2139 = vmatpush1.bf16.msra.mxu0 %v1705
    %2140 = vmatprep.subr.bf16.mxu0 %v1702
    %2141 = vmatpush1.bf16.msra.mxu0 %v1701
    %2142 = vmatprep.subr.bf16.mxu0 %v1698
    %2143 = vmatpush1.bf16.msra.mxu0 %v1697
    %2144 = vmatprep.subr.bf16.mxu0 %v1694
    %2145 = vmatpush1.bf16.msra.mxu0 %v1693
    %2146 = vmatprep.subr.bf16.mxu0 %v1690
    %2147 = vmatpush1.bf16.msra.mxu0 %v1689
    %2148 = vmatprep.subr.bf16.mxu0 %v1686
    %2149 = vmatpush1.bf16.msra.mxu0 %v1685
    %2150 = vmatprep.subr.bf16.mxu0 %v1746
    %2151 = vmatpush2.bf16.msra.mxu0 %v1745
    %2152 = vmatprep.subr.bf16.mxu0 %v1742
    %2153 = vmatpush2.bf16.msra.mxu0 %v1741
    %2154 = vmatprep.subr.bf16.mxu0 %v1738
    %2155 = vmatpush2.bf16.msra.mxu0 %v1737
    %2156 = vmatprep.subr.bf16.mxu0 %v1734
    %2157 = vmatpush2.bf16.msra.mxu0 %v1733
    %2158 = vmatprep.subr.bf16.mxu0 %v1730
    %2159 = vmatpush2.bf16.msra.mxu0 %v1729
    %2160 = vmatprep.subr.bf16.mxu0 %v1726
    %2161 = vmatpush2.bf16.msra.mxu0 %v1725
    %2162 = vmatprep.subr.bf16.mxu0 %v1722
    %2163 = vmatpush2.bf16.msra.mxu0 %v1721
    %2164 = vmatprep.subr.bf16.mxu0 %v1718
    %2165 = vmatpush2.bf16.msra.mxu0 %v1717
    %2166 = vmatprep.mubr.bf16.mxu0 %v446
    %2167 = vmatmul.mubr.bf16.gmra.mxu0 %v445
    %v2168 = vpop.f32.mrf.mxu0
    %v2169 = vadd.f32 %v2126, %v2168
    %v2170 = vpop.f32.mrf.mxu0
    %v2171 = vadd.f32 %v2128, %v2170
    %v2172 = vpop.f32.mrf.mxu0
    %v2173 = vadd.f32 %v2130, %v2172
    %v2174 = vpop.f32.mrf.mxu0
    %v2175 = vadd.f32 %v2132, %v2174
    %2176 = vdwg.mxu0
    %2177 = vmatprep.subr.bf16.mxu0 %v1524
    %2178 = vmatpush1.bf16.msra.mxu0 %v1523
    %2179 = vmatprep.subr.bf16.mxu0 %v1520
    %2180 = vmatpush1.bf16.msra.mxu0 %v1519
    %2181 = vmatprep.subr.bf16.mxu0 %v1516
    %2182 = vmatpush1.bf16.msra.mxu0 %v1515
    %2183 = vmatprep.subr.bf16.mxu0 %v1512
    %2184 = vmatpush1.bf16.msra.mxu0 %v1511
    %2185 = vmatprep.subr.bf16.mxu0 %v1508
    %2186 = vmatpush1.bf16.msra.mxu0 %v1507
    %2187 = vmatprep.subr.bf16.mxu0 %v1504
    %2188 = vmatpush1.bf16.msra.mxu0 %v1503
    %2189 = vmatprep.subr.bf16.mxu0 %v1500
    %2190 = vmatpush1.bf16.msra.mxu0 %v1499
    %2191 = vmatprep.subr.bf16.mxu0 %v1496
    %2192 = vmatpush1.bf16.msra.mxu0 %v1495
    %2193 = vmatprep.subr.bf16.mxu0 %v1556
    %2194 = vmatpush2.bf16.msra.mxu0 %v1555
    %2195 = vmatprep.subr.bf16.mxu0 %v1552
    %2196 = vmatpush2.bf16.msra.mxu0 %v1551
    %2197 = vmatprep.subr.bf16.mxu0 %v1548
    %2198 = vmatpush2.bf16.msra.mxu0 %v1547
    %2199 = vmatprep.subr.bf16.mxu0 %v1544
    %2200 = vmatpush2.bf16.msra.mxu0 %v1543
    %2201 = vmatprep.subr.bf16.mxu0 %v1540
    %2202 = vmatpush2.bf16.msra.mxu0 %v1539
    %2203 = vmatprep.subr.bf16.mxu0 %v1536
    %2204 = vmatpush2.bf16.msra.mxu0 %v1535
    %2205 = vmatprep.subr.bf16.mxu0 %v1532
    %2206 = vmatpush2.bf16.msra.mxu0 %v1531
    %2207 = vmatprep.subr.bf16.mxu0 %v1528
    %2208 = vmatpush2.bf16.msra.mxu0 %v1527
    %2209 = vmatprep.mubr.bf16.mxu0 %v440
    %2210 = vmatmul.mubr.bf16.gmra.mxu0 %v439
    %v2211 = vpop.f32.mrf.mxu0
    %v2212 = vadd.f32 %v716, %v2211
    %v2213 = vpop.f32.mrf.mxu0
    %v2214 = vadd.f32 %v720, %v2213
    %v2215 = vpop.f32.mrf.mxu0
    %v2216 = vadd.f32 %v716, %v2215
    %v2217 = vpop.f32.mrf.mxu0
    %v2218 = vadd.f32 %v720, %v2217
    %2219 = vdwg.mxu0
    %2220 = vmatprep.subr.bf16.mxu0 %v1588
    %2221 = vmatpush1.bf16.msra.mxu0 %v1587
    %2222 = vmatprep.subr.bf16.mxu0 %v1584
    %2223 = vmatpush1.bf16.msra.mxu0 %v1583
    %2224 = vmatprep.subr.bf16.mxu0 %v1580
    %2225 = vmatpush1.bf16.msra.mxu0 %v1579
    %2226 = vmatprep.subr.bf16.mxu0 %v1576
    %2227 = vmatpush1.bf16.msra.mxu0 %v1575
    %2228 = vmatprep.subr.bf16.mxu0 %v1572
    %2229 = vmatpush1.bf16.msra.mxu0 %v1571
    %2230 = vmatprep.subr.bf16.mxu0 %v1568
    %2231 = vmatpush1.bf16.msra.mxu0 %v1567
    %2232 = vmatprep.subr.bf16.mxu0 %v1564
    %2233 = vmatpush1.bf16.msra.mxu0 %v1563
    %2234 = vmatprep.subr.bf16.mxu0 %v1560
    %2235 = vmatpush1.bf16.msra.mxu0 %v1559
    %2236 = vmatprep.subr.bf16.mxu0 %v1620
    %2237 = vmatpush2.bf16.msra.mxu0 %v1619
    %2238 = vmatprep.subr.bf16.mxu0 %v1616
    %2239 = vmatpush2.bf16.msra.mxu0 %v1615
    %2240 = vmatprep.subr.bf16.mxu0 %v1612
    %2241 = vmatpush2.bf16.msra.mxu0 %v1611
    %2242 = vmatprep.subr.bf16.mxu0 %v1608
    %2243 = vmatpush2.bf16.msra.mxu0 %v1607
    %2244 = vmatprep.subr.bf16.mxu0 %v1604
    %2245 = vmatpush2.bf16.msra.mxu0 %v1603
    %2246 = vmatprep.subr.bf16.mxu0 %v1600
    %2247 = vmatpush2.bf16.msra.mxu0 %v1599
    %2248 = vmatprep.subr.bf16.mxu0 %v1596
    %2249 = vmatpush2.bf16.msra.mxu0 %v1595
    %2250 = vmatprep.subr.bf16.mxu0 %v1592
    %2251 = vmatpush2.bf16.msra.mxu0 %v1591
    %2252 = vmatprep.mubr.bf16.mxu0 %v442
    %2253 = vmatmul.mubr.bf16.gmra.mxu0 %v441
    %v2254 = vpop.f32.mrf.mxu0
    %v2255 = vadd.f32 %v2212, %v2254
    %v2256 = vpop.f32.mrf.mxu0
    %v2257 = vadd.f32 %v2214, %v2256
    %v2258 = vpop.f32.mrf.mxu0
    %v2259 = vadd.f32 %v2216, %v2258
    %v2260 = vpop.f32.mrf.mxu0
    %v2261 = vadd.f32 %v2218, %v2260
    %2262 = vdwg.mxu0
    %2263 = vmatprep.subr.bf16.mxu0 %v1652
    %2264 = vmatpush1.bf16.msra.mxu0 %v1651
    %2265 = vmatprep.subr.bf16.mxu0 %v1648
    %2266 = vmatpush1.bf16.msra.mxu0 %v1647
    %2267 = vmatprep.subr.bf16.mxu0 %v1644
    %2268 = vmatpush1.bf16.msra.mxu0 %v1643
    %2269 = vmatprep.subr.bf16.mxu0 %v1640
    %2270 = vmatpush1.bf16.msra.mxu0 %v1639
    %2271 = vmatprep.subr.bf16.mxu0 %v1636
    %2272 = vmatpush1.bf16.msra.mxu0 %v1635
    %2273 = vmatprep.subr.bf16.mxu0 %v1632
    %2274 = vmatpush1.bf16.msra.mxu0 %v1631
    %2275 = vmatprep.subr.bf16.mxu0 %v1628
    %2276 = vmatpush1.bf16.msra.mxu0 %v1627
    %2277 = vmatprep.subr.bf16.mxu0 %v1624
    %2278 = vmatpush1.bf16.msra.mxu0 %v1623
    %2279 = vmatprep.subr.bf16.mxu0 %v1684
    %2280 = vmatpush2.bf16.msra.mxu0 %v1683
    %2281 = vmatprep.subr.bf16.mxu0 %v1680
    %2282 = vmatpush2.bf16.msra.mxu0 %v1679
    %2283 = vmatprep.subr.bf16.mxu0 %v1676
    %2284 = vmatpush2.bf16.msra.mxu0 %v1675
    %2285 = vmatprep.subr.bf16.mxu0 %v1672
    %2286 = vmatpush2.bf16.msra.mxu0 %v1671
    %2287 = vmatprep.subr.bf16.mxu0 %v1668
    %2288 = vmatpush2.bf16.msra.mxu0 %v1667
    %2289 = vmatprep.subr.bf16.mxu0 %v1664
    %2290 = vmatpush2.bf16.msra.mxu0 %v1663
    %2291 = vmatprep.subr.bf16.mxu0 %v1660
    %2292 = vmatpush2.bf16.msra.mxu0 %v1659
    %2293 = vmatprep.subr.bf16.mxu0 %v1656
    %2294 = vmatpush2.bf16.msra.mxu0 %v1655
    %2295 = vmatprep.mubr.bf16.mxu0 %v444
    %2296 = vmatmul.mubr.bf16.gmra.mxu0 %v443
    %v2297 = vpop.f32.mrf.mxu0
    %v2298 = vadd.f32 %v2255, %v2297
    %v2299 = vpop.f32.mrf.mxu0
    %v2300 = vadd.f32 %v2257, %v2299
    %v2301 = vpop.f32.mrf.mxu0
    %v2302 = vadd.f32 %v2259, %v2301
    %v2303 = vpop.f32.mrf.mxu0
    %v2304 = vadd.f32 %v2261, %v2303
    %2305 = vdwg.mxu0
    %2306 = vmatprep.subr.bf16.mxu0 %v1716
    %2307 = vmatpush1.bf16.msra.mxu0 %v1715
    %2308 = vmatprep.subr.bf16.mxu0 %v1712
    %2309 = vmatpush1.bf16.msra.mxu0 %v1711
    %2310 = vmatprep.subr.bf16.mxu0 %v1708
    %2311 = vmatpush1.bf16.msra.mxu0 %v1707
    %2312 = vmatprep.subr.bf16.mxu0 %v1704
    %2313 = vmatpush1.bf16.msra.mxu0 %v1703
    %2314 = vmatprep.subr.bf16.mxu0 %v1700
    %2315 = vmatpush1.bf16.msra.mxu0 %v1699
    %2316 = vmatprep.subr.bf16.mxu0 %v1696
    %2317 = vmatpush1.bf16.msra.mxu0 %v1695
    %2318 = vmatprep.subr.bf16.mxu0 %v1692
    %2319 = vmatpush1.bf16.msra.mxu0 %v1691
    %2320 = vmatprep.subr.bf16.mxu0 %v1688
    %2321 = vmatpush1.bf16.msra.mxu0 %v1687
    %2322 = vmatprep.subr.bf16.mxu0 %v1748
    %2323 = vmatpush2.bf16.msra.mxu0 %v1747
    %2324 = vmatprep.subr.bf16.mxu0 %v1744
    %2325 = vmatpush2.bf16.msra.mxu0 %v1743
    %2326 = vmatprep.subr.bf16.mxu0 %v1740
    %2327 = vmatpush2.bf16.msra.mxu0 %v1739
    %2328 = vmatprep.subr.bf16.mxu0 %v1736
    %2329 = vmatpush2.bf16.msra.mxu0 %v1735
    %2330 = vmatprep.subr.bf16.mxu0 %v1732
    %2331 = vmatpush2.bf16.msra.mxu0 %v1731
    %2332 = vmatprep.subr.bf16.mxu0 %v1728
    %2333 = vmatpush2.bf16.msra.mxu0 %v1727
    %2334 = vmatprep.subr.bf16.mxu0 %v1724
    %2335 = vmatpush2.bf16.msra.mxu0 %v1723
    %2336 = vmatprep.subr.bf16.mxu0 %v1720
    %2337 = vmatpush2.bf16.msra.mxu0 %v1719
    %2338 = vmatprep.mubr.bf16.mxu0 %v446
    %2339 = vmatmul.mubr.bf16.gmra.mxu0 %v445
    %v2340 = vpop.f32.mrf.mxu0
    %v2341 = vadd.f32 %v2298, %v2340
    %v2342 = vpop.f32.mrf.mxu0
    %v2343 = vadd.f32 %v2300, %v2342
    %v2344 = vpop.f32.mrf.mxu0
    %v2345 = vadd.f32 %v2302, %v2344
    %v2346 = vpop.f32.mrf.mxu0
    %v2347 = vadd.f32 %v2304, %v2346
    %2348 = vdwg.mxu0
    %v2349 = vmax.f32 %v2169, 0.0
    %v2350 = vmax.f32 %v2171, 0.0
    %v2351 = vmax.f32 %v2341, 0.0
    %v2352 = vmax.f32 %v2343, 0.0
    %v2353 = vmax.f32 %v2173, 0.0
    %v2354 = vmax.f32 %v2175, 0.0
    %v2355 = vmax.f32 %v2345, 0.0
    %v2356 = vmax.f32 %v2347, 0.0
    %v2357 = vpack.c.bf16 %v2353, %v2349
    %v2358 = vpack.c.bf16 %v2354, %v2350
    %v2359 = vpack.c.bf16 %v2355, %v2351
    %v2360 = vpack.c.bf16 %v2356, %v2352
    %v2361 = vld [vmem:[#allocation7] sm:$0xff]
    %v2362 = vld [vmem:[#allocation7 + $0x8] sm:$0xff]
    %v2363 = vld [vmem:[#allocation7 + $0x10] sm:$0xff]
    %v2364 = vld [vmem:[#allocation7 + $0x18] sm:$0xff]
    %v2365 = vld [vmem:[#allocation7 + $0x20] sm:$0xff]
    %v2366 = vld [vmem:[#allocation7 + $0x28] sm:$0xff]
    %v2367 = vld [vmem:[#allocation7 + $0x30] sm:$0xff]
    %v2368 = vld [vmem:[#allocation7 + $0x38] sm:$0xff]
    %v2369 = vld [vmem:[#allocation7 + $0x40] sm:$0xff]
    %v2370 = vld [vmem:[#allocation7 + $0x48] sm:$0xff]
    %v2371 = vld [vmem:[#allocation7 + $0x50] sm:$0xff]
    %v2372 = vld [vmem:[#allocation7 + $0x58] sm:$0xff]
    %v2373 = vld [vmem:[#allocation7 + $0x60] sm:$0xff]
    %v2374 = vld [vmem:[#allocation7 + $0x68] sm:$0xff]
    %v2375 = vld [vmem:[#allocation7 + $0x70] sm:$0xff]
    %v2376 = vld [vmem:[#allocation7 + $0x78] sm:$0xff]
    %v2377 = vld [vmem:[#allocation7 + $0x80] sm:$0xff]
    %v2378 = vld [vmem:[#allocation7 + $0x88] sm:$0xff]
    %v2379 = vld [vmem:[#allocation7 + $0x90] sm:$0xff]
    %v2380 = vld [vmem:[#allocation7 + $0x98] sm:$0xff]
    %v2381 = vld [vmem:[#allocation7 + $0xa0] sm:$0xff]
    %v2382 = vld [vmem:[#allocation7 + $0xa8] sm:$0xff]
    %v2383 = vld [vmem:[#allocation7 + $0xb0] sm:$0xff]
    %v2384 = vld [vmem:[#allocation7 + $0xb8] sm:$0xff]
    %v2385 = vld [vmem:[#allocation7 + $0xc0] sm:$0xff]
    %v2386 = vld [vmem:[#allocation7 + $0xc8] sm:$0xff]
    %v2387 = vld [vmem:[#allocation7 + $0xd0] sm:$0xff]
    %v2388 = vld [vmem:[#allocation7 + $0xd8] sm:$0xff]
    %v2389 = vld [vmem:[#allocation7 + $0xe0] sm:$0xff]
    %v2390 = vld [vmem:[#allocation7 + $0xe8] sm:$0xff]
    %v2391 = vld [vmem:[#allocation7 + $0xf0] sm:$0xff]
    %v2392 = vld [vmem:[#allocation7 + $0xf8] sm:$0xff]
    %v2393 = vld [vmem:[#allocation7 + $0x100] sm:$0xff]
    %v2394 = vld [vmem:[#allocation7 + $0x108] sm:$0xff]
    %v2395 = vld [vmem:[#allocation7 + $0x110] sm:$0xff]
    %v2396 = vld [vmem:[#allocation7 + $0x118] sm:$0xff]
    %v2397 = vld [vmem:[#allocation7 + $0x120] sm:$0xff]
    %v2398 = vld [vmem:[#allocation7 + $0x128] sm:$0xff]
    %v2399 = vld [vmem:[#allocation7 + $0x130] sm:$0xff]
    %v2400 = vld [vmem:[#allocation7 + $0x138] sm:$0xff]
    %v2401 = vld [vmem:[#allocation7 + $0x140] sm:$0xff]
    %v2402 = vld [vmem:[#allocation7 + $0x148] sm:$0xff]
    %v2403 = vld [vmem:[#allocation7 + $0x150] sm:$0xff]
    %v2404 = vld [vmem:[#allocation7 + $0x158] sm:$0xff]
    %v2405 = vld [vmem:[#allocation7 + $0x160] sm:$0xff]
    %v2406 = vld [vmem:[#allocation7 + $0x168] sm:$0xff]
    %v2407 = vld [vmem:[#allocation7 + $0x170] sm:$0xff]
    %v2408 = vld [vmem:[#allocation7 + $0x178] sm:$0xff]
    %v2409 = vld [vmem:[#allocation7 + $0x180] sm:$0xff]
    %v2410 = vld [vmem:[#allocation7 + $0x188] sm:$0xff]
    %v2411 = vld [vmem:[#allocation7 + $0x190] sm:$0xff]
    %v2412 = vld [vmem:[#allocation7 + $0x198] sm:$0xff]
    %v2413 = vld [vmem:[#allocation7 + $0x1a0] sm:$0xff]
    %v2414 = vld [vmem:[#allocation7 + $0x1a8] sm:$0xff]
    %v2415 = vld [vmem:[#allocation7 + $0x1b0] sm:$0xff]
    %v2416 = vld [vmem:[#allocation7 + $0x1b8] sm:$0xff]
    %v2417 = vld [vmem:[#allocation7 + $0x1c0] sm:$0xff]
    %v2418 = vld [vmem:[#allocation7 + $0x1c8] sm:$0xff]
    %v2419 = vld [vmem:[#allocation7 + $0x1d0] sm:$0xff]
    %v2420 = vld [vmem:[#allocation7 + $0x1d8] sm:$0xff]
    %v2421 = vld [vmem:[#allocation7 + $0x1e0] sm:$0xff]
    %v2422 = vld [vmem:[#allocation7 + $0x1e8] sm:$0xff]
    %v2423 = vld [vmem:[#allocation7 + $0x1f0] sm:$0xff]
    %v2424 = vld [vmem:[#allocation7 + $0x1f8] sm:$0xff]
    %v2425 = vld [vmem:[%s6] sm:$0x3]
    %v2427 = vlaneseq
    %v2428 = vshrl.u32 %v2427, 7
    %v2429 = vsub.s32 0, %v2428
    %v2430 = vrot.slane %v2425, %v2429
    %v2431 = vlaneseq
    %v2432 = vshrl.u32 %v2431, 7
    %v2433 = vsub.s32 1, %v2432
    %v2434 = vrot.slane %v2425, %v2433
    %v2501 = vunpack.c.l.b16 %v2361
    %v2502 = vunpack.c.h.b16 %v2361
    %v2503 = vunpack.c.l.b16 %v2362
    %v2504 = vunpack.c.h.b16 %v2362
    %v2505 = vunpack.c.l.b16 %v2363
    %v2506 = vunpack.c.h.b16 %v2363
    %v2507 = vunpack.c.l.b16 %v2364
    %v2508 = vunpack.c.h.b16 %v2364
    %v2509 = vunpack.c.l.b16 %v2365
    %v2510 = vunpack.c.h.b16 %v2365
    %v2511 = vunpack.c.l.b16 %v2366
    %v2512 = vunpack.c.h.b16 %v2366
    %v2513 = vunpack.c.l.b16 %v2367
    %v2514 = vunpack.c.h.b16 %v2367
    %v2515 = vunpack.c.l.b16 %v2368
    %v2516 = vunpack.c.h.b16 %v2368
    %v2517 = vunpack.c.l.b16 %v2369
    %v2518 = vunpack.c.h.b16 %v2369
    %v2519 = vunpack.c.l.b16 %v2370
    %v2520 = vunpack.c.h.b16 %v2370
    %v2521 = vunpack.c.l.b16 %v2371
    %v2522 = vunpack.c.h.b16 %v2371
    %v2523 = vunpack.c.l.b16 %v2372
    %v2524 = vunpack.c.h.b16 %v2372
    %v2525 = vunpack.c.l.b16 %v2373
    %v2526 = vunpack.c.h.b16 %v2373
    %v2527 = vunpack.c.l.b16 %v2374
    %v2528 = vunpack.c.h.b16 %v2374
    %v2529 = vunpack.c.l.b16 %v2375
    %v2530 = vunpack.c.h.b16 %v2375
    %v2531 = vunpack.c.l.b16 %v2376
    %v2532 = vunpack.c.h.b16 %v2376
    %v2533 = vunpack.c.l.b16 %v2377
    %v2534 = vunpack.c.h.b16 %v2377
    %v2535 = vunpack.c.l.b16 %v2378
    %v2536 = vunpack.c.h.b16 %v2378
    %v2537 = vunpack.c.l.b16 %v2379
    %v2538 = vunpack.c.h.b16 %v2379
    %v2539 = vunpack.c.l.b16 %v2380
    %v2540 = vunpack.c.h.b16 %v2380
    %v2541 = vunpack.c.l.b16 %v2381
    %v2542 = vunpack.c.h.b16 %v2381
    %v2543 = vunpack.c.l.b16 %v2382
    %v2544 = vunpack.c.h.b16 %v2382
    %v2545 = vunpack.c.l.b16 %v2383
    %v2546 = vunpack.c.h.b16 %v2383
    %v2547 = vunpack.c.l.b16 %v2384
    %v2548 = vunpack.c.h.b16 %v2384
    %v2549 = vunpack.c.l.b16 %v2385
    %v2550 = vunpack.c.h.b16 %v2385
    %v2551 = vunpack.c.l.b16 %v2386
    %v2552 = vunpack.c.h.b16 %v2386
    %v2553 = vunpack.c.l.b16 %v2387
    %v2554 = vunpack.c.h.b16 %v2387
    %v2555 = vunpack.c.l.b16 %v2388
    %v2556 = vunpack.c.h.b16 %v2388
    %v2557 = vunpack.c.l.b16 %v2389
    %v2558 = vunpack.c.h.b16 %v2389
    %v2559 = vunpack.c.l.b16 %v2390
    %v2560 = vunpack.c.h.b16 %v2390
    %v2561 = vunpack.c.l.b16 %v2391
    %v2562 = vunpack.c.h.b16 %v2391
    %v2563 = vunpack.c.l.b16 %v2392
    %v2564 = vunpack.c.h.b16 %v2392
    %v2565 = vunpack.c.l.b16 %v2393
    %v2566 = vunpack.c.h.b16 %v2393
    %v2567 = vunpack.c.l.b16 %v2394
    %v2568 = vunpack.c.h.b16 %v2394
    %v2569 = vunpack.c.l.b16 %v2395
    %v2570 = vunpack.c.h.b16 %v2395
    %v2571 = vunpack.c.l.b16 %v2396
    %v2572 = vunpack.c.h.b16 %v2396
    %v2573 = vunpack.c.l.b16 %v2397
    %v2574 = vunpack.c.h.b16 %v2397
    %v2575 = vunpack.c.l.b16 %v2398
    %v2576 = vunpack.c.h.b16 %v2398
    %v2577 = vunpack.c.l.b16 %v2399
    %v2578 = vunpack.c.h.b16 %v2399
    %v2579 = vunpack.c.l.b16 %v2400
    %v2580 = vunpack.c.h.b16 %v2400
    %v2581 = vunpack.c.l.b16 %v2401
    %v2582 = vunpack.c.h.b16 %v2401
    %v2583 = vunpack.c.l.b16 %v2402
    %v2584 = vunpack.c.h.b16 %v2402
    %v2585 = vunpack.c.l.b16 %v2403
    %v2586 = vunpack.c.h.b16 %v2403
    %v2587 = vunpack.c.l.b16 %v2404
    %v2588 = vunpack.c.h.b16 %v2404
    %v2589 = vunpack.c.l.b16 %v2405
    %v2590 = vunpack.c.h.b16 %v2405
    %v2591 = vunpack.c.l.b16 %v2406
    %v2592 = vunpack.c.h.b16 %v2406
    %v2593 = vunpack.c.l.b16 %v2407
    %v2594 = vunpack.c.h.b16 %v2407
    %v2595 = vunpack.c.l.b16 %v2408
    %v2596 = vunpack.c.h.b16 %v2408
    %v2597 = vunpack.c.l.b16 %v2409
    %v2598 = vunpack.c.h.b16 %v2409
    %v2599 = vunpack.c.l.b16 %v2410
    %v2600 = vunpack.c.h.b16 %v2410
    %v2601 = vunpack.c.l.b16 %v2411
    %v2602 = vunpack.c.h.b16 %v2411
    %v2603 = vunpack.c.l.b16 %v2412
    %v2604 = vunpack.c.h.b16 %v2412
    %v2605 = vunpack.c.l.b16 %v2413
    %v2606 = vunpack.c.h.b16 %v2413
    %v2607 = vunpack.c.l.b16 %v2414
    %v2608 = vunpack.c.h.b16 %v2414
    %v2609 = vunpack.c.l.b16 %v2415
    %v2610 = vunpack.c.h.b16 %v2415
    %v2611 = vunpack.c.l.b16 %v2416
    %v2612 = vunpack.c.h.b16 %v2416
    %v2613 = vunpack.c.l.b16 %v2417
    %v2614 = vunpack.c.h.b16 %v2417
    %v2615 = vunpack.c.l.b16 %v2418
    %v2616 = vunpack.c.h.b16 %v2418
    %v2617 = vunpack.c.l.b16 %v2419
    %v2618 = vunpack.c.h.b16 %v2419
    %v2619 = vunpack.c.l.b16 %v2420
    %v2620 = vunpack.c.h.b16 %v2420
    %v2621 = vunpack.c.l.b16 %v2421
    %v2622 = vunpack.c.h.b16 %v2421
    %v2623 = vunpack.c.l.b16 %v2422
    %v2624 = vunpack.c.h.b16 %v2422
    %v2625 = vunpack.c.l.b16 %v2423
    %v2626 = vunpack.c.h.b16 %v2423
    %v2627 = vunpack.c.l.b16 %v2424
    %v2628 = vunpack.c.h.b16 %v2424
    %v2629 = vpack.c.b16 %v2503, %v2501
    %v2630 = vpack.c.b16 %v2504, %v2502
    %v2631 = vpack.c.b16 %v2507, %v2505
    %v2632 = vpack.c.b16 %v2508, %v2506
    %v2633 = vpack.c.b16 %v2511, %v2509
    %v2634 = vpack.c.b16 %v2512, %v2510
    %v2635 = vpack.c.b16 %v2515, %v2513
    %v2636 = vpack.c.b16 %v2516, %v2514
    %v2637 = vpack.c.b16 %v2519, %v2517
    %v2638 = vpack.c.b16 %v2520, %v2518
    %v2639 = vpack.c.b16 %v2523, %v2521
    %v2640 = vpack.c.b16 %v2524, %v2522
    %v2641 = vpack.c.b16 %v2527, %v2525
    %v2642 = vpack.c.b16 %v2528, %v2526
    %v2643 = vpack.c.b16 %v2531, %v2529
    %v2644 = vpack.c.b16 %v2532, %v2530
    %v2645 = vpack.c.b16 %v2535, %v2533
    %v2646 = vpack.c.b16 %v2536, %v2534
    %v2647 = vpack.c.b16 %v2539, %v2537
    %v2648 = vpack.c.b16 %v2540, %v2538
    %v2649 = vpack.c.b16 %v2543, %v2541
    %v2650 = vpack.c.b16 %v2544, %v2542
    %v2651 = vpack.c.b16 %v2547, %v2545
    %v2652 = vpack.c.b16 %v2548, %v2546
    %v2653 = vpack.c.b16 %v2551, %v2549
    %v2654 = vpack.c.b16 %v2552, %v2550
    %v2655 = vpack.c.b16 %v2555, %v2553
    %v2656 = vpack.c.b16 %v2556, %v2554
    %v2657 = vpack.c.b16 %v2559, %v2557
    %v2658 = vpack.c.b16 %v2560, %v2558
    %v2659 = vpack.c.b16 %v2563, %v2561
    %v2660 = vpack.c.b16 %v2564, %v2562
    %v2661 = vpack.c.b16 %v2567, %v2565
    %v2662 = vpack.c.b16 %v2568, %v2566
    %v2663 = vpack.c.b16 %v2571, %v2569
    %v2664 = vpack.c.b16 %v2572, %v2570
    %v2665 = vpack.c.b16 %v2575, %v2573
    %v2666 = vpack.c.b16 %v2576, %v2574
    %v2667 = vpack.c.b16 %v2579, %v2577
    %v2668 = vpack.c.b16 %v2580, %v2578
    %v2669 = vpack.c.b16 %v2583, %v2581
    %v2670 = vpack.c.b16 %v2584, %v2582
    %v2671 = vpack.c.b16 %v2587, %v2585
    %v2672 = vpack.c.b16 %v2588, %v2586
    %v2673 = vpack.c.b16 %v2591, %v2589
    %v2674 = vpack.c.b16 %v2592, %v2590
    %v2675 = vpack.c.b16 %v2595, %v2593
    %v2676 = vpack.c.b16 %v2596, %v2594
    %v2677 = vpack.c.b16 %v2599, %v2597
    %v2678 = vpack.c.b16 %v2600, %v2598
    %v2679 = vpack.c.b16 %v2603, %v2601
    %v2680 = vpack.c.b16 %v2604, %v2602
    %v2681 = vpack.c.b16 %v2607, %v2605
    %v2682 = vpack.c.b16 %v2608, %v2606
    %v2683 = vpack.c.b16 %v2611, %v2609
    %v2684 = vpack.c.b16 %v2612, %v2610
    %v2685 = vpack.c.b16 %v2615, %v2613
    %v2686 = vpack.c.b16 %v2616, %v2614
    %v2687 = vpack.c.b16 %v2619, %v2617
    %v2688 = vpack.c.b16 %v2620, %v2618
    %v2689 = vpack.c.b16 %v2623, %v2621
    %v2690 = vpack.c.b16 %v2624, %v2622
    %v2691 = vpack.c.b16 %v2627, %v2625
    %v2692 = vpack.c.b16 %v2628, %v2626
    %2757 = vmatprep.subr.bf16.mxu0 %v2644
    %2758 = vmatpush1.bf16.msra.mxu0 %v2643
    %2759 = vmatprep.subr.bf16.mxu0 %v2642
    %2760 = vmatpush1.bf16.msra.mxu0 %v2641
    %2761 = vmatprep.subr.bf16.mxu0 %v2640
    %2762 = vmatpush1.bf16.msra.mxu0 %v2639
    %2763 = vmatprep.subr.bf16.mxu0 %v2638
    %2764 = vmatpush1.bf16.msra.mxu0 %v2637
    %2765 = vmatprep.subr.bf16.mxu0 %v2636
    %2766 = vmatpush1.bf16.msra.mxu0 %v2635
    %2767 = vmatprep.subr.bf16.mxu0 %v2634
    %2768 = vmatpush1.bf16.msra.mxu0 %v2633
    %2769 = vmatprep.subr.bf16.mxu0 %v2632
    %2770 = vmatpush1.bf16.msra.mxu0 %v2631
    %2771 = vmatprep.subr.bf16.mxu0 %v2630
    %2772 = vmatpush1.bf16.msra.mxu0 %v2629
    %2773 = vmatprep.subr.bf16.mxu0 %v2660
    %2774 = vmatpush2.bf16.msra.mxu0 %v2659
    %2775 = vmatprep.subr.bf16.mxu0 %v2658
    %2776 = vmatpush2.bf16.msra.mxu0 %v2657
    %2777 = vmatprep.subr.bf16.mxu0 %v2656
    %2778 = vmatpush2.bf16.msra.mxu0 %v2655
    %2779 = vmatprep.subr.bf16.mxu0 %v2654
    %2780 = vmatpush2.bf16.msra.mxu0 %v2653
    %2781 = vmatprep.subr.bf16.mxu0 %v2652
    %2782 = vmatpush2.bf16.msra.mxu0 %v2651
    %2783 = vmatprep.subr.bf16.mxu0 %v2650
    %2784 = vmatpush2.bf16.msra.mxu0 %v2649
    %2785 = vmatprep.subr.bf16.mxu0 %v2648
    %2786 = vmatpush2.bf16.msra.mxu0 %v2647
    %2787 = vmatprep.subr.bf16.mxu0 %v2646
    %2788 = vmatpush2.bf16.msra.mxu0 %v2645
    %2789 = vmatprep.mubr.bf16.mxu0 %v2358
    %2790 = vmatmul.mubr.bf16.gmra.mxu0 %v2357
    %v2791 = vpop.f32.mrf.mxu0
    %v2792 = vadd.f32 %v2430, %v2791
    %v2793 = vpop.f32.mrf.mxu0
    %v2794 = vadd.f32 %v2434, %v2793
    %v2795 = vpop.f32.mrf.mxu0
    %v2796 = vadd.f32 %v2430, %v2795
    %v2797 = vpop.f32.mrf.mxu0
    %v2798 = vadd.f32 %v2434, %v2797
    %2799 = vdwg.mxu0
    %2800 = vmatprep.subr.bf16.mxu0 %v2676
    %2801 = vmatpush1.bf16.msra.mxu0 %v2675
    %2802 = vmatprep.subr.bf16.mxu0 %v2674
    %2803 = vmatpush1.bf16.msra.mxu0 %v2673
    %2804 = vmatprep.subr.bf16.mxu0 %v2672
    %2805 = vmatpush1.bf16.msra.mxu0 %v2671
    %2806 = vmatprep.subr.bf16.mxu0 %v2670
    %2807 = vmatpush1.bf16.msra.mxu0 %v2669
    %2808 = vmatprep.subr.bf16.mxu0 %v2668
    %2809 = vmatpush1.bf16.msra.mxu0 %v2667
    %2810 = vmatprep.subr.bf16.mxu0 %v2666
    %2811 = vmatpush1.bf16.msra.mxu0 %v2665
    %2812 = vmatprep.subr.bf16.mxu0 %v2664
    %2813 = vmatpush1.bf16.msra.mxu0 %v2663
    %2814 = vmatprep.subr.bf16.mxu0 %v2662
    %2815 = vmatpush1.bf16.msra.mxu0 %v2661
    %2816 = vmatprep.subr.bf16.mxu0 %v2692
    %2817 = vmatpush2.bf16.msra.mxu0 %v2691
    %2818 = vmatprep.subr.bf16.mxu0 %v2690
    %2819 = vmatpush2.bf16.msra.mxu0 %v2689
    %2820 = vmatprep.subr.bf16.mxu0 %v2688
    %2821 = vmatpush2.bf16.msra.mxu0 %v2687
    %2822 = vmatprep.subr.bf16.mxu0 %v2686
    %2823 = vmatpush2.bf16.msra.mxu0 %v2685
    %2824 = vmatprep.subr.bf16.mxu0 %v2684
    %2825 = vmatpush2.bf16.msra.mxu0 %v2683
    %2826 = vmatprep.subr.bf16.mxu0 %v2682
    %2827 = vmatpush2.bf16.msra.mxu0 %v2681
    %2828 = vmatprep.subr.bf16.mxu0 %v2680
    %2829 = vmatpush2.bf16.msra.mxu0 %v2679
    %2830 = vmatprep.subr.bf16.mxu0 %v2678
    %2831 = vmatpush2.bf16.msra.mxu0 %v2677
    %2832 = vmatprep.mubr.bf16.mxu0 %v2360
    %2833 = vmatmul.mubr.bf16.gmra.mxu0 %v2359
    %v2834 = vpop.f32.mrf.mxu0
    %v2835 = vadd.f32 %v2792, %v2834
    %v2836 = vpop.f32.mrf.mxu0
    %v2837 = vadd.f32 %v2794, %v2836
    %v2838 = vpop.f32.mrf.mxu0
    %v2839 = vadd.f32 %v2796, %v2838
    %v2840 = vpop.f32.mrf.mxu0
    %v2841 = vadd.f32 %v2798, %v2840
    %2842 = vdwg.mxu0
    %v2843 = vmax.f32 %v2835, 0.0
    %v2844 = vmax.f32 %v2837, 0.0
    %v2845 = vmax.f32 %v2839, 0.0
    %v2846 = vmax.f32 %v2841, 0.0
    %v2847 = vpack.c.bf16 %v2845, %v2843
    %v2848 = vpack.c.bf16 %v2846, %v2844
    %v2849 = vld [vmem:[#allocation8] sm:$0xf]
    %v2850 = vld [vmem:[#allocation8 + $0x4] sm:$0xf]
    %v2851 = vld [vmem:[#allocation8 + $0x8] sm:$0xf]
    %v2852 = vld [vmem:[#allocation8 + $0xc] sm:$0xf]
    %v2853 = vld [vmem:[#allocation8 + $0x10] sm:$0xf]
    %v2854 = vld [vmem:[#allocation8 + $0x14] sm:$0xf]
    %v2855 = vld [vmem:[#allocation8 + $0x18] sm:$0xf]
    %v2856 = vld [vmem:[#allocation8 + $0x1c] sm:$0xf]
    %v2857 = vld [vmem:[#allocation8 + $0x20] sm:$0xf]
    %v2858 = vld [vmem:[#allocation8 + $0x24] sm:$0xf]
    %v2859 = vld [vmem:[#allocation8 + $0x28] sm:$0xf]
    %v2860 = vld [vmem:[#allocation8 + $0x2c] sm:$0xf]
    %v2861 = vld [vmem:[#allocation8 + $0x30] sm:$0xf]
    %v2862 = vld [vmem:[#allocation8 + $0x34] sm:$0xf]
    %v2863 = vld [vmem:[#allocation8 + $0x38] sm:$0xf]
    %v2864 = vld [vmem:[#allocation8 + $0x3c] sm:$0xf]
    %v2865 = vld [vmem:[#allocation8 + $0x40] sm:$0xf]
    %v2866 = vld [vmem:[#allocation8 + $0x44] sm:$0xf]
    %v2867 = vld [vmem:[#allocation8 + $0x48] sm:$0xf]
    %v2868 = vld [vmem:[#allocation8 + $0x4c] sm:$0xf]
    %v2869 = vld [vmem:[#allocation8 + $0x50] sm:$0xf]
    %v2870 = vld [vmem:[#allocation8 + $0x54] sm:$0xf]
    %v2871 = vld [vmem:[#allocation8 + $0x58] sm:$0xf]
    %v2872 = vld [vmem:[#allocation8 + $0x5c] sm:$0xf]
    %v2873 = vld [vmem:[#allocation8 + $0x60] sm:$0xf]
    %v2874 = vld [vmem:[#allocation8 + $0x64] sm:$0xf]
    %v2875 = vld [vmem:[#allocation8 + $0x68] sm:$0xf]
    %v2876 = vld [vmem:[#allocation8 + $0x6c] sm:$0xf]
    %v2877 = vld [vmem:[#allocation8 + $0x70] sm:$0xf]
    %v2878 = vld [vmem:[#allocation8 + $0x74] sm:$0xf]
    %v2879 = vld [vmem:[#allocation8 + $0x78] sm:$0xf]
    %v2880 = vld [vmem:[#allocation8 + $0x7c] sm:$0xf]
    %v2881 = vld [vmem:[%s8] sm:$0x1]
    %v2883 = vlaneseq
    %v2884 = vshrl.u32 %v2883, 7
    %v2885 = vsub.s32 0, %v2884
    %v2886 = vrot.slane %v2881, %v2885
    %v2920 = vunpack.c.l.b16 %v2849
    %v2921 = vunpack.c.l.b16 %v2850
    %v2922 = vunpack.c.l.b16 %v2851
    %v2923 = vunpack.c.l.b16 %v2852
    %v2924 = vunpack.c.l.b16 %v2853
    %v2925 = vunpack.c.l.b16 %v2854
    %v2926 = vunpack.c.l.b16 %v2855
    %v2927 = vunpack.c.l.b16 %v2856
    %v2928 = vunpack.c.l.b16 %v2857
    %v2929 = vunpack.c.l.b16 %v2858
    %v2930 = vunpack.c.l.b16 %v2859
    %v2931 = vunpack.c.l.b16 %v2860
    %v2932 = vunpack.c.l.b16 %v2861
    %v2933 = vunpack.c.l.b16 %v2862
    %v2934 = vunpack.c.l.b16 %v2863
    %v2935 = vunpack.c.l.b16 %v2864
    %v2936 = vunpack.c.l.b16 %v2865
    %v2937 = vunpack.c.l.b16 %v2866
    %v2938 = vunpack.c.l.b16 %v2867
    %v2939 = vunpack.c.l.b16 %v2868
    %v2940 = vunpack.c.l.b16 %v2869
    %v2941 = vunpack.c.l.b16 %v2870
    %v2942 = vunpack.c.l.b16 %v2871
    %v2943 = vunpack.c.l.b16 %v2872
    %v2944 = vunpack.c.l.b16 %v2873
    %v2945 = vunpack.c.l.b16 %v2874
    %v2946 = vunpack.c.l.b16 %v2875
    %v2947 = vunpack.c.l.b16 %v2876
    %v2948 = vunpack.c.l.b16 %v2877
    %v2949 = vunpack.c.l.b16 %v2878
    %v2950 = vunpack.c.l.b16 %v2879
    %v2951 = vunpack.c.l.b16 %v2880
    %v2952 = vpack.c.b16 %v2921, %v2920
    %v2953 = vpack.c.b16 %v2923, %v2922
    %v2954 = vpack.c.b16 %v2925, %v2924
    %v2955 = vpack.c.b16 %v2927, %v2926
    %v2956 = vpack.c.b16 %v2929, %v2928
    %v2957 = vpack.c.b16 %v2931, %v2930
    %v2958 = vpack.c.b16 %v2933, %v2932
    %v2959 = vpack.c.b16 %v2935, %v2934
    %v2960 = vpack.c.b16 %v2937, %v2936
    %v2961 = vpack.c.b16 %v2939, %v2938
    %v2962 = vpack.c.b16 %v2941, %v2940
    %v2963 = vpack.c.b16 %v2943, %v2942
    %v2964 = vpack.c.b16 %v2945, %v2944
    %v2965 = vpack.c.b16 %v2947, %v2946
    %v2966 = vpack.c.b16 %v2949, %v2948
    %v2967 = vpack.c.b16 %v2951, %v2950
    %2984 = vmatprep.subr.bf16.mxu0 0
    %2985 = vmatpush1.bf16.msra.mxu0 %v2959
    %2986 = vmatprep.subr.bf16.mxu0 0
    %2987 = vmatpush1.bf16.msra.mxu0 %v2958
    %2988 = vmatprep.subr.bf16.mxu0 0
    %2989 = vmatpush1.bf16.msra.mxu0 %v2957
    %2990 = vmatprep.subr.bf16.mxu0 0
    %2991 = vmatpush1.bf16.msra.mxu0 %v2956
    %2992 = vmatprep.subr.bf16.mxu0 0
    %2993 = vmatpush1.bf16.msra.mxu0 %v2955
    %2994 = vmatprep.subr.bf16.mxu0 0
    %2995 = vmatpush1.bf16.msra.mxu0 %v2954
    %2996 = vmatprep.subr.bf16.mxu0 0
    %2997 = vmatpush1.bf16.msra.mxu0 %v2953
    %2998 = vmatprep.subr.bf16.mxu0 0
    %2999 = vmatpush1.bf16.msra.mxu0 %v2952
    %3000 = vmatprep.subr.bf16.mxu0 0
    %3001 = vmatpush2.bf16.msra.mxu0 %v2967
    %3002 = vmatprep.subr.bf16.mxu0 0
    %3003 = vmatpush2.bf16.msra.mxu0 %v2966
    %3004 = vmatprep.subr.bf16.mxu0 0
    %3005 = vmatpush2.bf16.msra.mxu0 %v2965
    %3006 = vmatprep.subr.bf16.mxu0 0
    %3007 = vmatpush2.bf16.msra.mxu0 %v2964
    %3008 = vmatprep.subr.bf16.mxu0 0
    %3009 = vmatpush2.bf16.msra.mxu0 %v2963
    %3010 = vmatprep.subr.bf16.mxu0 0
    %3011 = vmatpush2.bf16.msra.mxu0 %v2962
    %3012 = vmatprep.subr.bf16.mxu0 0
    %3013 = vmatpush2.bf16.msra.mxu0 %v2961
    %3014 = vmatprep.subr.bf16.mxu0 0
    %3015 = vmatpush2.bf16.msra.mxu0 %v2960
    %3016 = vmatprep.mubr.bf16.mxu0 %v2848
    %3017 = vmatmul.mubr.bf16.gmra.mxu0 %v2847
    %v3018 = vpop.f32.mrf.mxu0
    %v3019 = vadd.f32 %v2886, %v3018
    %v3020 = vpop.f32.mrf.mxu0
    %v3021 = vpop.f32.mrf.mxu0
    %v3022 = vadd.f32 %v2886, %v3021
    %v3023 = vpop.f32.mrf.mxu0
    %3024 = vdwg.mxu0
    %v3025 = vmax.f32 %v3019, 0.0
    %v3026 = vmax.f32 %v3022, 0.0
    %v3027 = vpack.c.bf16 %v3026, %v3025
    %v3028 = vld [vmem:[%s9] sm:$0xf]
    %v3029 = vld [vmem:[%s9 + $0x4] sm:$0xf]
    %v3030 = vld [vmem:[%s9 + $0x8] sm:$0xf]
    %v3031 = vld [vmem:[%s9 + $0xc] sm:$0xf]
    %v3032 = vld [vmem:[%s9 + $0x10] sm:$0xf]
    %v3033 = vld [vmem:[%s9 + $0x14] sm:$0xf]
    %v3034 = vld [vmem:[%s9 + $0x18] sm:$0xf]
    %v3035 = vld [vmem:[%s9 + $0x1c] sm:$0xf]
    %v3036 = vld [vmem:[%s9 + $0x20] sm:$0xf]
    %v3037 = vld [vmem:[%s9 + $0x24] sm:$0xf]
    %v3038 = vld [vmem:[%s9 + $0x28] sm:$0xf]
    %v3039 = vld [vmem:[%s9 + $0x2c] sm:$0xf]
    %v3040 = vld [vmem:[%s9 + $0x30] sm:$0xf]
    %v3041 = vld [vmem:[%s9 + $0x34] sm:$0xf]
    %v3042 = vld [vmem:[%s9 + $0x38] sm:$0xf]
    %v3043 = vld [vmem:[%s9 + $0x3c] sm:$0xf]
    %v3044 = vld [vmem:[%s10] sm:$0x1]
    %v3046 = vlaneseq
    %v3047 = vshrl.u32 %v3046, 7
    %v3048 = vsub.s32 0, %v3047
    %v3049 = vrot.slane %v3044, %v3048
    %v3067 = vunpack.c.l.b16 %v3028
    %v3068 = vunpack.c.l.b16 %v3029
    %v3069 = vunpack.c.l.b16 %v3030
    %v3070 = vunpack.c.l.b16 %v3031
    %v3071 = vunpack.c.l.b16 %v3032
    %v3072 = vunpack.c.l.b16 %v3033
    %v3073 = vunpack.c.l.b16 %v3034
    %v3074 = vunpack.c.l.b16 %v3035
    %v3075 = vunpack.c.l.b16 %v3036
    %v3076 = vunpack.c.l.b16 %v3037
    %v3077 = vunpack.c.l.b16 %v3038
    %v3078 = vunpack.c.l.b16 %v3039
    %v3079 = vunpack.c.l.b16 %v3040
    %v3080 = vunpack.c.l.b16 %v3041
    %v3081 = vunpack.c.l.b16 %v3042
    %v3082 = vunpack.c.l.b16 %v3043
    %v3083 = vpack.c.b16 %v3068, %v3067
    %v3084 = vpack.c.b16 %v3070, %v3069
    %v3085 = vpack.c.b16 %v3072, %v3071
    %v3086 = vpack.c.b16 %v3074, %v3073
    %v3087 = vpack.c.b16 %v3076, %v3075
    %v3088 = vpack.c.b16 %v3078, %v3077
    %v3089 = vpack.c.b16 %v3080, %v3079
    %v3090 = vpack.c.b16 %v3082, %v3081
    %3099 = vmatprep.subr.bf16.mxu0 0
    %3100 = vmatpush1.bf16.msra.mxu0 %v3090
    %3101 = vmatprep.subr.bf16.mxu0 0
    %3102 = vmatpush1.bf16.msra.mxu0 %v3089
    %3103 = vmatprep.subr.bf16.mxu0 0
    %3104 = vmatpush1.bf16.msra.mxu0 %v3088
    %3105 = vmatprep.subr.bf16.mxu0 0
    %3106 = vmatpush1.bf16.msra.mxu0 %v3087
    %3107 = vmatprep.subr.bf16.mxu0 0
    %3108 = vmatpush1.bf16.msra.mxu0 %v3086
    %3109 = vmatprep.subr.bf16.mxu0 0
    %3110 = vmatpush1.bf16.msra.mxu0 %v3085
    %3111 = vmatprep.subr.bf16.mxu0 0
    %3112 = vmatpush1.bf16.msra.mxu0 %v3084
    %3113 = vmatprep.subr.bf16.mxu0 0
    %3114 = vmatpush1.bf16.msra.mxu0 %v3083
    %3115 = vmatprep.subr.bf16.mxu0 0
    %3116 = vmatpush2.bf16.msra.mxu0 0
    %3117 = vmatprep.subr.bf16.mxu0 0
    %3118 = vmatpush2.bf16.msra.mxu0 0
    %3119 = vmatprep.subr.bf16.mxu0 0
    %3120 = vmatpush2.bf16.msra.mxu0 0
    %3121 = vmatprep.subr.bf16.mxu0 0
    %3122 = vmatpush2.bf16.msra.mxu0 0
    %3123 = vmatprep.subr.bf16.mxu0 0
    %3124 = vmatpush2.bf16.msra.mxu0 0
    %3125 = vmatprep.subr.bf16.mxu0 0
    %3126 = vmatpush2.bf16.msra.mxu0 0
    %3127 = vmatprep.subr.bf16.mxu0 0
    %3128 = vmatpush2.bf16.msra.mxu0 0
    %3129 = vmatprep.subr.bf16.mxu0 0
    %3130 = vmatpush2.bf16.msra.mxu0 0
    %3131 = vmatprep.mubr.bf16.mxu0 0
    %3132 = vmatmul.mubr.bf16.gmra.mxu0 %v3027
    %v3133 = vpop.f32.mrf.mxu0
    %v3134 = vadd.f32 %v3049, %v3133
    %v3135 = vpop.f32.mrf.mxu0
    %v3136 = vpop.f32.mrf.mxu0
    %v3137 = vadd.f32 %v3049, %v3136
    %v3138 = vpop.f32.mrf.mxu0
    %3139 = vdwg.mxu0
    %v3140 = vmax.f32 %v3134, 0.0
    %v3141 = vmax.f32 %v3137, 0.0
    %v3142 = vld [vmem:[%s11] sm:$0x1]
    %v3144 = vlaneseq
    %v3145 = vshrl.u32 %v3144, 7
    %v3146 = vsub.s32 0, %v3145
    %v3147 = vrot.slane %v3142, %v3146
    %v3149 = vmul.f32 %v3140, %v3147
    %v3150 = vmul.f32 %v3141, %v3147
    %vm3151 = vcmask 523264
    %v3152 = vsel %vm3151, %v3149, 0.0
    %3153 = vadd.xlane.f32.xlu0 %v3152
    %v3154 = vpop.xlane.xlu0 %3153
    %v3155 = vsel %vm3151, %v3150, 0.0
    %3156 = vadd.xlane.f32.xlu0 %v3155
    %v3157 = vpop.xlane.xlu0 %3156
    %v3158 = vld [vmem:[#allocation2] sm:$0x1]
    %v3160 = vlaneseq
    %v3161 = vshrl.u32 %v3160, 7
    %v3162 = vsub.s32 0, %v3161
    %v3163 = vrot.slane %v3158, %v3162
    %v3165 = vadd.f32 %v3154, %v3163
    %v3166 = vadd.f32 %v3157, %v3163
    %v3167 = vxor.u32 %v3165, 2147483648
    %v3168 = vxor.u32 %v3166, 2147483648
    %v3169 = vmul.f32 %v3167, 1.442695
    %v3170 = vpow.pop %v3169
    %v3171 = vmul.f32 %v3168, 1.442695
    %v3172 = vpow.pop %v3171
    %v3173 = vadd.f32 %v3170, 1.0
    %v3174 = vadd.f32 %v3172, 1.0
    %v3175 = vrcp.pop %v3173
    %v3176 = vmul.f32 1.0, %v3175
    %v3177 = vrcp.pop %v3174
    %v3178 = vmul.f32 1.0, %v3177
    %vm3179 = vcmask 7168
    %3180 = vst.msk [vmem:[%s13] sm:$0xff] %vm3179, %v3176
    %3181 = vst.msk [vmem:[%s13 + $0x8] sm:$0xff] %vm3179, %v3178
    // Predicated region
    $region70: #{tpu_custom_call.1} parent=1 // pred_check
      _
    $region71: #{tpu_custom_call.1} parent=1 // pred_check_branch
      %3183 = sbr.rel (0) target = $region73
    $region72: #{tpu_custom_call.1} parent=1 // pred_region
      _
    $region73: #{tpu_custom_call.1} parent=1 // pred_fallthru
      _
    // Predicated region
    $region74: #{tpu_custom_call.1} parent=1 // pred_check
      _
    $region75: #{tpu_custom_call.1} parent=1 // pred_check_branch
      %3185 = sbr.rel (0) target = $region77
    $region76: #{tpu_custom_call.1} parent=1 // pred_region
      _
    $region77: #{tpu_custom_call.1} parent=1 // pred_fallthru
      _
    %3186 = vsyncpa [#allocation4], 1
    %3187 = vsyncpa [#allocation6], 1
    %3188 = vsyncpa [#allocation9], 1

</llo_original>
